<compile_context>
chip_gen: v7x
topology: tpu7x:2x2x1
jax: 0.10.0
libtpu: 0.0.40
codegen_flags: <defaults>
</compile_context>

<pallas_src>
import functools

import jax
import jax.numpy as jnp
from jax.experimental import pallas as pl
from jax.experimental.pallas import tpu as pltpu

LANE = 128  # pad feature dim to a full lane tile -> lane-dense slices/stores


def _gru_kernel(B, T, N, Fp,
                x_ref, h0_ref, wx_ref, bx_ref, wgh_ref, wuh_ref, we_ref, be_ref,
                o_ref, xp_ref):
    """Whole-sequence edge-GRU in one invocation.

    x_ref rows are in native (b, t, n) order; o_ref rows are in (t, b, n)
    order (matching torch.stack(output_edge, dim=0)).
    """
    M = B * N

    # Batched x-projection for every (b, t, n) row at once, biases folded in.
    # Written to an explicit VMEM scratch so the unrolled T loop does not keep
    # a ~96-vreg slab live (regalloc would spill on the serial path).
    #   xp[:, 0:Fp]      x-part of reset gate
    #   xp[:, Fp:2Fp]    x-part of update gate
    #   xp[:, 2Fp:3Fp]   x-part of candidate
    xp_ref[...] = (jnp.dot(x_ref[...], wx_ref[...],
                           preferred_element_type=jnp.float32) + bx_ref[...])

    h = h0_ref[...]                                            # (M, Fp)
    for t in range(T):                                         # T small & static: unrolled
        # Assemble this timestep's x-projection from B per-batch chunks
        # (rows b*T*N + t*N .. +N, sublane-aligned) -> (M, 3Fp) in (b, n) order.
        xp_t = jnp.concatenate(
            [xp_ref[pl.ds(b * T * N + t * N, N), :] for b in range(B)], axis=0)

        # Fused recurrent gate matmul; single sigmoid dispatch for [r | u].
        # (v5e note: padded (Fp, 2Fp) RHS spans two MXU N-tiles there.)
        gh = jnp.dot(h, wgh_ref[...], preferred_element_type=jnp.float32)  # (M, 2Fp)
        gates = jax.nn.sigmoid(xp_t[:, :2 * Fp] + gh)
        r = gates[:, :Fp]
        u = gates[:, Fp:]

        c = jnp.tanh(xp_t[:, 2 * Fp:]
                     + jnp.dot(r * h, wuh_ref[...],
                               preferred_element_type=jnp.float32))
        h = u * h + (1.0 - u) * c

        # Stash h_t straight into the output slab ((t, b, n) row order):
        # full-lane, unmasked store.
        o_ref[pl.ds(t * M, M), :] = h

    # Deferred edge head, computed in place: one batched matmul + sigmoid.
    # Matches the module: W_edge is a raw nn.Parameter applied as h @ W_edge
    # (no transpose), unlike an nn.Linear.
    o_ref[...] = jax.nn.sigmoid(
        jnp.dot(o_ref[...], we_ref[...], preferred_element_type=jnp.float32)
        + be_ref[...])


def _pad2(a, rows, cols):
    r, c = a.shape
    return jnp.pad(a, ((0, rows - r), (0, cols - c)))


def encoder_gru_forward(inputs_edge, params, hidden_state_edge=None):
    """inputs_edge: (B, T, N, F) -> output (T, B, N, F), like Encoder_GRU.forward."""
    B, T, N, F = inputs_edge.shape
    M = B * N
    Fp = pl.cdiv(F, LANE) * LANE                 # padded (lane-dense) feature width

    # Native (b, t, n) row order -- no wrapper transpose dispatch.
    x_seq = inputs_edge.reshape(B * T * N, F).astype(jnp.float32)

    # PyTorch Linear: y = x @ W.T + b.  Split the transposed weights so the
    # concat [x, h] becomes x @ W_x + h @ W_h, fuse, and zero-pad every F-wide
    # block to Fp lanes so all in-kernel slices/stores are full 128-lane tiles.
    Wg_T = params["W_gate"].T.astype(jnp.float32)      # (2F, 2F) [in, out]
    Wu_T = params["W_update"].T.astype(jnp.float32)    # (2F, F)
    pad_cols = lambda a: _pad2(a, a.shape[0], Fp)
    pad_vec = lambda v: jnp.pad(v.astype(jnp.float32), (0, Fp - F))

    wx_all = jnp.concatenate(                                    # (F, 3Fp)
        [pad_cols(Wg_T[:F, :F]), pad_cols(Wg_T[:F, F:]), pad_cols(Wu_T[:F, :])],
        axis=1)
    bx_all = jnp.concatenate(                                    # (1, 3Fp)
        [pad_vec(params["b_gate"][:F]),
         pad_vec(params["b_gate"][F:]),
         pad_vec(params["b_update"])]).reshape(1, 3 * Fp)
    wgh = jnp.concatenate(                                       # (Fp, 2Fp)
        [_pad2(Wg_T[F:, :F], Fp, Fp), _pad2(Wg_T[F:, F:], Fp, Fp)], axis=1)
    wuh = _pad2(Wu_T[F:, :], Fp, Fp)                             # (Fp, Fp)
    w_edge = _pad2(params["W_edge"].astype(jnp.float32), Fp, Fp)  # (Fp, Fp)
    b_edge = pad_vec(params["b_edge"]).reshape(1, Fp)

    if hidden_state_edge is None:
        h0 = jnp.zeros((M, Fp), jnp.float32)
    else:
        h0 = _pad2(jnp.asarray(hidden_state_edge, jnp.float32).reshape(M, F), M, Fp)

    kernel = functools.partial(_gru_kernel, B, T, N, Fp)
    out = pl.pallas_call(
        kernel,
        out_shape=jax.ShapeDtypeStruct((T * M, Fp), jnp.float32),
        scratch_shapes=[pltpu.VMEM((B * T * N, 3 * Fp), jnp.float32)],
    )(x_seq, h0, wx_all, bx_all, wgh, wuh, w_edge, b_edge)

    # Rows already in (t, b, n) order; drop the zero-padded feature columns.
    return out.reshape(T, B, N, Fp)[..., :F]
    # TODO(synk): if B*N grows (>~512 rows), add a row-axis grid with
    # dimension_semantics=("parallel",) so both v7x TensorCores carry
    # independent row slices of the recurrence.


def _reference_forward(inputs_edge, params):
    """Pure-JAX mirror of the PyTorch forward, for verification."""
    B, T, N, F = inputs_edge.shape
    Wg, bg = params["W_gate"], params["b_gate"]
    Wu, bu = params["W_update"], params["b_update"]
    We, be = params["W_edge"], params["b_edge"]
    hx = jnp.zeros((B, N, F), jnp.float32)
    outs = []
    for t in range(T):
        x = inputs_edge[:, t]
        combined = jnp.concatenate([x, hx], axis=2)
        gates = combined @ Wg.T + bg
        r = jax.nn.sigmoid(gates[..., :F])
        u = jax.nn.sigmoid(gates[..., F:])
        c = jnp.tanh(jnp.concatenate([x, r * hx], axis=2) @ Wu.T + bu)
        hx = u * hx + (1.0 - u) * c
        outs.append(jax.nn.sigmoid(hx @ We + be))
    return jnp.stack(outs, axis=0)


def _init_params(key, F):
    ks = jax.random.split(key, 6)
    s = 0.1
    return {
        "W_gate": s * jax.random.normal(ks[0], (2 * F, 2 * F), jnp.float32),
        "b_gate": s * jax.random.normal(ks[1], (2 * F,), jnp.float32),
        "W_update": s * jax.random.normal(ks[2], (F, 2 * F), jnp.float32),
        "b_update": s * jax.random.normal(ks[3], (F,), jnp.float32),
        "W_edge": s * jax.random.normal(ks[4], (F, F), jnp.float32),
        "b_edge": s * jax.random.normal(ks[5], (F,), jnp.float32),
    }


if __name__ == "__main__":
    B, T, N, F = 2, 8, 16, 32   # batch, seq_len, num_edge, dim_in_edge
    key = jax.random.PRNGKey(0)
    k_x, k_p = jax.random.split(key)
    inputs_edge = jax.random.normal(k_x, (B, T, N, F), jnp.float32)
    params = _init_params(k_p, F)

    out = encoder_gru_forward(inputs_edge, params)
    out = jax.block_until_ready(out)

    ref = _reference_forward(inputs_edge, params)
    assert out.shape == (T, B, N, F)
    assert jnp.allclose(out, ref, atol=1e-5, rtol=1e-5), "mismatch vs reference"

    print("KERNEL_OK")
</pallas_src>

<mosaic_0001>
module attributes {stable_mosaic.version = 11 : i64} {
  func.func @_gru_kernel(%arg0: memref<256x32xf32, #tpu.memory_space<vmem>>, %arg1: memref<32x128xf32, #tpu.memory_space<vmem>>, %arg2: memref<32x384xf32, #tpu.memory_space<vmem>>, %arg3: memref<1x384xf32, #tpu.memory_space<vmem>>, %arg4: memref<128x256xf32, #tpu.memory_space<vmem>>, %arg5: memref<128x128xf32, #tpu.memory_space<vmem>>, %arg6: memref<128x128xf32, #tpu.memory_space<vmem>>, %arg7: memref<1x128xf32, #tpu.memory_space<vmem>>, %arg8: memref<256x128xf32, #tpu.memory_space<vmem>>, %arg9: memref<256x384xf32, #tpu.memory_space<vmem>>) attributes {dimension_semantics = [], scalar_prefetch = 0 : i64, scratch_operands = 1 : i64, tpu.core_type = #tpu.core_type<tc>} {
    %c0 = arith.constant 0 : index
    %c0_0 = arith.constant 0 : index
    %0 = vector.load %arg0[%c0, %c0_0] : memref<256x32xf32, #tpu.memory_space<vmem>>, vector<256x32xf32>
    %c0_1 = arith.constant 0 : index
    %c0_2 = arith.constant 0 : index
    %1 = vector.load %arg2[%c0_1, %c0_2] : memref<32x384xf32, #tpu.memory_space<vmem>>, vector<32x384xf32>
    %cst = arith.constant dense<0.000000e+00> : vector<256x384xf32>
    %2 = tpu.matmul %0, %1, %cst {dimension_numbers = #tpu.dot_dimension_numbers<[1], [0], [0], [1], [0, 0, 1, 1], [], []>} : vector<256x32xf32>, vector<32x384xf32>, vector<256x384xf32> -> vector<256x384xf32>
    %c0_3 = arith.constant 0 : index
    %c0_4 = arith.constant 0 : index
    %3 = vector.load %arg3[%c0_3, %c0_4] : memref<1x384xf32, #tpu.memory_space<vmem>>, vector<1x384xf32>
    %4 = vector.broadcast %3 : vector<1x384xf32> to vector<256x384xf32>
    %5 = arith.addf %2, %4 : vector<256x384xf32>
    %c0_5 = arith.constant 0 : index
    %c0_6 = arith.constant 0 : index
    %6 = vector.load %arg9[%c0_5, %c0_6] : memref<256x384xf32, #tpu.memory_space<vmem>>, vector<256x384xf32>
    tpu.vector_store %arg9[%c0_5, %c0_6], %5 {strides = array<i32>} : memref<256x384xf32, #tpu.memory_space<vmem>>, vector<256x384xf32>,
    %c0_7 = arith.constant 0 : index
    %c0_8 = arith.constant 0 : index
    %7 = vector.load %arg1[%c0_7, %c0_8] : memref<32x128xf32, #tpu.memory_space<vmem>>, vector<32x128xf32>
    %c0_9 = arith.constant 0 : index
    %c0_10 = arith.constant 0 : index
    %8 = vector.load %arg9[%c0_9, %c0_10] : memref<256x384xf32, #tpu.memory_space<vmem>>, vector<16x384xf32>
    %c128 = arith.constant 128 : index
    %c0_11 = arith.constant 0 : index
    %9 = vector.load %arg9[%c128, %c0_11] : memref<256x384xf32, #tpu.memory_space<vmem>>, vector<16x384xf32>
    %10 = tpu.concatenate %8, %9 in 0 : vector<16x384xf32>, vector<16x384xf32> -> vector<32x384xf32>
    %c0_12 = arith.constant 0 : index
    %c0_13 = arith.constant 0 : index
    %11 = vector.load %arg4[%c0_12, %c0_13] : memref<128x256xf32, #tpu.memory_space<vmem>>, vector<128x256xf32>
    %cst_14 = arith.constant dense<0.000000e+00> : vector<32x256xf32>
    %12 = tpu.matmul %7, %11, %cst_14 {dimension_numbers = #tpu.dot_dimension_numbers<[1], [0], [0], [1], [0, 0, 1, 1], [], []>} : vector<32x128xf32>, vector<128x256xf32>, vector<32x256xf32> -> vector<32x256xf32>
    %13 = vector.extract_strided_slice %10 {offsets = [0, 0], sizes = [32, 256], strides = [1, 1]} : vector<32x384xf32> to vector<32x256xf32>
    %14 = arith.addf %13, %12 : vector<32x256xf32>
    %15 = arith.negf %14 : vector<32x256xf32>
    %16 = math.exp %15 : vector<32x256xf32>
    %cst_15 = arith.constant 1.000000e+00 : f32
    %17 = vector.broadcast %cst_15 : f32 to vector<32x256xf32>
    %18 = arith.addf %17, %16 : vector<32x256xf32>
    %19 = arith.divf %17, %18 : vector<32x256xf32>
    %20 = vector.extract_strided_slice %19 {offsets = [0, 0], sizes = [32, 128], strides = [1, 1]} : vector<32x256xf32> to vector<32x128xf32>
    %21 = vector.extract_strided_slice %19 {offsets = [0, 128], sizes = [32, 128], strides = [1, 1]} : vector<32x256xf32> to vector<32x128xf32>
    %22 = vector.extract_strided_slice %10 {offsets = [0, 256], sizes = [32, 128], strides = [1, 1]} : vector<32x384xf32> to vector<32x128xf32>
    %23 = arith.mulf %20, %7 : vector<32x128xf32>
    %c0_16 = arith.constant 0 : index
    %c0_17 = arith.constant 0 : index
    %24 = vector.load %arg5[%c0_16, %c0_17] : memref<128x128xf32, #tpu.memory_space<vmem>>, vector<128x128xf32>
    %cst_18 = arith.constant dense<0.000000e+00> : vector<32x128xf32>
    %25 = tpu.matmul %23, %24, %cst_18 {dimension_numbers = #tpu.dot_dimension_numbers<[1], [0], [0], [1], [0, 0, 1, 1], [], []>} : vector<32x128xf32>, vector<128x128xf32>, vector<32x128xf32> -> vector<32x128xf32>
    %26 = arith.addf %22, %25 : vector<32x128xf32>
    %27 = math.tanh %26 : vector<32x128xf32>
    %28 = arith.mulf %21, %7 : vector<32x128xf32>
    %cst_19 = arith.constant 1.000000e+00 : f32
    %29 = vector.broadcast %cst_19 : f32 to vector<32x128xf32>
    %30 = arith.subf %29, %21 : vector<32x128xf32>
    %31 = arith.mulf %30, %27 : vector<32x128xf32>
    %32 = arith.addf %28, %31 : vector<32x128xf32>
    %c0_20 = arith.constant 0 : index
    %c0_21 = arith.constant 0 : index
    %33 = vector.load %arg8[%c0_20, %c0_21] : memref<256x128xf32, #tpu.memory_space<vmem>>, vector<32x128xf32>
    tpu.vector_store %arg8[%c0_20, %c0_21], %32 {strides = array<i32>} : memref<256x128xf32, #tpu.memory_space<vmem>>, vector<32x128xf32>,
    %c16 = arith.constant 16 : index
    %c0_22 = arith.constant 0 : index
    %34 = vector.load %arg9[%c16, %c0_22] : memref<256x384xf32, #tpu.memory_space<vmem>>, vector<16x384xf32>
    %c144 = arith.constant 144 : index
    %c0_23 = arith.constant 0 : index
    %35 = vector.load %arg9[%c144, %c0_23] : memref<256x384xf32, #tpu.memory_space<vmem>>, vector<16x384xf32>
    %36 = tpu.concatenate %34, %35 in 0 : vector<16x384xf32>, vector<16x384xf32> -> vector<32x384xf32>
    %c0_24 = arith.constant 0 : index
    %c0_25 = arith.constant 0 : index
    %37 = vector.load %arg4[%c0_24, %c0_25] : memref<128x256xf32, #tpu.memory_space<vmem>>, vector<128x256xf32>
    %cst_26 = arith.constant dense<0.000000e+00> : vector<32x256xf32>
    %38 = tpu.matmul %32, %37, %cst_26 {dimension_numbers = #tpu.dot_dimension_numbers<[1], [0], [0], [1], [0, 0, 1, 1], [], []>} : vector<32x128xf32>, vector<128x256xf32>, vector<32x256xf32> -> vector<32x256xf32>
    %39 = vector.extract_strided_slice %36 {offsets = [0, 0], sizes = [32, 256], strides = [1, 1]} : vector<32x384xf32> to vector<32x256xf32>
    %40 = arith.addf %39, %38 : vector<32x256xf32>
    %41 = arith.negf %40 : vector<32x256xf32>
    %42 = math.exp %41 : vector<32x256xf32>
    %cst_27 = arith.constant 1.000000e+00 : f32
    %43 = vector.broadcast %cst_27 : f32 to vector<32x256xf32>
    %44 = arith.addf %43, %42 : vector<32x256xf32>
    %45 = arith.divf %43, %44 : vector<32x256xf32>
    %46 = vector.extract_strided_slice %45 {offsets = [0, 0], sizes = [32, 128], strides = [1, 1]} : vector<32x256xf32> to vector<32x128xf32>
    %47 = vector.extract_strided_slice %45 {offsets = [0, 128], sizes = [32, 128], strides = [1, 1]} : vector<32x256xf32> to vector<32x128xf32>
    %48 = vector.extract_strided_slice %36 {offsets = [0, 256], sizes = [32, 128], strides = [1, 1]} : vector<32x384xf32> to vector<32x128xf32>
    %49 = arith.mulf %46, %32 : vector<32x128xf32>
    %c0_28 = arith.constant 0 : index
    %c0_29 = arith.constant 0 : index
    %50 = vector.load %arg5[%c0_28, %c0_29] : memref<128x128xf32, #tpu.memory_space<vmem>>, vector<128x128xf32>
    %cst_30 = arith.constant dense<0.000000e+00> : vector<32x128xf32>
    %51 = tpu.matmul %49, %50, %cst_30 {dimension_numbers = #tpu.dot_dimension_numbers<[1], [0], [0], [1], [0, 0, 1, 1], [], []>} : vector<32x128xf32>, vector<128x128xf32>, vector<32x128xf32> -> vector<32x128xf32>
    %52 = arith.addf %48, %51 : vector<32x128xf32>
    %53 = math.tanh %52 : vector<32x128xf32>
    %54 = arith.mulf %47, %32 : vector<32x128xf32>
    %cst_31 = arith.constant 1.000000e+00 : f32
    %55 = vector.broadcast %cst_31 : f32 to vector<32x128xf32>
    %56 = arith.subf %55, %47 : vector<32x128xf32>
    %57 = arith.mulf %56, %53 : vector<32x128xf32>
    %58 = arith.addf %54, %57 : vector<32x128xf32>
    %c32 = arith.constant 32 : index
    %c0_32 = arith.constant 0 : index
    %59 = vector.load %arg8[%c32, %c0_32] : memref<256x128xf32, #tpu.memory_space<vmem>>, vector<32x128xf32>
    tpu.vector_store %arg8[%c32, %c0_32], %58 {strides = array<i32>} : memref<256x128xf32, #tpu.memory_space<vmem>>, vector<32x128xf32>,
    %c32_33 = arith.constant 32 : index
    %c0_34 = arith.constant 0 : index
    %60 = vector.load %arg9[%c32_33, %c0_34] : memref<256x384xf32, #tpu.memory_space<vmem>>, vector<16x384xf32>
    %c160 = arith.constant 160 : index
    %c0_35 = arith.constant 0 : index
    %61 = vector.load %arg9[%c160, %c0_35] : memref<256x384xf32, #tpu.memory_space<vmem>>, vector<16x384xf32>
    %62 = tpu.concatenate %60, %61 in 0 : vector<16x384xf32>, vector<16x384xf32> -> vector<32x384xf32>
    %c0_36 = arith.constant 0 : index
    %c0_37 = arith.constant 0 : index
    %63 = vector.load %arg4[%c0_36, %c0_37] : memref<128x256xf32, #tpu.memory_space<vmem>>, vector<128x256xf32>
    %cst_38 = arith.constant dense<0.000000e+00> : vector<32x256xf32>
    %64 = tpu.matmul %58, %63, %cst_38 {dimension_numbers = #tpu.dot_dimension_numbers<[1], [0], [0], [1], [0, 0, 1, 1], [], []>} : vector<32x128xf32>, vector<128x256xf32>, vector<32x256xf32> -> vector<32x256xf32>
    %65 = vector.extract_strided_slice %62 {offsets = [0, 0], sizes = [32, 256], strides = [1, 1]} : vector<32x384xf32> to vector<32x256xf32>
    %66 = arith.addf %65, %64 : vector<32x256xf32>
    %67 = arith.negf %66 : vector<32x256xf32>
    %68 = math.exp %67 : vector<32x256xf32>
    %cst_39 = arith.constant 1.000000e+00 : f32
    %69 = vector.broadcast %cst_39 : f32 to vector<32x256xf32>
    %70 = arith.addf %69, %68 : vector<32x256xf32>
    %71 = arith.divf %69, %70 : vector<32x256xf32>
    %72 = vector.extract_strided_slice %71 {offsets = [0, 0], sizes = [32, 128], strides = [1, 1]} : vector<32x256xf32> to vector<32x128xf32>
    %73 = vector.extract_strided_slice %71 {offsets = [0, 128], sizes = [32, 128], strides = [1, 1]} : vector<32x256xf32> to vector<32x128xf32>
    %74 = vector.extract_strided_slice %62 {offsets = [0, 256], sizes = [32, 128], strides = [1, 1]} : vector<32x384xf32> to vector<32x128xf32>
    %75 = arith.mulf %72, %58 : vector<32x128xf32>
    %c0_40 = arith.constant 0 : index
    %c0_41 = arith.constant 0 : index
    %76 = vector.load %arg5[%c0_40, %c0_41] : memref<128x128xf32, #tpu.memory_space<vmem>>, vector<128x128xf32>
    %cst_42 = arith.constant dense<0.000000e+00> : vector<32x128xf32>
    %77 = tpu.matmul %75, %76, %cst_42 {dimension_numbers = #tpu.dot_dimension_numbers<[1], [0], [0], [1], [0, 0, 1, 1], [], []>} : vector<32x128xf32>, vector<128x128xf32>, vector<32x128xf32> -> vector<32x128xf32>
    %78 = arith.addf %74, %77 : vector<32x128xf32>
    %79 = math.tanh %78 : vector<32x128xf32>
    %80 = arith.mulf %73, %58 : vector<32x128xf32>
    %cst_43 = arith.constant 1.000000e+00 : f32
    %81 = vector.broadcast %cst_43 : f32 to vector<32x128xf32>
    %82 = arith.subf %81, %73 : vector<32x128xf32>
    %83 = arith.mulf %82, %79 : vector<32x128xf32>
    %84 = arith.addf %80, %83 : vector<32x128xf32>
    %c64 = arith.constant 64 : index
    %c0_44 = arith.constant 0 : index
    %85 = vector.load %arg8[%c64, %c0_44] : memref<256x128xf32, #tpu.memory_space<vmem>>, vector<32x128xf32>
    tpu.vector_store %arg8[%c64, %c0_44], %84 {strides = array<i32>} : memref<256x128xf32, #tpu.memory_space<vmem>>, vector<32x128xf32>,
    %c48 = arith.constant 48 : index
    %c0_45 = arith.constant 0 : index
    %86 = vector.load %arg9[%c48, %c0_45] : memref<256x384xf32, #tpu.memory_space<vmem>>, vector<16x384xf32>
    %c176 = arith.constant 176 : index
    %c0_46 = arith.constant 0 : index
    %87 = vector.load %arg9[%c176, %c0_46] : memref<256x384xf32, #tpu.memory_space<vmem>>, vector<16x384xf32>
    %88 = tpu.concatenate %86, %87 in 0 : vector<16x384xf32>, vector<16x384xf32> -> vector<32x384xf32>
    %c0_47 = arith.constant 0 : index
    %c0_48 = arith.constant 0 : index
    %89 = vector.load %arg4[%c0_47, %c0_48] : memref<128x256xf32, #tpu.memory_space<vmem>>, vector<128x256xf32>
    %cst_49 = arith.constant dense<0.000000e+00> : vector<32x256xf32>
    %90 = tpu.matmul %84, %89, %cst_49 {dimension_numbers = #tpu.dot_dimension_numbers<[1], [0], [0], [1], [0, 0, 1, 1], [], []>} : vector<32x128xf32>, vector<128x256xf32>, vector<32x256xf32> -> vector<32x256xf32>
    %91 = vector.extract_strided_slice %88 {offsets = [0, 0], sizes = [32, 256], strides = [1, 1]} : vector<32x384xf32> to vector<32x256xf32>
    %92 = arith.addf %91, %90 : vector<32x256xf32>
    %93 = arith.negf %92 : vector<32x256xf32>
    %94 = math.exp %93 : vector<32x256xf32>
    %cst_50 = arith.constant 1.000000e+00 : f32
    %95 = vector.broadcast %cst_50 : f32 to vector<32x256xf32>
    %96 = arith.addf %95, %94 : vector<32x256xf32>
    %97 = arith.divf %95, %96 : vector<32x256xf32>
    %98 = vector.extract_strided_slice %97 {offsets = [0, 0], sizes = [32, 128], strides = [1, 1]} : vector<32x256xf32> to vector<32x128xf32>
    %99 = vector.extract_strided_slice %97 {offsets = [0, 128], sizes = [32, 128], strides = [1, 1]} : vector<32x256xf32> to vector<32x128xf32>
    %100 = vector.extract_strided_slice %88 {offsets = [0, 256], sizes = [32, 128], strides = [1, 1]} : vector<32x384xf32> to vector<32x128xf32>
    %101 = arith.mulf %98, %84 : vector<32x128xf32>
    %c0_51 = arith.constant 0 : index
    %c0_52 = arith.constant 0 : index
    %102 = vector.load %arg5[%c0_51, %c0_52] : memref<128x128xf32, #tpu.memory_space<vmem>>, vector<128x128xf32>
    %cst_53 = arith.constant dense<0.000000e+00> : vector<32x128xf32>
    %103 = tpu.matmul %101, %102, %cst_53 {dimension_numbers = #tpu.dot_dimension_numbers<[1], [0], [0], [1], [0, 0, 1, 1], [], []>} : vector<32x128xf32>, vector<128x128xf32>, vector<32x128xf32> -> vector<32x128xf32>
    %104 = arith.addf %100, %103 : vector<32x128xf32>
    %105 = math.tanh %104 : vector<32x128xf32>
    %106 = arith.mulf %99, %84 : vector<32x128xf32>
    %cst_54 = arith.constant 1.000000e+00 : f32
    %107 = vector.broadcast %cst_54 : f32 to vector<32x128xf32>
    %108 = arith.subf %107, %99 : vector<32x128xf32>
    %109 = arith.mulf %108, %105 : vector<32x128xf32>
    %110 = arith.addf %106, %109 : vector<32x128xf32>
    %c96 = arith.constant 96 : index
    %c0_55 = arith.constant 0 : index
    %111 = vector.load %arg8[%c96, %c0_55] : memref<256x128xf32, #tpu.memory_space<vmem>>, vector<32x128xf32>
    tpu.vector_store %arg8[%c96, %c0_55], %110 {strides = array<i32>} : memref<256x128xf32, #tpu.memory_space<vmem>>, vector<32x128xf32>,
    %c64_56 = arith.constant 64 : index
    %c0_57 = arith.constant 0 : index
    %112 = vector.load %arg9[%c64_56, %c0_57] : memref<256x384xf32, #tpu.memory_space<vmem>>, vector<16x384xf32>
    %c192 = arith.constant 192 : index
    %c0_58 = arith.constant 0 : index
    %113 = vector.load %arg9[%c192, %c0_58] : memref<256x384xf32, #tpu.memory_space<vmem>>, vector<16x384xf32>
    %114 = tpu.concatenate %112, %113 in 0 : vector<16x384xf32>, vector<16x384xf32> -> vector<32x384xf32>
    %c0_59 = arith.constant 0 : index
    %c0_60 = arith.constant 0 : index
    %115 = vector.load %arg4[%c0_59, %c0_60] : memref<128x256xf32, #tpu.memory_space<vmem>>, vector<128x256xf32>
    %cst_61 = arith.constant dense<0.000000e+00> : vector<32x256xf32>
    %116 = tpu.matmul %110, %115, %cst_61 {dimension_numbers = #tpu.dot_dimension_numbers<[1], [0], [0], [1], [0, 0, 1, 1], [], []>} : vector<32x128xf32>, vector<128x256xf32>, vector<32x256xf32> -> vector<32x256xf32>
    %117 = vector.extract_strided_slice %114 {offsets = [0, 0], sizes = [32, 256], strides = [1, 1]} : vector<32x384xf32> to vector<32x256xf32>
    %118 = arith.addf %117, %116 : vector<32x256xf32>
    %119 = arith.negf %118 : vector<32x256xf32>
    %120 = math.exp %119 : vector<32x256xf32>
    %cst_62 = arith.constant 1.000000e+00 : f32
    %121 = vector.broadcast %cst_62 : f32 to vector<32x256xf32>
    %122 = arith.addf %121, %120 : vector<32x256xf32>
    %123 = arith.divf %121, %122 : vector<32x256xf32>
    %124 = vector.extract_strided_slice %123 {offsets = [0, 0], sizes = [32, 128], strides = [1, 1]} : vector<32x256xf32> to vector<32x128xf32>
    %125 = vector.extract_strided_slice %123 {offsets = [0, 128], sizes = [32, 128], strides = [1, 1]} : vector<32x256xf32> to vector<32x128xf32>
    %126 = vector.extract_strided_slice %114 {offsets = [0, 256], sizes = [32, 128], strides = [1, 1]} : vector<32x384xf32> to vector<32x128xf32>
    %127 = arith.mulf %124, %110 : vector<32x128xf32>
    %c0_63 = arith.constant 0 : index
    %c0_64 = arith.constant 0 : index
    %128 = vector.load %arg5[%c0_63, %c0_64] : memref<128x128xf32, #tpu.memory_space<vmem>>, vector<128x128xf32>
    %cst_65 = arith.constant dense<0.000000e+00> : vector<32x128xf32>
    %129 = tpu.matmul %127, %128, %cst_65 {dimension_numbers = #tpu.dot_dimension_numbers<[1], [0], [0], [1], [0, 0, 1, 1], [], []>} : vector<32x128xf32>, vector<128x128xf32>, vector<32x128xf32> -> vector<32x128xf32>
    %130 = arith.addf %126, %129 : vector<32x128xf32>
    %131 = math.tanh %130 : vector<32x128xf32>
    %132 = arith.mulf %125, %110 : vector<32x128xf32>
    %cst_66 = arith.constant 1.000000e+00 : f32
    %133 = vector.broadcast %cst_66 : f32 to vector<32x128xf32>
    %134 = arith.subf %133, %125 : vector<32x128xf32>
    %135 = arith.mulf %134, %131 : vector<32x128xf32>
    %136 = arith.addf %132, %135 : vector<32x128xf32>
    %c128_67 = arith.constant 128 : index
    %c0_68 = arith.constant 0 : index
    %137 = vector.load %arg8[%c128_67, %c0_68] : memref<256x128xf32, #tpu.memory_space<vmem>>, vector<32x128xf32>
    tpu.vector_store %arg8[%c128_67, %c0_68], %136 {strides = array<i32>} : memref<256x128xf32, #tpu.memory_space<vmem>>, vector<32x128xf32>,
    %c80 = arith.constant 80 : index
    %c0_69 = arith.constant 0 : index
    %138 = vector.load %arg9[%c80, %c0_69] : memref<256x384xf32, #tpu.memory_space<vmem>>, vector<16x384xf32>
    %c208 = arith.constant 208 : index
    %c0_70 = arith.constant 0 : index
    %139 = vector.load %arg9[%c208, %c0_70] : memref<256x384xf32, #tpu.memory_space<vmem>>, vector<16x384xf32>
    %140 = tpu.concatenate %138, %139 in 0 : vector<16x384xf32>, vector<16x384xf32> -> vector<32x384xf32>
    %c0_71 = arith.constant 0 : index
    %c0_72 = arith.constant 0 : index
    %141 = vector.load %arg4[%c0_71, %c0_72] : memref<128x256xf32, #tpu.memory_space<vmem>>, vector<128x256xf32>
    %cst_73 = arith.constant dense<0.000000e+00> : vector<32x256xf32>
    %142 = tpu.matmul %136, %141, %cst_73 {dimension_numbers = #tpu.dot_dimension_numbers<[1], [0], [0], [1], [0, 0, 1, 1], [], []>} : vector<32x128xf32>, vector<128x256xf32>, vector<32x256xf32> -> vector<32x256xf32>
    %143 = vector.extract_strided_slice %140 {offsets = [0, 0], sizes = [32, 256], strides = [1, 1]} : vector<32x384xf32> to vector<32x256xf32>
    %144 = arith.addf %143, %142 : vector<32x256xf32>
    %145 = arith.negf %144 : vector<32x256xf32>
    %146 = math.exp %145 : vector<32x256xf32>
    %cst_74 = arith.constant 1.000000e+00 : f32
    %147 = vector.broadcast %cst_74 : f32 to vector<32x256xf32>
    %148 = arith.addf %147, %146 : vector<32x256xf32>
    %149 = arith.divf %147, %148 : vector<32x256xf32>
    %150 = vector.extract_strided_slice %149 {offsets = [0, 0], sizes = [32, 128], strides = [1, 1]} : vector<32x256xf32> to vector<32x128xf32>
    %151 = vector.extract_strided_slice %149 {offsets = [0, 128], sizes = [32, 128], strides = [1, 1]} : vector<32x256xf32> to vector<32x128xf32>
    %152 = vector.extract_strided_slice %140 {offsets = [0, 256], sizes = [32, 128], strides = [1, 1]} : vector<32x384xf32> to vector<32x128xf32>
    %153 = arith.mulf %150, %136 : vector<32x128xf32>
    %c0_75 = arith.constant 0 : index
    %c0_76 = arith.constant 0 : index
    %154 = vector.load %arg5[%c0_75, %c0_76] : memref<128x128xf32, #tpu.memory_space<vmem>>, vector<128x128xf32>
    %cst_77 = arith.constant dense<0.000000e+00> : vector<32x128xf32>
    %155 = tpu.matmul %153, %154, %cst_77 {dimension_numbers = #tpu.dot_dimension_numbers<[1], [0], [0], [1], [0, 0, 1, 1], [], []>} : vector<32x128xf32>, vector<128x128xf32>, vector<32x128xf32> -> vector<32x128xf32>
    %156 = arith.addf %152, %155 : vector<32x128xf32>
    %157 = math.tanh %156 : vector<32x128xf32>
    %158 = arith.mulf %151, %136 : vector<32x128xf32>
    %cst_78 = arith.constant 1.000000e+00 : f32
    %159 = vector.broadcast %cst_78 : f32 to vector<32x128xf32>
    %160 = arith.subf %159, %151 : vector<32x128xf32>
    %161 = arith.mulf %160, %157 : vector<32x128xf32>
    %162 = arith.addf %158, %161 : vector<32x128xf32>
    %c160_79 = arith.constant 160 : index
    %c0_80 = arith.constant 0 : index
    %163 = vector.load %arg8[%c160_79, %c0_80] : memref<256x128xf32, #tpu.memory_space<vmem>>, vector<32x128xf32>
    tpu.vector_store %arg8[%c160_79, %c0_80], %162 {strides = array<i32>} : memref<256x128xf32, #tpu.memory_space<vmem>>, vector<32x128xf32>,
    %c96_81 = arith.constant 96 : index
    %c0_82 = arith.constant 0 : index
    %164 = vector.load %arg9[%c96_81, %c0_82] : memref<256x384xf32, #tpu.memory_space<vmem>>, vector<16x384xf32>
    %c224 = arith.constant 224 : index
    %c0_83 = arith.constant 0 : index
    %165 = vector.load %arg9[%c224, %c0_83] : memref<256x384xf32, #tpu.memory_space<vmem>>, vector<16x384xf32>
    %166 = tpu.concatenate %164, %165 in 0 : vector<16x384xf32>, vector<16x384xf32> -> vector<32x384xf32>
    %c0_84 = arith.constant 0 : index
    %c0_85 = arith.constant 0 : index
    %167 = vector.load %arg4[%c0_84, %c0_85] : memref<128x256xf32, #tpu.memory_space<vmem>>, vector<128x256xf32>
    %cst_86 = arith.constant dense<0.000000e+00> : vector<32x256xf32>
    %168 = tpu.matmul %162, %167, %cst_86 {dimension_numbers = #tpu.dot_dimension_numbers<[1], [0], [0], [1], [0, 0, 1, 1], [], []>} : vector<32x128xf32>, vector<128x256xf32>, vector<32x256xf32> -> vector<32x256xf32>
    %169 = vector.extract_strided_slice %166 {offsets = [0, 0], sizes = [32, 256], strides = [1, 1]} : vector<32x384xf32> to vector<32x256xf32>
    %170 = arith.addf %169, %168 : vector<32x256xf32>
    %171 = arith.negf %170 : vector<32x256xf32>
    %172 = math.exp %171 : vector<32x256xf32>
    %cst_87 = arith.constant 1.000000e+00 : f32
    %173 = vector.broadcast %cst_87 : f32 to vector<32x256xf32>
    %174 = arith.addf %173, %172 : vector<32x256xf32>
    %175 = arith.divf %173, %174 : vector<32x256xf32>
    %176 = vector.extract_strided_slice %175 {offsets = [0, 0], sizes = [32, 128], strides = [1, 1]} : vector<32x256xf32> to vector<32x128xf32>
    %177 = vector.extract_strided_slice %175 {offsets = [0, 128], sizes = [32, 128], strides = [1, 1]} : vector<32x256xf32> to vector<32x128xf32>
    %178 = vector.extract_strided_slice %166 {offsets = [0, 256], sizes = [32, 128], strides = [1, 1]} : vector<32x384xf32> to vector<32x128xf32>
    %179 = arith.mulf %176, %162 : vector<32x128xf32>
    %c0_88 = arith.constant 0 : index
    %c0_89 = arith.constant 0 : index
    %180 = vector.load %arg5[%c0_88, %c0_89] : memref<128x128xf32, #tpu.memory_space<vmem>>, vector<128x128xf32>
    %cst_90 = arith.constant dense<0.000000e+00> : vector<32x128xf32>
    %181 = tpu.matmul %179, %180, %cst_90 {dimension_numbers = #tpu.dot_dimension_numbers<[1], [0], [0], [1], [0, 0, 1, 1], [], []>} : vector<32x128xf32>, vector<128x128xf32>, vector<32x128xf32> -> vector<32x128xf32>
    %182 = arith.addf %178, %181 : vector<32x128xf32>
    %183 = math.tanh %182 : vector<32x128xf32>
    %184 = arith.mulf %177, %162 : vector<32x128xf32>
    %cst_91 = arith.constant 1.000000e+00 : f32
    %185 = vector.broadcast %cst_91 : f32 to vector<32x128xf32>
    %186 = arith.subf %185, %177 : vector<32x128xf32>
    %187 = arith.mulf %186, %183 : vector<32x128xf32>
    %188 = arith.addf %184, %187 : vector<32x128xf32>
    %c192_92 = arith.constant 192 : index
    %c0_93 = arith.constant 0 : index
    %189 = vector.load %arg8[%c192_92, %c0_93] : memref<256x128xf32, #tpu.memory_space<vmem>>, vector<32x128xf32>
    tpu.vector_store %arg8[%c192_92, %c0_93], %188 {strides = array<i32>} : memref<256x128xf32, #tpu.memory_space<vmem>>, vector<32x128xf32>,
    %c112 = arith.constant 112 : index
    %c0_94 = arith.constant 0 : index
    %190 = vector.load %arg9[%c112, %c0_94] : memref<256x384xf32, #tpu.memory_space<vmem>>, vector<16x384xf32>
    %c240 = arith.constant 240 : index
    %c0_95 = arith.constant 0 : index
    %191 = vector.load %arg9[%c240, %c0_95] : memref<256x384xf32, #tpu.memory_space<vmem>>, vector<16x384xf32>
    %192 = tpu.concatenate %190, %191 in 0 : vector<16x384xf32>, vector<16x384xf32> -> vector<32x384xf32>
    %c0_96 = arith.constant 0 : index
    %c0_97 = arith.constant 0 : index
    %193 = vector.load %arg4[%c0_96, %c0_97] : memref<128x256xf32, #tpu.memory_space<vmem>>, vector<128x256xf32>
    %cst_98 = arith.constant dense<0.000000e+00> : vector<32x256xf32>
    %194 = tpu.matmul %188, %193, %cst_98 {dimension_numbers = #tpu.dot_dimension_numbers<[1], [0], [0], [1], [0, 0, 1, 1], [], []>} : vector<32x128xf32>, vector<128x256xf32>, vector<32x256xf32> -> vector<32x256xf32>
    %195 = vector.extract_strided_slice %192 {offsets = [0, 0], sizes = [32, 256], strides = [1, 1]} : vector<32x384xf32> to vector<32x256xf32>
    %196 = arith.addf %195, %194 : vector<32x256xf32>
    %197 = arith.negf %196 : vector<32x256xf32>
    %198 = math.exp %197 : vector<32x256xf32>
    %cst_99 = arith.constant 1.000000e+00 : f32
    %199 = vector.broadcast %cst_99 : f32 to vector<32x256xf32>
    %200 = arith.addf %199, %198 : vector<32x256xf32>
    %201 = arith.divf %199, %200 : vector<32x256xf32>
    %202 = vector.extract_strided_slice %201 {offsets = [0, 0], sizes = [32, 128], strides = [1, 1]} : vector<32x256xf32> to vector<32x128xf32>
    %203 = vector.extract_strided_slice %201 {offsets = [0, 128], sizes = [32, 128], strides = [1, 1]} : vector<32x256xf32> to vector<32x128xf32>
    %204 = vector.extract_strided_slice %192 {offsets = [0, 256], sizes = [32, 128], strides = [1, 1]} : vector<32x384xf32> to vector<32x128xf32>
    %205 = arith.mulf %202, %188 : vector<32x128xf32>
    %c0_100 = arith.constant 0 : index
    %c0_101 = arith.constant 0 : index
    %206 = vector.load %arg5[%c0_100, %c0_101] : memref<128x128xf32, #tpu.memory_space<vmem>>, vector<128x128xf32>
    %cst_102 = arith.constant dense<0.000000e+00> : vector<32x128xf32>
    %207 = tpu.matmul %205, %206, %cst_102 {dimension_numbers = #tpu.dot_dimension_numbers<[1], [0], [0], [1], [0, 0, 1, 1], [], []>} : vector<32x128xf32>, vector<128x128xf32>, vector<32x128xf32> -> vector<32x128xf32>
    %208 = arith.addf %204, %207 : vector<32x128xf32>
    %209 = math.tanh %208 : vector<32x128xf32>
    %210 = arith.mulf %203, %188 : vector<32x128xf32>
    %cst_103 = arith.constant 1.000000e+00 : f32
    %211 = vector.broadcast %cst_103 : f32 to vector<32x128xf32>
    %212 = arith.subf %211, %203 : vector<32x128xf32>
    %213 = arith.mulf %212, %209 : vector<32x128xf32>
    %214 = arith.addf %210, %213 : vector<32x128xf32>
    %c224_104 = arith.constant 224 : index
    %c0_105 = arith.constant 0 : index
    %215 = vector.load %arg8[%c224_104, %c0_105] : memref<256x128xf32, #tpu.memory_space<vmem>>, vector<32x128xf32>
    tpu.vector_store %arg8[%c224_104, %c0_105], %214 {strides = array<i32>} : memref<256x128xf32, #tpu.memory_space<vmem>>, vector<32x128xf32>,
    %c0_106 = arith.constant 0 : index
    %c0_107 = arith.constant 0 : index
    %216 = vector.load %arg8[%c0_106, %c0_107] : memref<256x128xf32, #tpu.memory_space<vmem>>, vector<256x128xf32>
    %c0_108 = arith.constant 0 : index
    %c0_109 = arith.constant 0 : index
    %217 = vector.load %arg6[%c0_108, %c0_109] : memref<128x128xf32, #tpu.memory_space<vmem>>, vector<128x128xf32>
    %cst_110 = arith.constant dense<0.000000e+00> : vector<256x128xf32>
    %218 = tpu.matmul %216, %217, %cst_110 {dimension_numbers = #tpu.dot_dimension_numbers<[1], [0], [0], [1], [0, 0, 1, 1], [], []>} : vector<256x128xf32>, vector<128x128xf32>, vector<256x128xf32> -> vector<256x128xf32>
    %c0_111 = arith.constant 0 : index
    %c0_112 = arith.constant 0 : index
    %219 = vector.load %arg7[%c0_111, %c0_112] : memref<1x128xf32, #tpu.memory_space<vmem>>, vector<1x128xf32>
    %220 = vector.broadcast %219 : vector<1x128xf32> to vector<256x128xf32>
    %221 = arith.addf %218, %220 : vector<256x128xf32>
    %222 = arith.negf %221 : vector<256x128xf32>
    %223 = math.exp %222 : vector<256x128xf32>
    %cst_113 = arith.constant 1.000000e+00 : f32
    %224 = vector.broadcast %cst_113 : f32 to vector<256x128xf32>
    %225 = arith.addf %224, %223 : vector<256x128xf32>
    %226 = arith.divf %224, %225 : vector<256x128xf32>
    %c0_114 = arith.constant 0 : index
    %c0_115 = arith.constant 0 : index
    %227 = vector.load %arg8[%c0_114, %c0_115] : memref<256x128xf32, #tpu.memory_space<vmem>>, vector<256x128xf32>
    tpu.vector_store %arg8[%c0_114, %c0_115], %226 {strides = array<i32>} : memref<256x128xf32, #tpu.memory_space<vmem>>, vector<256x128xf32>,
    return
  }
}

</mosaic_0001>

<llo_original>
// kernel: tpu_custom_call.1
$region0: #{tpu_custom_call.1}
  #allocation0 [shape = 'u32[]', space=smem, size = 0x4, offset = 0x4, fixed_abs, tag = 'smem constant byte address 0x4 - core index']
  #allocation1 [shape = 'u32[144,128]{1,0:T(1,128)}', space=vmem, size = 0x12000, scoped, tag = 'internal scratch']
  #allocation2 [shape = 'f32[256,384]{1,0:T(8,128)}', space=vmem, size = 0x60000, scoped, tag = 'scratch operand']
  %s0 = inlined_call_operand.vmem [shape: f32[256,32], index: 0, kind: input, shape index: {}]
  %s1 = inlined_call_operand.vmem [shape: f32[32,128], index: 1, kind: input, shape index: {}]
  %s2 = inlined_call_operand.hbm [shape: f32[32,384], index: 2, kind: input, shape index: {}]
  %s3 = inlined_call_operand.vmem [shape: f32[1,384], index: 3, kind: input, shape index: {}]
  %s4 = inlined_call_operand.vmem [shape: f32[128,256], index: 4, kind: input, shape index: {}]
  %s5 = inlined_call_operand.hbm [shape: f32[128,128], index: 5, kind: input, shape index: {}]
  %s6 = inlined_call_operand.hbm [shape: f32[128,128], index: 6, kind: input, shape index: {}]
  %s7 = inlined_call_operand.vmem [shape: f32[1,128], index: 7, kind: input, shape index: {}]
  %s8 = inlined_call_operand.hbm [shape: f32[256,128], index: 8, kind: output, shape index: {}]
  %s9 = sld [smem:[#allocation0]]
  $region54: #{tpu_custom_call.1} parent=0
    _
  %s11 = ssub.s32 1, %s9
  %s12 = scalar_select 0, %s11, %s9
  $region1: #{tpu_custom_call.1} parent=0
    #allocation3 [shape = 'u8[49152]{0}', space=vmem, size = 0xc000, scoped, tag = 'input window, operand 2, single buffered']
    #allocation4 [shape = 's32[1]{0}', space=sflag, size = 0x4, scoped, tag = 'scoped memory for tpu_custom_call.1']
    #allocation5 [shape = 's32[1]{0}', space=sflag, size = 0x4, scoped, tag = 'scoped memory for tpu_custom_call.1']
    #allocation6 [shape = 'u8[65536]{0}', space=vmem, size = 0x10000, scoped, tag = 'input window, operand 5, single buffered']
    #allocation7 [shape = 's32[1]{0}', space=sflag, size = 0x4, scoped, tag = 'scoped memory for tpu_custom_call.1']
    #allocation8 [shape = 'u8[65536]{0}', space=vmem, size = 0x10000, scoped, tag = 'input window, operand 6, single buffered']
    #allocation9 [shape = 'u8[131072]{0}', space=vmem, size = 0x20000, scoped, tag = 'output window, operand 0, single buffered']
    %13 = vsyncpa [#allocation4], 0
    %14 = vsyncpa [#allocation7], 0
    %15 = vsyncpa [#allocation5], 0
    // Predicated region
    $region2: #{tpu_custom_call.1} parent=1 // pred_check
      _
    $region3: #{tpu_custom_call.1} parent=1 // pred_check_branch
      %17 = sbr.rel (0) target = $region5
    $region4: #{tpu_custom_call.1} parent=1 // pred_region
      _
    $region5: #{tpu_custom_call.1} parent=1 // pred_fallthru
      _
    // Predicated region
    $region6: #{tpu_custom_call.1} parent=1 // pred_check
      _
    $region7: #{tpu_custom_call.1} parent=1 // pred_check_branch
      %19 = sbr.rel (0) target = $region9
    $region8: #{tpu_custom_call.1} parent=1 // pred_region
      _
    $region9: #{tpu_custom_call.1} parent=1 // pred_fallthru
      _
    // Predicated region
    $region10: #{tpu_custom_call.1} parent=1 // pred_check
      _
    $region11: #{tpu_custom_call.1} parent=1 // pred_check_branch
      %21 = sbr.rel (0) target = $region13
    $region12: #{tpu_custom_call.1} parent=1 // pred_region
      %s23 = ssub.s32 1536, 1536
      %24 = vsyncadd [#allocation4], %s23
      %s25 = sshll.u32 [#allocation3], 4
      %s26 = int_to_ptr.vmem [resolvable:$true] %s25
      %31 = dma.hbm_to_vmem [thread:$0]  %s2, 1536, %s26, [#allocation4], 384, 384, 24
    $region13: #{tpu_custom_call.1} parent=1 // pred_fallthru
      _
    // Predicated region
    $region14: #{tpu_custom_call.1} parent=1 // pred_check
      _
    $region15: #{tpu_custom_call.1} parent=1 // pred_check_branch
      %33 = sbr.rel (0) target = $region17
    $region16: #{tpu_custom_call.1} parent=1 // pred_region
      _
    $region17: #{tpu_custom_call.1} parent=1 // pred_fallthru
      _
    // Predicated region
    $region18: #{tpu_custom_call.1} parent=1 // pred_check
      _
    $region19: #{tpu_custom_call.1} parent=1 // pred_check_branch
      %35 = sbr.rel (0) target = $region21
    $region20: #{tpu_custom_call.1} parent=1 // pred_region
      _
    $region21: #{tpu_custom_call.1} parent=1 // pred_fallthru
      _
    // Predicated region
    $region22: #{tpu_custom_call.1} parent=1 // pred_check
      _
    $region23: #{tpu_custom_call.1} parent=1 // pred_check_branch
      %37 = sbr.rel (0) target = $region25
    $region24: #{tpu_custom_call.1} parent=1 // pred_region
      %s39 = ssub.s32 2048, 2048
      %40 = vsyncadd [#allocation7], %s39
      %s41 = sshll.u32 [#allocation6], 4
      %s42 = int_to_ptr.vmem [resolvable:$true] %s41
      %47 = dma.hbm_to_vmem [thread:$0]  %s5, 2048, %s42, [#allocation7], 128, 128, 8
    $region25: #{tpu_custom_call.1} parent=1 // pred_fallthru
      _
    // Predicated region
    $region26: #{tpu_custom_call.1} parent=1 // pred_check
      _
    $region27: #{tpu_custom_call.1} parent=1 // pred_check_branch
      %49 = sbr.rel (0) target = $region29
    $region28: #{tpu_custom_call.1} parent=1 // pred_region
      %s51 = ssub.s32 2048, 2048
      %52 = vsyncadd [#allocation7], %s51
      %s53 = sshll.u32 [#allocation8], 4
      %s54 = int_to_ptr.vmem [resolvable:$true] %s53
      %59 = dma.hbm_to_vmem [thread:$0]  %s6, 2048, %s54, [#allocation7], 128, 128, 8
    $region29: #{tpu_custom_call.1} parent=1 // pred_fallthru
      _
    // Predicated region
    $region30: #{tpu_custom_call.1} parent=1 // pred_check
      _
    $region31: #{tpu_custom_call.1} parent=1 // pred_check_branch
      %61 = sbr.rel (0) target = $region33
    $region32: #{tpu_custom_call.1} parent=1 // pred_region
      _
    $region33: #{tpu_custom_call.1} parent=1 // pred_fallthru
      _
    // Predicated region
    $region34: #{tpu_custom_call.1} parent=1 // pred_check
      _
    $region35: #{tpu_custom_call.1} parent=1 // pred_check_branch
      %63 = sbr.rel (0) target = $region37
    $region36: #{tpu_custom_call.1} parent=1 // pred_region
      %64 = dma.done [#allocation4], 1536
    $region37: #{tpu_custom_call.1} parent=1 // pred_fallthru
      _
    // Predicated region
    $region38: #{tpu_custom_call.1} parent=1 // pred_check
      _
    $region39: #{tpu_custom_call.1} parent=1 // pred_check_branch
      %66 = sbr.rel (0) target = $region41
    $region40: #{tpu_custom_call.1} parent=1 // pred_region
      %67 = dma.done [#allocation7], 2048
    $region41: #{tpu_custom_call.1} parent=1 // pred_fallthru
      _
    // Predicated region
    $region42: #{tpu_custom_call.1} parent=1 // pred_check
      _
    $region43: #{tpu_custom_call.1} parent=1 // pred_check_branch
      %69 = sbr.rel (0) target = $region45
    $region44: #{tpu_custom_call.1} parent=1 // pred_region
      %70 = dma.done [#allocation7], 2048
    $region45: #{tpu_custom_call.1} parent=1 // pred_fallthru
      _
    %v71 = vld [vmem:[%s0] sm:$0xff]
    %v72 = vld [vmem:[%s0 + $0x8] sm:$0xff]
    %v73 = vld [vmem:[%s0 + $0x10] sm:$0xff]
    %v74 = vld [vmem:[%s0 + $0x18] sm:$0xff]
    %v75 = vld [vmem:[%s0 + $0x20] sm:$0xff]
    %v76 = vld [vmem:[%s0 + $0x28] sm:$0xff]
    %v77 = vld [vmem:[%s0 + $0x30] sm:$0xff]
    %v78 = vld [vmem:[%s0 + $0x38] sm:$0xff]
    %v79 = vld [vmem:[%s0 + $0x40] sm:$0xff]
    %v80 = vld [vmem:[%s0 + $0x48] sm:$0xff]
    %v81 = vld [vmem:[%s0 + $0x50] sm:$0xff]
    %v82 = vld [vmem:[%s0 + $0x58] sm:$0xff]
    %v83 = vld [vmem:[%s0 + $0x60] sm:$0xff]
    %v84 = vld [vmem:[%s0 + $0x68] sm:$0xff]
    %v85 = vld [vmem:[%s0 + $0x70] sm:$0xff]
    %v86 = vld [vmem:[%s0 + $0x78] sm:$0xff]
    %v87 = vld [vmem:[%s0 + $0x80] sm:$0xff]
    %v88 = vld [vmem:[%s0 + $0x88] sm:$0xff]
    %v89 = vld [vmem:[%s0 + $0x90] sm:$0xff]
    %v90 = vld [vmem:[%s0 + $0x98] sm:$0xff]
    %v91 = vld [vmem:[%s0 + $0xa0] sm:$0xff]
    %v92 = vld [vmem:[%s0 + $0xa8] sm:$0xff]
    %v93 = vld [vmem:[%s0 + $0xb0] sm:$0xff]
    %v94 = vld [vmem:[%s0 + $0xb8] sm:$0xff]
    %v95 = vld [vmem:[%s0 + $0xc0] sm:$0xff]
    %v96 = vld [vmem:[%s0 + $0xc8] sm:$0xff]
    %v97 = vld [vmem:[%s0 + $0xd0] sm:$0xff]
    %v98 = vld [vmem:[%s0 + $0xd8] sm:$0xff]
    %v99 = vld [vmem:[%s0 + $0xe0] sm:$0xff]
    %v100 = vld [vmem:[%s0 + $0xe8] sm:$0xff]
    %v101 = vld [vmem:[%s0 + $0xf0] sm:$0xff]
    %v102 = vld [vmem:[%s0 + $0xf8] sm:$0xff]
    %v103 = vld [vmem:[#allocation3] sm:$0xff]
    %v104 = vld [vmem:[#allocation3 + $0x8] sm:$0xff]
    %v105 = vld [vmem:[#allocation3 + $0x10] sm:$0xff]
    %v106 = vld [vmem:[#allocation3 + $0x18] sm:$0xff]
    %v107 = vld [vmem:[#allocation3 + $0x20] sm:$0xff]
    %v108 = vld [vmem:[#allocation3 + $0x28] sm:$0xff]
    %v109 = vld [vmem:[#allocation3 + $0x30] sm:$0xff]
    %v110 = vld [vmem:[#allocation3 + $0x38] sm:$0xff]
    %v111 = vld [vmem:[#allocation3 + $0x40] sm:$0xff]
    %v112 = vld [vmem:[#allocation3 + $0x48] sm:$0xff]
    %v113 = vld [vmem:[#allocation3 + $0x50] sm:$0xff]
    %v114 = vld [vmem:[#allocation3 + $0x58] sm:$0xff]
    %v115 = vld [vmem:[%s3] sm:$0x7]
    %v117 = vlaneseq
    %v118 = vshrl.u32 %v117, 7
    %v119 = vsub.s32 0, %v118
    %v120 = vrot.slane %v115, %v119
    %v121 = vlaneseq
    %v122 = vshrl.u32 %v121, 7
    %v123 = vsub.s32 1, %v122
    %v124 = vrot.slane %v115, %v123
    %v125 = vlaneseq
    %v126 = vshrl.u32 %v125, 7
    %v127 = vsub.s32 2, %v126
    %v128 = vrot.slane %v115, %v127
    %vm132 = vcmask 261120
    %v134 = vsel %vm132, %v71, 0
    %v137 = vsel %vm132, %v72, 0
    %v140 = vsel %vm132, %v73, 0
    %v143 = vsel %vm132, %v74, 0
    %v146 = vsel %vm132, %v75, 0
    %v149 = vsel %vm132, %v76, 0
    %v152 = vsel %vm132, %v77, 0
    %v155 = vsel %vm132, %v78, 0
    %v158 = vsel %vm132, %v79, 0
    %v161 = vsel %vm132, %v80, 0
    %v164 = vsel %vm132, %v81, 0
    %v167 = vsel %vm132, %v82, 0
    %v170 = vsel %vm132, %v83, 0
    %v173 = vsel %vm132, %v84, 0
    %v176 = vsel %vm132, %v85, 0
    %v179 = vsel %vm132, %v86, 0
    %v182 = vsel %vm132, %v87, 0
    %v185 = vsel %vm132, %v88, 0
    %v188 = vsel %vm132, %v89, 0
    %v191 = vsel %vm132, %v90, 0
    %v194 = vsel %vm132, %v91, 0
    %v197 = vsel %vm132, %v92, 0
    %v200 = vsel %vm132, %v93, 0
    %v203 = vsel %vm132, %v94, 0
    %v206 = vsel %vm132, %v95, 0
    %v209 = vsel %vm132, %v96, 0
    %v212 = vsel %vm132, %v97, 0
    %v215 = vsel %vm132, %v98, 0
    %v218 = vsel %vm132, %v99, 0
    %v221 = vsel %vm132, %v100, 0
    %v224 = vsel %vm132, %v101, 0
    %v227 = vsel %vm132, %v102, 0
    %229 = vmatprep.subr.mxu0 %v104
    %230 = vmatpush1.msra.mxu0 %v103
    %231 = vmatprep.subr.mxu0 %v107
    %232 = vmatpush1.msra.mxu0 %v106
    %233 = vmatprep.subr.mxu0 %v110
    %234 = vmatpush1.msra.mxu0 %v109
    %235 = vmatprep.subr.mxu0 %v113
    %236 = vmatpush1.msra.mxu0 %v112
    %237 = vmatprep.subr.mxu0 0.0
    %238 = vmatpush1.msra.mxu0 0.0
    %239 = vmatprep.subr.mxu0 0.0
    %240 = vmatpush1.msra.mxu0 0.0
    %241 = vmatprep.subr.mxu0 0.0
    %242 = vmatpush1.msra.mxu0 0.0
    %243 = vmatprep.subr.mxu0 0.0
    %244 = vmatpush1.msra.mxu0 0.0
    %245 = vmatprep.subr.mxu0 0.0
    %246 = vmatpush1.msra.mxu0 0.0
    %247 = vmatprep.subr.mxu0 0.0
    %248 = vmatpush1.msra.mxu0 0.0
    %249 = vmatprep.subr.mxu0 0.0
    %250 = vmatpush1.msra.mxu0 0.0
    %251 = vmatprep.subr.mxu0 0.0
    %252 = vmatpush1.msra.mxu0 0.0
    %253 = vmatprep.subr.mxu0 0.0
    %254 = vmatpush1.msra.mxu0 0.0
    %255 = vmatprep.subr.mxu0 0.0
    %256 = vmatpush1.msra.mxu0 0.0
    %257 = vmatprep.subr.mxu0 0.0
    %258 = vmatpush1.msra.mxu0 0.0
    %259 = vmatprep.subr.mxu0 0.0
    %260 = vmatpush1.msra.mxu0 0.0
    %261 = vmatprep.subr.mxu0 0.0
    %262 = vmatpush1.msra.mxu0 0.0
    %263 = vmatprep.subr.mxu0 0.0
    %264 = vmatpush1.msra.mxu0 0.0
    %265 = vmatprep.subr.mxu0 0.0
    %266 = vmatpush1.msra.mxu0 0.0
    %267 = vmatprep.subr.mxu0 0.0
    %268 = vmatpush1.msra.mxu0 0.0
    %269 = vmatprep.subr.mxu0 0.0
    %270 = vmatpush1.msra.mxu0 0.0
    %271 = vmatprep.subr.mxu0 0.0
    %272 = vmatpush1.msra.mxu0 0.0
    %273 = vmatprep.subr.mxu0 0.0
    %274 = vmatpush1.msra.mxu0 0.0
    %275 = vmatprep.subr.mxu0 0.0
    %276 = vmatpush1.msra.mxu0 0.0
    %277 = vmatprep.subr.mxu0 0.0
    %278 = vmatpush1.msra.mxu0 0.0
    %279 = vmatprep.subr.mxu0 0.0
    %280 = vmatpush1.msra.mxu0 0.0
    %281 = vmatprep.subr.mxu0 0.0
    %282 = vmatpush1.msra.mxu0 0.0
    %283 = vmatprep.subr.mxu0 0.0
    %284 = vmatpush1.msra.mxu0 0.0
    %285 = vmatprep.subr.mxu0 0.0
    %286 = vmatpush1.msra.mxu0 0.0
    %287 = vmatprep.subr.mxu0 0.0
    %288 = vmatpush1.msra.mxu0 0.0
    %289 = vmatprep.subr.mxu0 0.0
    %290 = vmatpush1.msra.mxu0 0.0
    %291 = vmatprep.subr.mxu0 0.0
    %292 = vmatpush1.msra.mxu0 0.0
    %293 = vmatprep.mubr.f32.mxu0 0.0
    %294 = vmatmul.mubr.f32.gmra.mrb[0].mxu0 %v134
    %v295 = vpop.f32.mrb[0].mxu0
    %v296 = vadd.f32 %v120, %v295
    %v297 = vpop.f32.mrb[0].mxu0
    %v298 = vadd.f32 %v124, %v297
    %299 = vmatprep.mubr.f32.mxu0 0.0
    %300 = vmatmul.mubr.f32.gmra.mrb[0].mxu0 %v137
    %v301 = vpop.f32.mrb[0].mxu0
    %v302 = vadd.f32 %v120, %v301
    %v303 = vpop.f32.mrb[0].mxu0
    %v304 = vadd.f32 %v124, %v303
    %305 = vmatprep.mubr.f32.mxu0 0.0
    %306 = vmatmul.mubr.f32.gmra.mrb[0].mxu0 %v140
    %v307 = vpop.f32.mrb[0].mxu0
    %v308 = vadd.f32 %v120, %v307
    %v309 = vpop.f32.mrb[0].mxu0
    %v310 = vadd.f32 %v124, %v309
    %311 = vmatprep.mubr.f32.mxu0 0.0
    %312 = vmatmul.mubr.f32.gmra.mrb[0].mxu0 %v143
    %v313 = vpop.f32.mrb[0].mxu0
    %v314 = vadd.f32 %v120, %v313
    %v315 = vpop.f32.mrb[0].mxu0
    %v316 = vadd.f32 %v124, %v315
    %317 = vmatprep.mubr.f32.mxu0 0.0
    %318 = vmatmul.mubr.f32.gmra.mrb[0].mxu0 %v146
    %v319 = vpop.f32.mrb[0].mxu0
    %v320 = vadd.f32 %v120, %v319
    %v321 = vpop.f32.mrb[0].mxu0
    %v322 = vadd.f32 %v124, %v321
    %323 = vmatprep.mubr.f32.mxu0 0.0
    %324 = vmatmul.mubr.f32.gmra.mrb[0].mxu0 %v149
    %v325 = vpop.f32.mrb[0].mxu0
    %v326 = vadd.f32 %v120, %v325
    %v327 = vpop.f32.mrb[0].mxu0
    %v328 = vadd.f32 %v124, %v327
    %329 = vmatprep.mubr.f32.mxu0 0.0
    %330 = vmatmul.mubr.f32.gmra.mrb[0].mxu0 %v152
    %v331 = vpop.f32.mrb[0].mxu0
    %v332 = vadd.f32 %v120, %v331
    %v333 = vpop.f32.mrb[0].mxu0
    %v334 = vadd.f32 %v124, %v333
    %335 = vmatprep.mubr.f32.mxu0 0.0
    %336 = vmatmul.mubr.f32.gmra.mrb[0].mxu0 %v155
    %v337 = vpop.f32.mrb[0].mxu0
    %v338 = vadd.f32 %v120, %v337
    %v339 = vpop.f32.mrb[0].mxu0
    %v340 = vadd.f32 %v124, %v339
    %341 = vmatprep.mubr.f32.mxu0 0.0
    %342 = vmatmul.mubr.f32.gmra.mrb[0].mxu0 %v158
    %v343 = vpop.f32.mrb[0].mxu0
    %v344 = vadd.f32 %v120, %v343
    %v345 = vpop.f32.mrb[0].mxu0
    %v346 = vadd.f32 %v124, %v345
    %347 = vmatprep.mubr.f32.mxu0 0.0
    %348 = vmatmul.mubr.f32.gmra.mrb[0].mxu0 %v161
    %v349 = vpop.f32.mrb[0].mxu0
    %v350 = vadd.f32 %v120, %v349
    %v351 = vpop.f32.mrb[0].mxu0
    %v352 = vadd.f32 %v124, %v351
    %353 = vmatprep.mubr.f32.mxu0 0.0
    %354 = vmatmul.mubr.f32.gmra.mrb[0].mxu0 %v164
    %v355 = vpop.f32.mrb[0].mxu0
    %v356 = vadd.f32 %v120, %v355
    %v357 = vpop.f32.mrb[0].mxu0
    %v358 = vadd.f32 %v124, %v357
    %359 = vmatprep.mubr.f32.mxu0 0.0
    %360 = vmatmul.mubr.f32.gmra.mrb[0].mxu0 %v167
    %v361 = vpop.f32.mrb[0].mxu0
    %v362 = vadd.f32 %v120, %v361
    %v363 = vpop.f32.mrb[0].mxu0
    %v364 = vadd.f32 %v124, %v363
    %365 = vmatprep.mubr.f32.mxu0 0.0
    %366 = vmatmul.mubr.f32.gmra.mrb[0].mxu0 %v170
    %v367 = vpop.f32.mrb[0].mxu0
    %v368 = vadd.f32 %v120, %v367
    %v369 = vpop.f32.mrb[0].mxu0
    %v370 = vadd.f32 %v124, %v369
    %371 = vmatprep.mubr.f32.mxu0 0.0
    %372 = vmatmul.mubr.f32.gmra.mrb[0].mxu0 %v173
    %v373 = vpop.f32.mrb[0].mxu0
    %v374 = vadd.f32 %v120, %v373
    %v375 = vpop.f32.mrb[0].mxu0
    %v376 = vadd.f32 %v124, %v375
    %377 = vmatprep.mubr.f32.mxu0 0.0
    %378 = vmatmul.mubr.f32.gmra.mrb[0].mxu0 %v176
    %v379 = vpop.f32.mrb[0].mxu0
    %v380 = vadd.f32 %v120, %v379
    %v381 = vpop.f32.mrb[0].mxu0
    %v382 = vadd.f32 %v124, %v381
    %383 = vmatprep.mubr.f32.mxu0 0.0
    %384 = vmatmul.mubr.f32.gmra.mrb[0].mxu0 %v179
    %v385 = vpop.f32.mrb[0].mxu0
    %v386 = vadd.f32 %v120, %v385
    %v387 = vpop.f32.mrb[0].mxu0
    %v388 = vadd.f32 %v124, %v387
    %389 = vmatprep.mubr.f32.mxu0 0.0
    %390 = vmatmul.mubr.f32.gmra.mrb[0].mxu0 %v182
    %v391 = vpop.f32.mrb[0].mxu0
    %v392 = vadd.f32 %v120, %v391
    %v393 = vpop.f32.mrb[0].mxu0
    %v394 = vadd.f32 %v124, %v393
    %395 = vmatprep.mubr.f32.mxu0 0.0
    %396 = vmatmul.mubr.f32.gmra.mrb[0].mxu0 %v185
    %v397 = vpop.f32.mrb[0].mxu0
    %v398 = vadd.f32 %v120, %v397
    %v399 = vpop.f32.mrb[0].mxu0
    %v400 = vadd.f32 %v124, %v399
    %401 = vmatprep.mubr.f32.mxu0 0.0
    %402 = vmatmul.mubr.f32.gmra.mrb[0].mxu0 %v188
    %v403 = vpop.f32.mrb[0].mxu0
    %v404 = vadd.f32 %v120, %v403
    %v405 = vpop.f32.mrb[0].mxu0
    %v406 = vadd.f32 %v124, %v405
    %407 = vmatprep.mubr.f32.mxu0 0.0
    %408 = vmatmul.mubr.f32.gmra.mrb[0].mxu0 %v191
    %v409 = vpop.f32.mrb[0].mxu0
    %v410 = vadd.f32 %v120, %v409
    %v411 = vpop.f32.mrb[0].mxu0
    %v412 = vadd.f32 %v124, %v411
    %413 = vmatprep.mubr.f32.mxu0 0.0
    %414 = vmatmul.mubr.f32.gmra.mrb[0].mxu0 %v194
    %v415 = vpop.f32.mrb[0].mxu0
    %v416 = vadd.f32 %v120, %v415
    %v417 = vpop.f32.mrb[0].mxu0
    %v418 = vadd.f32 %v124, %v417
    %419 = vmatprep.mubr.f32.mxu0 0.0
    %420 = vmatmul.mubr.f32.gmra.mrb[0].mxu0 %v197
    %v421 = vpop.f32.mrb[0].mxu0
    %v422 = vadd.f32 %v120, %v421
    %v423 = vpop.f32.mrb[0].mxu0
    %v424 = vadd.f32 %v124, %v423
    %425 = vmatprep.mubr.f32.mxu0 0.0
    %426 = vmatmul.mubr.f32.gmra.mrb[0].mxu0 %v200
    %v427 = vpop.f32.mrb[0].mxu0
    %v428 = vadd.f32 %v120, %v427
    %v429 = vpop.f32.mrb[0].mxu0
    %v430 = vadd.f32 %v124, %v429
    %431 = vmatprep.mubr.f32.mxu0 0.0
    %432 = vmatmul.mubr.f32.gmra.mrb[0].mxu0 %v203
    %v433 = vpop.f32.mrb[0].mxu0
    %v434 = vadd.f32 %v120, %v433
    %v435 = vpop.f32.mrb[0].mxu0
    %v436 = vadd.f32 %v124, %v435
    %437 = vmatprep.mubr.f32.mxu0 0.0
    %438 = vmatmul.mubr.f32.gmra.mrb[0].mxu0 %v206
    %v439 = vpop.f32.mrb[0].mxu0
    %v440 = vadd.f32 %v120, %v439
    %v441 = vpop.f32.mrb[0].mxu0
    %v442 = vadd.f32 %v124, %v441
    %443 = vmatprep.mubr.f32.mxu0 0.0
    %444 = vmatmul.mubr.f32.gmra.mrb[0].mxu0 %v209
    %v445 = vpop.f32.mrb[0].mxu0
    %v446 = vadd.f32 %v120, %v445
    %v447 = vpop.f32.mrb[0].mxu0
    %v448 = vadd.f32 %v124, %v447
    %449 = vmatprep.mubr.f32.mxu0 0.0
    %450 = vmatmul.mubr.f32.gmra.mrb[0].mxu0 %v212
    %v451 = vpop.f32.mrb[0].mxu0
    %v452 = vadd.f32 %v120, %v451
    %v453 = vpop.f32.mrb[0].mxu0
    %v454 = vadd.f32 %v124, %v453
    %455 = vmatprep.mubr.f32.mxu0 0.0
    %456 = vmatmul.mubr.f32.gmra.mrb[0].mxu0 %v215
    %v457 = vpop.f32.mrb[0].mxu0
    %v458 = vadd.f32 %v120, %v457
    %v459 = vpop.f32.mrb[0].mxu0
    %v460 = vadd.f32 %v124, %v459
    %461 = vmatprep.mubr.f32.mxu0 0.0
    %462 = vmatmul.mubr.f32.gmra.mrb[0].mxu0 %v218
    %v463 = vpop.f32.mrb[0].mxu0
    %v464 = vadd.f32 %v120, %v463
    %v465 = vpop.f32.mrb[0].mxu0
    %v466 = vadd.f32 %v124, %v465
    %467 = vmatprep.mubr.f32.mxu0 0.0
    %468 = vmatmul.mubr.f32.gmra.mrb[0].mxu0 %v221
    %v469 = vpop.f32.mrb[0].mxu0
    %v470 = vadd.f32 %v120, %v469
    %v471 = vpop.f32.mrb[0].mxu0
    %v472 = vadd.f32 %v124, %v471
    %473 = vmatprep.mubr.f32.mxu0 0.0
    %474 = vmatmul.mubr.f32.gmra.mrb[0].mxu0 %v224
    %v475 = vpop.f32.mrb[0].mxu0
    %v476 = vadd.f32 %v120, %v475
    %v477 = vpop.f32.mrb[0].mxu0
    %v478 = vadd.f32 %v124, %v477
    %479 = vmatprep.mubr.f32.mxu0 0.0
    %480 = vmatmul.mubr.f32.gmra.mrb[0].mxu0 %v227
    %v481 = vpop.f32.mrb[0].mxu0
    %v482 = vadd.f32 %v120, %v481
    %v483 = vpop.f32.mrb[0].mxu0
    %v484 = vadd.f32 %v124, %v483
    %485 = vdwg.mxu0
    %486 = vmatprep.subr.mxu0 0.0
    %487 = vmatpush1.msra.mxu0 %v105
    %488 = vmatprep.subr.mxu0 0.0
    %489 = vmatpush1.msra.mxu0 %v108
    %490 = vmatprep.subr.mxu0 0.0
    %491 = vmatpush1.msra.mxu0 %v111
    %492 = vmatprep.subr.mxu0 0.0
    %493 = vmatpush1.msra.mxu0 %v114
    %494 = vmatprep.subr.mxu0 0.0
    %495 = vmatpush1.msra.mxu0 0.0
    %496 = vmatprep.subr.mxu0 0.0
    %497 = vmatpush1.msra.mxu0 0.0
    %498 = vmatprep.subr.mxu0 0.0
    %499 = vmatpush1.msra.mxu0 0.0
    %500 = vmatprep.subr.mxu0 0.0
    %501 = vmatpush1.msra.mxu0 0.0
    %502 = vmatprep.subr.mxu0 0.0
    %503 = vmatpush1.msra.mxu0 0.0
    %504 = vmatprep.subr.mxu0 0.0
    %505 = vmatpush1.msra.mxu0 0.0
    %506 = vmatprep.subr.mxu0 0.0
    %507 = vmatpush1.msra.mxu0 0.0
    %508 = vmatprep.subr.mxu0 0.0
    %509 = vmatpush1.msra.mxu0 0.0
    %510 = vmatprep.subr.mxu0 0.0
    %511 = vmatpush1.msra.mxu0 0.0
    %512 = vmatprep.subr.mxu0 0.0
    %513 = vmatpush1.msra.mxu0 0.0
    %514 = vmatprep.subr.mxu0 0.0
    %515 = vmatpush1.msra.mxu0 0.0
    %516 = vmatprep.subr.mxu0 0.0
    %517 = vmatpush1.msra.mxu0 0.0
    %518 = vmatprep.subr.mxu0 0.0
    %519 = vmatpush1.msra.mxu0 0.0
    %520 = vmatprep.subr.mxu0 0.0
    %521 = vmatpush1.msra.mxu0 0.0
    %522 = vmatprep.subr.mxu0 0.0
    %523 = vmatpush1.msra.mxu0 0.0
    %524 = vmatprep.subr.mxu0 0.0
    %525 = vmatpush1.msra.mxu0 0.0
    %526 = vmatprep.subr.mxu0 0.0
    %527 = vmatpush1.msra.mxu0 0.0
    %528 = vmatprep.subr.mxu0 0.0
    %529 = vmatpush1.msra.mxu0 0.0
    %530 = vmatprep.subr.mxu0 0.0
    %531 = vmatpush1.msra.mxu0 0.0
    %532 = vmatprep.subr.mxu0 0.0
    %533 = vmatpush1.msra.mxu0 0.0
    %534 = vmatprep.subr.mxu0 0.0
    %535 = vmatpush1.msra.mxu0 0.0
    %536 = vmatprep.subr.mxu0 0.0
    %537 = vmatpush1.msra.mxu0 0.0
    %538 = vmatprep.subr.mxu0 0.0
    %539 = vmatpush1.msra.mxu0 0.0
    %540 = vmatprep.subr.mxu0 0.0
    %541 = vmatpush1.msra.mxu0 0.0
    %542 = vmatprep.subr.mxu0 0.0
    %543 = vmatpush1.msra.mxu0 0.0
    %544 = vmatprep.subr.mxu0 0.0
    %545 = vmatpush1.msra.mxu0 0.0
    %546 = vmatprep.subr.mxu0 0.0
    %547 = vmatpush1.msra.mxu0 0.0
    %548 = vmatprep.subr.mxu0 0.0
    %549 = vmatpush1.msra.mxu0 0.0
    %550 = vmatprep.mubr.f32.mxu0 0.0
    %551 = vmatmul.mubr.f32.gmra.mrb[0].mxu0 %v134
    %v552 = vpop.f32.mrb[0].mxu0
    %v553 = vadd.f32 %v128, %v552
    %v554 = vpop.f32.mrb[0].mxu0
    %555 = vmatprep.mubr.f32.mxu0 0.0
    %556 = vmatmul.mubr.f32.gmra.mrb[0].mxu0 %v137
    %v557 = vpop.f32.mrb[0].mxu0
    %v558 = vadd.f32 %v128, %v557
    %v559 = vpop.f32.mrb[0].mxu0
    %560 = vmatprep.mubr.f32.mxu0 0.0
    %561 = vmatmul.mubr.f32.gmra.mrb[0].mxu0 %v140
    %v562 = vpop.f32.mrb[0].mxu0
    %v563 = vadd.f32 %v128, %v562
    %v564 = vpop.f32.mrb[0].mxu0
    %565 = vmatprep.mubr.f32.mxu0 0.0
    %566 = vmatmul.mubr.f32.gmra.mrb[0].mxu0 %v143
    %v567 = vpop.f32.mrb[0].mxu0
    %v568 = vadd.f32 %v128, %v567
    %v569 = vpop.f32.mrb[0].mxu0
    %570 = vmatprep.mubr.f32.mxu0 0.0
    %571 = vmatmul.mubr.f32.gmra.mrb[0].mxu0 %v146
    %v572 = vpop.f32.mrb[0].mxu0
    %v573 = vadd.f32 %v128, %v572
    %v574 = vpop.f32.mrb[0].mxu0
    %575 = vmatprep.mubr.f32.mxu0 0.0
    %576 = vmatmul.mubr.f32.gmra.mrb[0].mxu0 %v149
    %v577 = vpop.f32.mrb[0].mxu0
    %v578 = vadd.f32 %v128, %v577
    %v579 = vpop.f32.mrb[0].mxu0
    %580 = vmatprep.mubr.f32.mxu0 0.0
    %581 = vmatmul.mubr.f32.gmra.mrb[0].mxu0 %v152
    %v582 = vpop.f32.mrb[0].mxu0
    %v583 = vadd.f32 %v128, %v582
    %v584 = vpop.f32.mrb[0].mxu0
    %585 = vmatprep.mubr.f32.mxu0 0.0
    %586 = vmatmul.mubr.f32.gmra.mrb[0].mxu0 %v155
    %v587 = vpop.f32.mrb[0].mxu0
    %v588 = vadd.f32 %v128, %v587
    %v589 = vpop.f32.mrb[0].mxu0
    %590 = vmatprep.mubr.f32.mxu0 0.0
    %591 = vmatmul.mubr.f32.gmra.mrb[0].mxu0 %v158
    %v592 = vpop.f32.mrb[0].mxu0
    %v593 = vadd.f32 %v128, %v592
    %v594 = vpop.f32.mrb[0].mxu0
    %595 = vmatprep.mubr.f32.mxu0 0.0
    %596 = vmatmul.mubr.f32.gmra.mrb[0].mxu0 %v161
    %v597 = vpop.f32.mrb[0].mxu0
    %v598 = vadd.f32 %v128, %v597
    %v599 = vpop.f32.mrb[0].mxu0
    %600 = vmatprep.mubr.f32.mxu0 0.0
    %601 = vmatmul.mubr.f32.gmra.mrb[0].mxu0 %v164
    %v602 = vpop.f32.mrb[0].mxu0
    %v603 = vadd.f32 %v128, %v602
    %v604 = vpop.f32.mrb[0].mxu0
    %605 = vmatprep.mubr.f32.mxu0 0.0
    %606 = vmatmul.mubr.f32.gmra.mrb[0].mxu0 %v167
    %v607 = vpop.f32.mrb[0].mxu0
    %v608 = vadd.f32 %v128, %v607
    %v609 = vpop.f32.mrb[0].mxu0
    %610 = vmatprep.mubr.f32.mxu0 0.0
    %611 = vmatmul.mubr.f32.gmra.mrb[0].mxu0 %v170
    %v612 = vpop.f32.mrb[0].mxu0
    %v613 = vadd.f32 %v128, %v612
    %v614 = vpop.f32.mrb[0].mxu0
    %615 = vmatprep.mubr.f32.mxu0 0.0
    %616 = vmatmul.mubr.f32.gmra.mrb[0].mxu0 %v173
    %v617 = vpop.f32.mrb[0].mxu0
    %v618 = vadd.f32 %v128, %v617
    %v619 = vpop.f32.mrb[0].mxu0
    %620 = vmatprep.mubr.f32.mxu0 0.0
    %621 = vmatmul.mubr.f32.gmra.mrb[0].mxu0 %v176
    %v622 = vpop.f32.mrb[0].mxu0
    %v623 = vadd.f32 %v128, %v622
    %v624 = vpop.f32.mrb[0].mxu0
    %625 = vmatprep.mubr.f32.mxu0 0.0
    %626 = vmatmul.mubr.f32.gmra.mrb[0].mxu0 %v179
    %v627 = vpop.f32.mrb[0].mxu0
    %v628 = vadd.f32 %v128, %v627
    %v629 = vpop.f32.mrb[0].mxu0
    %630 = vmatprep.mubr.f32.mxu0 0.0
    %631 = vmatmul.mubr.f32.gmra.mrb[0].mxu0 %v182
    %v632 = vpop.f32.mrb[0].mxu0
    %v633 = vadd.f32 %v128, %v632
    %v634 = vpop.f32.mrb[0].mxu0
    %635 = vmatprep.mubr.f32.mxu0 0.0
    %636 = vmatmul.mubr.f32.gmra.mrb[0].mxu0 %v185
    %v637 = vpop.f32.mrb[0].mxu0
    %v638 = vadd.f32 %v128, %v637
    %v639 = vpop.f32.mrb[0].mxu0
    %640 = vmatprep.mubr.f32.mxu0 0.0
    %641 = vmatmul.mubr.f32.gmra.mrb[0].mxu0 %v188
    %v642 = vpop.f32.mrb[0].mxu0
    %v643 = vadd.f32 %v128, %v642
    %v644 = vpop.f32.mrb[0].mxu0
    %645 = vmatprep.mubr.f32.mxu0 0.0
    %646 = vmatmul.mubr.f32.gmra.mrb[0].mxu0 %v191
    %v647 = vpop.f32.mrb[0].mxu0
    %v648 = vadd.f32 %v128, %v647
    %v649 = vpop.f32.mrb[0].mxu0
    %650 = vmatprep.mubr.f32.mxu0 0.0
    %651 = vmatmul.mubr.f32.gmra.mrb[0].mxu0 %v194
    %v652 = vpop.f32.mrb[0].mxu0
    %v653 = vadd.f32 %v128, %v652
    %v654 = vpop.f32.mrb[0].mxu0
    %655 = vmatprep.mubr.f32.mxu0 0.0
    %656 = vmatmul.mubr.f32.gmra.mrb[0].mxu0 %v197
    %v657 = vpop.f32.mrb[0].mxu0
    %v658 = vadd.f32 %v128, %v657
    %v659 = vpop.f32.mrb[0].mxu0
    %660 = vmatprep.mubr.f32.mxu0 0.0
    %661 = vmatmul.mubr.f32.gmra.mrb[0].mxu0 %v200
    %v662 = vpop.f32.mrb[0].mxu0
    %v663 = vadd.f32 %v128, %v662
    %v664 = vpop.f32.mrb[0].mxu0
    %665 = vmatprep.mubr.f32.mxu0 0.0
    %666 = vmatmul.mubr.f32.gmra.mrb[0].mxu0 %v203
    %v667 = vpop.f32.mrb[0].mxu0
    %v668 = vadd.f32 %v128, %v667
    %v669 = vpop.f32.mrb[0].mxu0
    %670 = vmatprep.mubr.f32.mxu0 0.0
    %671 = vmatmul.mubr.f32.gmra.mrb[0].mxu0 %v206
    %v672 = vpop.f32.mrb[0].mxu0
    %v673 = vadd.f32 %v128, %v672
    %v674 = vpop.f32.mrb[0].mxu0
    %675 = vmatprep.mubr.f32.mxu0 0.0
    %676 = vmatmul.mubr.f32.gmra.mrb[0].mxu0 %v209
    %v677 = vpop.f32.mrb[0].mxu0
    %v678 = vadd.f32 %v128, %v677
    %v679 = vpop.f32.mrb[0].mxu0
    %680 = vmatprep.mubr.f32.mxu0 0.0
    %681 = vmatmul.mubr.f32.gmra.mrb[0].mxu0 %v212
    %v682 = vpop.f32.mrb[0].mxu0
    %v683 = vadd.f32 %v128, %v682
    %v684 = vpop.f32.mrb[0].mxu0
    %685 = vmatprep.mubr.f32.mxu0 0.0
    %686 = vmatmul.mubr.f32.gmra.mrb[0].mxu0 %v215
    %v687 = vpop.f32.mrb[0].mxu0
    %v688 = vadd.f32 %v128, %v687
    %v689 = vpop.f32.mrb[0].mxu0
    %690 = vmatprep.mubr.f32.mxu0 0.0
    %691 = vmatmul.mubr.f32.gmra.mrb[0].mxu0 %v218
    %v692 = vpop.f32.mrb[0].mxu0
    %v693 = vadd.f32 %v128, %v692
    %v694 = vpop.f32.mrb[0].mxu0
    %695 = vmatprep.mubr.f32.mxu0 0.0
    %696 = vmatmul.mubr.f32.gmra.mrb[0].mxu0 %v221
    %v697 = vpop.f32.mrb[0].mxu0
    %v698 = vadd.f32 %v128, %v697
    %v699 = vpop.f32.mrb[0].mxu0
    %700 = vmatprep.mubr.f32.mxu0 0.0
    %701 = vmatmul.mubr.f32.gmra.mrb[0].mxu0 %v224
    %v702 = vpop.f32.mrb[0].mxu0
    %v703 = vadd.f32 %v128, %v702
    %v704 = vpop.f32.mrb[0].mxu0
    %705 = vmatprep.mubr.f32.mxu0 0.0
    %706 = vmatmul.mubr.f32.gmra.mrb[0].mxu0 %v227
    %v707 = vpop.f32.mrb[0].mxu0
    %v708 = vadd.f32 %v128, %v707
    %v709 = vpop.f32.mrb[0].mxu0
    %710 = vdwg.mxu0
    %711 = vst [vmem:[#allocation2] sm:$0xff] %v296
    %712 = vst [vmem:[#allocation2 + $0x8] sm:$0xff] %v298
    %713 = vst [vmem:[#allocation2 + $0x10] sm:$0xff] %v553
    %714 = vst [vmem:[#allocation2 + $0x18] sm:$0xff] %v302
    %715 = vst [vmem:[#allocation2 + $0x20] sm:$0xff] %v304
    %716 = vst [vmem:[#allocation2 + $0x28] sm:$0xff] %v558
    %717 = vst [vmem:[#allocation2 + $0x30] sm:$0xff] %v308
    %718 = vst [vmem:[#allocation2 + $0x38] sm:$0xff] %v310
    %719 = vst [vmem:[#allocation2 + $0x40] sm:$0xff] %v563
    %720 = vst [vmem:[#allocation2 + $0x48] sm:$0xff] %v314
    %721 = vst [vmem:[#allocation2 + $0x50] sm:$0xff] %v316
    %722 = vst [vmem:[#allocation2 + $0x58] sm:$0xff] %v568
    %723 = vst [vmem:[#allocation2 + $0x60] sm:$0xff] %v320
    %724 = vst [vmem:[#allocation2 + $0x68] sm:$0xff] %v322
    %725 = vst [vmem:[#allocation2 + $0x70] sm:$0xff] %v573
    %726 = vst [vmem:[#allocation2 + $0x78] sm:$0xff] %v326
    %727 = vst [vmem:[#allocation2 + $0x80] sm:$0xff] %v328
    %728 = vst [vmem:[#allocation2 + $0x88] sm:$0xff] %v578
    %729 = vst [vmem:[#allocation2 + $0x90] sm:$0xff] %v332
    %730 = vst [vmem:[#allocation2 + $0x98] sm:$0xff] %v334
    %731 = vst [vmem:[#allocation2 + $0xa0] sm:$0xff] %v583
    %732 = vst [vmem:[#allocation2 + $0xa8] sm:$0xff] %v338
    %733 = vst [vmem:[#allocation2 + $0xb0] sm:$0xff] %v340
    %734 = vst [vmem:[#allocation2 + $0xb8] sm:$0xff] %v588
    %735 = vst [vmem:[#allocation2 + $0xc0] sm:$0xff] %v344
    %736 = vst [vmem:[#allocation2 + $0xc8] sm:$0xff] %v346
    %737 = vst [vmem:[#allocation2 + $0xd0] sm:$0xff] %v593
    %738 = vst [vmem:[#allocation2 + $0xd8] sm:$0xff] %v350
    %739 = vst [vmem:[#allocation2 + $0xe0] sm:$0xff] %v352
    %740 = vst [vmem:[#allocation2 + $0xe8] sm:$0xff] %v598
    %741 = vst [vmem:[#allocation2 + $0xf0] sm:$0xff] %v356
    %742 = vst [vmem:[#allocation2 + $0xf8] sm:$0xff] %v358
    %743 = vst [vmem:[#allocation2 + $0x100] sm:$0xff] %v603
    %744 = vst [vmem:[#allocation2 + $0x108] sm:$0xff] %v362
    %745 = vst [vmem:[#allocation2 + $0x110] sm:$0xff] %v364
    %746 = vst [vmem:[#allocation2 + $0x118] sm:$0xff] %v608
    %747 = vst [vmem:[#allocation2 + $0x120] sm:$0xff] %v368
    %748 = vst [vmem:[#allocation2 + $0x128] sm:$0xff] %v370
    %749 = vst [vmem:[#allocation2 + $0x130] sm:$0xff] %v613
    %750 = vst [vmem:[#allocation2 + $0x138] sm:$0xff] %v374
    %751 = vst [vmem:[#allocation2 + $0x140] sm:$0xff] %v376
    %752 = vst [vmem:[#allocation2 + $0x148] sm:$0xff] %v618
    %753 = vst [vmem:[#allocation2 + $0x150] sm:$0xff] %v380
    %754 = vst [vmem:[#allocation2 + $0x158] sm:$0xff] %v382
    %755 = vst [vmem:[#allocation2 + $0x160] sm:$0xff] %v623
    %756 = vst [vmem:[#allocation2 + $0x168] sm:$0xff] %v386
    %757 = vst [vmem:[#allocation2 + $0x170] sm:$0xff] %v388
    %758 = vst [vmem:[#allocation2 + $0x178] sm:$0xff] %v628
    %759 = vst [vmem:[#allocation2 + $0x180] sm:$0xff] %v392
    %760 = vst [vmem:[#allocation2 + $0x188] sm:$0xff] %v394
    %761 = vst [vmem:[#allocation2 + $0x190] sm:$0xff] %v633
    %762 = vst [vmem:[#allocation2 + $0x198] sm:$0xff] %v398
    %763 = vst [vmem:[#allocation2 + $0x1a0] sm:$0xff] %v400
    %764 = vst [vmem:[#allocation2 + $0x1a8] sm:$0xff] %v638
    %765 = vst [vmem:[#allocation2 + $0x1b0] sm:$0xff] %v404
    %766 = vst [vmem:[#allocation2 + $0x1b8] sm:$0xff] %v406
    %767 = vst [vmem:[#allocation2 + $0x1c0] sm:$0xff] %v643
    %768 = vst [vmem:[#allocation2 + $0x1c8] sm:$0xff] %v410
    %769 = vst [vmem:[#allocation2 + $0x1d0] sm:$0xff] %v412
    %770 = vst [vmem:[#allocation2 + $0x1d8] sm:$0xff] %v648
    %771 = vst [vmem:[#allocation2 + $0x1e0] sm:$0xff] %v416
    %772 = vst [vmem:[#allocation2 + $0x1e8] sm:$0xff] %v418
    %773 = vst [vmem:[#allocation2 + $0x1f0] sm:$0xff] %v653
    %774 = vst [vmem:[#allocation2 + $0x1f8] sm:$0xff] %v422
    %775 = vst [vmem:[#allocation2 + $0x200] sm:$0xff] %v424
    %776 = vst [vmem:[#allocation2 + $0x208] sm:$0xff] %v658
    %777 = vst [vmem:[#allocation2 + $0x210] sm:$0xff] %v428
    %778 = vst [vmem:[#allocation2 + $0x218] sm:$0xff] %v430
    %779 = vst [vmem:[#allocation2 + $0x220] sm:$0xff] %v663
    %780 = vst [vmem:[#allocation2 + $0x228] sm:$0xff] %v434
    %781 = vst [vmem:[#allocation2 + $0x230] sm:$0xff] %v436
    %782 = vst [vmem:[#allocation2 + $0x238] sm:$0xff] %v668
    %783 = vst [vmem:[#allocation2 + $0x240] sm:$0xff] %v440
    %784 = vst [vmem:[#allocation2 + $0x248] sm:$0xff] %v442
    %785 = vst [vmem:[#allocation2 + $0x250] sm:$0xff] %v673
    %786 = vst [vmem:[#allocation2 + $0x258] sm:$0xff] %v446
    %787 = vst [vmem:[#allocation2 + $0x260] sm:$0xff] %v448
    %788 = vst [vmem:[#allocation2 + $0x268] sm:$0xff] %v678
    %789 = vst [vmem:[#allocation2 + $0x270] sm:$0xff] %v452
    %790 = vst [vmem:[#allocation2 + $0x278] sm:$0xff] %v454
    %791 = vst [vmem:[#allocation2 + $0x280] sm:$0xff] %v683
    %792 = vst [vmem:[#allocation2 + $0x288] sm:$0xff] %v458
    %793 = vst [vmem:[#allocation2 + $0x290] sm:$0xff] %v460
    %794 = vst [vmem:[#allocation2 + $0x298] sm:$0xff] %v688
    %795 = vst [vmem:[#allocation2 + $0x2a0] sm:$0xff] %v464
    %796 = vst [vmem:[#allocation2 + $0x2a8] sm:$0xff] %v466
    %797 = vst [vmem:[#allocation2 + $0x2b0] sm:$0xff] %v693
    %798 = vst [vmem:[#allocation2 + $0x2b8] sm:$0xff] %v470
    %799 = vst [vmem:[#allocation2 + $0x2c0] sm:$0xff] %v472
    %800 = vst [vmem:[#allocation2 + $0x2c8] sm:$0xff] %v698
    %801 = vst [vmem:[#allocation2 + $0x2d0] sm:$0xff] %v476
    %802 = vst [vmem:[#allocation2 + $0x2d8] sm:$0xff] %v478
    %803 = vst [vmem:[#allocation2 + $0x2e0] sm:$0xff] %v703
    %804 = vst [vmem:[#allocation2 + $0x2e8] sm:$0xff] %v482
    %805 = vst [vmem:[#allocation2 + $0x2f0] sm:$0xff] %v484
    %806 = vst [vmem:[#allocation2 + $0x2f8] sm:$0xff] %v708
    %v807 = vld [vmem:[%s1] sm:$0xff]
    %v808 = vld [vmem:[%s1 + $0x8] sm:$0xff]
    %v809 = vld [vmem:[%s1 + $0x10] sm:$0xff]
    %v810 = vld [vmem:[%s1 + $0x18] sm:$0xff]
    %v811 = vld [vmem:[#allocation2] sm:$0xff]
    %v812 = vld [vmem:[#allocation2 + $0x8] sm:$0xff]
    %v813 = vld [vmem:[#allocation2 + $0x10] sm:$0xff]
    %v814 = vld [vmem:[#allocation2 + $0x18] sm:$0xff]
    %v815 = vld [vmem:[#allocation2 + $0x20] sm:$0xff]
    %v816 = vld [vmem:[#allocation2 + $0x28] sm:$0xff]
    %v817 = vld [vmem:[#allocation2 + $0x180] sm:$0xff]
    %v818 = vld [vmem:[#allocation2 + $0x188] sm:$0xff]
    %v819 = vld [vmem:[#allocation2 + $0x190] sm:$0xff]
    %v820 = vld [vmem:[#allocation2 + $0x198] sm:$0xff]
    %v821 = vld [vmem:[#allocation2 + $0x1a0] sm:$0xff]
    %v822 = vld [vmem:[#allocation2 + $0x1a8] sm:$0xff]
    %v823 = vld [vmem:[%s4] sm:$0xff]
    %v824 = vld [vmem:[%s4 + $0x8] sm:$0xff]
    %v825 = vld [vmem:[%s4 + $0x10] sm:$0xff]
    %v826 = vld [vmem:[%s4 + $0x18] sm:$0xff]
    %v827 = vld [vmem:[%s4 + $0x20] sm:$0xff]
    %v828 = vld [vmem:[%s4 + $0x28] sm:$0xff]
    %v829 = vld [vmem:[%s4 + $0x30] sm:$0xff]
    %v830 = vld [vmem:[%s4 + $0x38] sm:$0xff]
    %v831 = vld [vmem:[%s4 + $0x40] sm:$0xff]
    %v832 = vld [vmem:[%s4 + $0x48] sm:$0xff]
    %v833 = vld [vmem:[%s4 + $0x50] sm:$0xff]
    %v834 = vld [vmem:[%s4 + $0x58] sm:$0xff]
    %v835 = vld [vmem:[%s4 + $0x60] sm:$0xff]
    %v836 = vld [vmem:[%s4 + $0x68] sm:$0xff]
    %v837 = vld [vmem:[%s4 + $0x70] sm:$0xff]
    %v838 = vld [vmem:[%s4 + $0x78] sm:$0xff]
    %v839 = vld [vmem:[%s4 + $0x80] sm:$0xff]
    %v840 = vld [vmem:[%s4 + $0x88] sm:$0xff]
    %v841 = vld [vmem:[%s4 + $0x90] sm:$0xff]
    %v842 = vld [vmem:[%s4 + $0x98] sm:$0xff]
    %v843 = vld [vmem:[%s4 + $0xa0] sm:$0xff]
    %v844 = vld [vmem:[%s4 + $0xa8] sm:$0xff]
    %v845 = vld [vmem:[%s4 + $0xb0] sm:$0xff]
    %v846 = vld [vmem:[%s4 + $0xb8] sm:$0xff]
    %v847 = vld [vmem:[%s4 + $0xc0] sm:$0xff]
    %v848 = vld [vmem:[%s4 + $0xc8] sm:$0xff]
    %v849 = vld [vmem:[%s4 + $0xd0] sm:$0xff]
    %v850 = vld [vmem:[%s4 + $0xd8] sm:$0xff]
    %v851 = vld [vmem:[%s4 + $0xe0] sm:$0xff]
    %v852 = vld [vmem:[%s4 + $0xe8] sm:$0xff]
    %v853 = vld [vmem:[%s4 + $0xf0] sm:$0xff]
    %v854 = vld [vmem:[%s4 + $0xf8] sm:$0xff]
    %855 = vmatprep.subr.mxu0 %v824
    %856 = vmatpush1.msra.mxu0 %v823
    %857 = vmatprep.subr.mxu0 %v826
    %858 = vmatpush1.msra.mxu0 %v825
    %859 = vmatprep.subr.mxu0 %v828
    %860 = vmatpush1.msra.mxu0 %v827
    %861 = vmatprep.subr.mxu0 %v830
    %862 = vmatpush1.msra.mxu0 %v829
    %863 = vmatprep.subr.mxu0 %v832
    %864 = vmatpush1.msra.mxu0 %v831
    %865 = vmatprep.subr.mxu0 %v834
    %866 = vmatpush1.msra.mxu0 %v833
    %867 = vmatprep.subr.mxu0 %v836
    %868 = vmatpush1.msra.mxu0 %v835
    %869 = vmatprep.subr.mxu0 %v838
    %870 = vmatpush1.msra.mxu0 %v837
    %871 = vmatprep.subr.mxu0 %v840
    %872 = vmatpush1.msra.mxu0 %v839
    %873 = vmatprep.subr.mxu0 %v842
    %874 = vmatpush1.msra.mxu0 %v841
    %875 = vmatprep.subr.mxu0 %v844
    %876 = vmatpush1.msra.mxu0 %v843
    %877 = vmatprep.subr.mxu0 %v846
    %878 = vmatpush1.msra.mxu0 %v845
    %879 = vmatprep.subr.mxu0 %v848
    %880 = vmatpush1.msra.mxu0 %v847
    %881 = vmatprep.subr.mxu0 %v850
    %882 = vmatpush1.msra.mxu0 %v849
    %883 = vmatprep.subr.mxu0 %v852
    %884 = vmatpush1.msra.mxu0 %v851
    %885 = vmatprep.subr.mxu0 %v854
    %886 = vmatpush1.msra.mxu0 %v853
    %887 = vmatprep.subr.mxu0 0.0
    %888 = vmatpush1.msra.mxu0 0.0
    %889 = vmatprep.subr.mxu0 0.0
    %890 = vmatpush1.msra.mxu0 0.0
    %891 = vmatprep.subr.mxu0 0.0
    %892 = vmatpush1.msra.mxu0 0.0
    %893 = vmatprep.subr.mxu0 0.0
    %894 = vmatpush1.msra.mxu0 0.0
    %895 = vmatprep.subr.mxu0 0.0
    %896 = vmatpush1.msra.mxu0 0.0
    %897 = vmatprep.subr.mxu0 0.0
    %898 = vmatpush1.msra.mxu0 0.0
    %899 = vmatprep.subr.mxu0 0.0
    %900 = vmatpush1.msra.mxu0 0.0
    %901 = vmatprep.subr.mxu0 0.0
    %902 = vmatpush1.msra.mxu0 0.0
    %903 = vmatprep.subr.mxu0 0.0
    %904 = vmatpush1.msra.mxu0 0.0
    %905 = vmatprep.subr.mxu0 0.0
    %906 = vmatpush1.msra.mxu0 0.0
    %907 = vmatprep.subr.mxu0 0.0
    %908 = vmatpush1.msra.mxu0 0.0
    %909 = vmatprep.subr.mxu0 0.0
    %910 = vmatpush1.msra.mxu0 0.0
    %911 = vmatprep.subr.mxu0 0.0
    %912 = vmatpush1.msra.mxu0 0.0
    %913 = vmatprep.subr.mxu0 0.0
    %914 = vmatpush1.msra.mxu0 0.0
    %915 = vmatprep.subr.mxu0 0.0
    %916 = vmatpush1.msra.mxu0 0.0
    %917 = vmatprep.subr.mxu0 0.0
    %918 = vmatpush1.msra.mxu0 0.0
    %919 = vmatprep.mubr.f32.mxu0 0.0
    %920 = vmatmul.mubr.f32.gmra.mrb[0].mxu0 %v807
    %v921 = vpop.f32.mrb[0].mxu0
    %v922 = vadd.f32 0.0, %v921
    %v923 = vpop.f32.mrb[0].mxu0
    %v924 = vadd.f32 0.0, %v923
    %925 = vmatprep.mubr.f32.mxu0 0.0
    %926 = vmatmul.mubr.f32.gmra.mrb[0].mxu0 %v808
    %v927 = vpop.f32.mrb[0].mxu0
    %v928 = vadd.f32 0.0, %v927
    %v929 = vpop.f32.mrb[0].mxu0
    %v930 = vadd.f32 0.0, %v929
    %931 = vmatprep.mubr.f32.mxu0 0.0
    %932 = vmatmul.mubr.f32.gmra.mrb[0].mxu0 %v809
    %v933 = vpop.f32.mrb[0].mxu0
    %v934 = vadd.f32 0.0, %v933
    %v935 = vpop.f32.mrb[0].mxu0
    %v936 = vadd.f32 0.0, %v935
    %937 = vmatprep.mubr.f32.mxu0 0.0
    %938 = vmatmul.mubr.f32.gmra.mrb[0].mxu0 %v810
    %v939 = vpop.f32.mrb[0].mxu0
    %v940 = vadd.f32 0.0, %v939
    %v941 = vpop.f32.mrb[0].mxu0
    %v942 = vadd.f32 0.0, %v941
    %943 = vdwg.mxu0
    %v944 = vadd.f32 %v811, %v922
    %v945 = vadd.f32 %v812, %v924
    %v946 = vadd.f32 %v814, %v928
    %v947 = vadd.f32 %v815, %v930
    %v948 = vadd.f32 %v817, %v934
    %v949 = vadd.f32 %v818, %v936
    %v950 = vadd.f32 %v820, %v940
    %v951 = vadd.f32 %v821, %v942
    %v952 = vxor.u32 %v944, 2147483648
    %v953 = vxor.u32 %v945, 2147483648
    %v954 = vxor.u32 %v946, 2147483648
    %v955 = vxor.u32 %v947, 2147483648
    %v956 = vxor.u32 %v948, 2147483648
    %v957 = vxor.u32 %v949, 2147483648
    %v958 = vxor.u32 %v950, 2147483648
    %v959 = vxor.u32 %v951, 2147483648
    %v960 = vmul.f32 %v952, 1.442695
    %v961 = vpow.pop %v960
    %v962 = vmul.f32 %v953, 1.442695
    %v963 = vpow.pop %v962
    %v964 = vmul.f32 %v954, 1.442695
    %v965 = vpow.pop %v964
    %v966 = vmul.f32 %v955, 1.442695
    %v967 = vpow.pop %v966
    %v968 = vmul.f32 %v956, 1.442695
    %v969 = vpow.pop %v968
    %v970 = vmul.f32 %v957, 1.442695
    %v971 = vpow.pop %v970
    %v972 = vmul.f32 %v958, 1.442695
    %v973 = vpow.pop %v972
    %v974 = vmul.f32 %v959, 1.442695
    %v975 = vpow.pop %v974
    %v976 = vadd.f32 %v961, 1.0
    %v977 = vadd.f32 %v963, 1.0
    %v978 = vadd.f32 %v965, 1.0
    %v979 = vadd.f32 %v967, 1.0
    %v980 = vadd.f32 %v969, 1.0
    %v981 = vadd.f32 %v971, 1.0
    %v982 = vadd.f32 %v973, 1.0
    %v983 = vadd.f32 %v975, 1.0
    %v984 = vrcp.pop %v976
    %v985 = vmul.f32 1.0, %v984
    %v986 = vrcp.pop %v977
    %v987 = vmul.f32 1.0, %v986
    %v988 = vrcp.pop %v978
    %v989 = vmul.f32 1.0, %v988
    %v990 = vrcp.pop %v979
    %v991 = vmul.f32 1.0, %v990
    %v992 = vrcp.pop %v980
    %v993 = vmul.f32 1.0, %v992
    %v994 = vrcp.pop %v981
    %v995 = vmul.f32 1.0, %v994
    %v996 = vrcp.pop %v982
    %v997 = vmul.f32 1.0, %v996
    %v998 = vrcp.pop %v983
    %v999 = vmul.f32 1.0, %v998
    %v1000 = vmul.f32 %v985, %v807
    %v1001 = vmul.f32 %v989, %v808
    %v1002 = vmul.f32 %v993, %v809
    %v1003 = vmul.f32 %v997, %v810
    %v1004 = vld [vmem:[#allocation6] sm:$0xff]
    %v1005 = vld [vmem:[#allocation6 + $0x8] sm:$0xff]
    %v1006 = vld [vmem:[#allocation6 + $0x10] sm:$0xff]
    %v1007 = vld [vmem:[#allocation6 + $0x18] sm:$0xff]
    %v1008 = vld [vmem:[#allocation6 + $0x20] sm:$0xff]
    %v1009 = vld [vmem:[#allocation6 + $0x28] sm:$0xff]
    %v1010 = vld [vmem:[#allocation6 + $0x30] sm:$0xff]
    %v1011 = vld [vmem:[#allocation6 + $0x38] sm:$0xff]
    %v1012 = vld [vmem:[#allocation6 + $0x40] sm:$0xff]
    %v1013 = vld [vmem:[#allocation6 + $0x48] sm:$0xff]
    %v1014 = vld [vmem:[#allocation6 + $0x50] sm:$0xff]
    %v1015 = vld [vmem:[#allocation6 + $0x58] sm:$0xff]
    %v1016 = vld [vmem:[#allocation6 + $0x60] sm:$0xff]
    %v1017 = vld [vmem:[#allocation6 + $0x68] sm:$0xff]
    %v1018 = vld [vmem:[#allocation6 + $0x70] sm:$0xff]
    %v1019 = vld [vmem:[#allocation6 + $0x78] sm:$0xff]
    %1020 = vmatprep.subr.mxu0 0.0
    %1021 = vmatpush1.msra.mxu0 %v1004
    %1022 = vmatprep.subr.mxu0 0.0
    %1023 = vmatpush1.msra.mxu0 %v1005
    %1024 = vmatprep.subr.mxu0 0.0
    %1025 = vmatpush1.msra.mxu0 %v1006
    %1026 = vmatprep.subr.mxu0 0.0
    %1027 = vmatpush1.msra.mxu0 %v1007
    %1028 = vmatprep.subr.mxu0 0.0
    %1029 = vmatpush1.msra.mxu0 %v1008
    %1030 = vmatprep.subr.mxu0 0.0
    %1031 = vmatpush1.msra.mxu0 %v1009
    %1032 = vmatprep.subr.mxu0 0.0
    %1033 = vmatpush1.msra.mxu0 %v1010
    %1034 = vmatprep.subr.mxu0 0.0
    %1035 = vmatpush1.msra.mxu0 %v1011
    %1036 = vmatprep.subr.mxu0 0.0
    %1037 = vmatpush1.msra.mxu0 %v1012
    %1038 = vmatprep.subr.mxu0 0.0
    %1039 = vmatpush1.msra.mxu0 %v1013
    %1040 = vmatprep.subr.mxu0 0.0
    %1041 = vmatpush1.msra.mxu0 %v1014
    %1042 = vmatprep.subr.mxu0 0.0
    %1043 = vmatpush1.msra.mxu0 %v1015
    %1044 = vmatprep.subr.mxu0 0.0
    %1045 = vmatpush1.msra.mxu0 %v1016
    %1046 = vmatprep.subr.mxu0 0.0
    %1047 = vmatpush1.msra.mxu0 %v1017
    %1048 = vmatprep.subr.mxu0 0.0
    %1049 = vmatpush1.msra.mxu0 %v1018
    %1050 = vmatprep.subr.mxu0 0.0
    %1051 = vmatpush1.msra.mxu0 %v1019
    %1052 = vmatprep.subr.mxu0 0.0
    %1053 = vmatpush1.msra.mxu0 0.0
    %1054 = vmatprep.subr.mxu0 0.0
    %1055 = vmatpush1.msra.mxu0 0.0
    %1056 = vmatprep.subr.mxu0 0.0
    %1057 = vmatpush1.msra.mxu0 0.0
    %1058 = vmatprep.subr.mxu0 0.0
    %1059 = vmatpush1.msra.mxu0 0.0
    %1060 = vmatprep.subr.mxu0 0.0
    %1061 = vmatpush1.msra.mxu0 0.0
    %1062 = vmatprep.subr.mxu0 0.0
    %1063 = vmatpush1.msra.mxu0 0.0
    %1064 = vmatprep.subr.mxu0 0.0
    %1065 = vmatpush1.msra.mxu0 0.0
    %1066 = vmatprep.subr.mxu0 0.0
    %1067 = vmatpush1.msra.mxu0 0.0
    %1068 = vmatprep.subr.mxu0 0.0
    %1069 = vmatpush1.msra.mxu0 0.0
    %1070 = vmatprep.subr.mxu0 0.0
    %1071 = vmatpush1.msra.mxu0 0.0
    %1072 = vmatprep.subr.mxu0 0.0
    %1073 = vmatpush1.msra.mxu0 0.0
    %1074 = vmatprep.subr.mxu0 0.0
    %1075 = vmatpush1.msra.mxu0 0.0
    %1076 = vmatprep.subr.mxu0 0.0
    %1077 = vmatpush1.msra.mxu0 0.0
    %1078 = vmatprep.subr.mxu0 0.0
    %1079 = vmatpush1.msra.mxu0 0.0
    %1080 = vmatprep.subr.mxu0 0.0
    %1081 = vmatpush1.msra.mxu0 0.0
    %1082 = vmatprep.subr.mxu0 0.0
    %1083 = vmatpush1.msra.mxu0 0.0
    %1084 = vmatprep.mubr.f32.mxu0 0.0
    %1085 = vmatmul.mubr.f32.gmra.mrb[0].mxu0 %v1000
    %v1086 = vpop.f32.mrb[0].mxu0
    %v1087 = vadd.f32 0.0, %v1086
    %v1088 = vpop.f32.mrb[0].mxu0
    %1089 = vmatprep.mubr.f32.mxu0 0.0
    %1090 = vmatmul.mubr.f32.gmra.mrb[0].mxu0 %v1001
    %v1091 = vpop.f32.mrb[0].mxu0
    %v1092 = vadd.f32 0.0, %v1091
    %v1093 = vpop.f32.mrb[0].mxu0
    %1094 = vmatprep.mubr.f32.mxu0 0.0
    %1095 = vmatmul.mubr.f32.gmra.mrb[0].mxu0 %v1002
    %v1096 = vpop.f32.mrb[0].mxu0
    %v1097 = vadd.f32 0.0, %v1096
    %v1098 = vpop.f32.mrb[0].mxu0
    %1099 = vmatprep.mubr.f32.mxu0 0.0
    %1100 = vmatmul.mubr.f32.gmra.mrb[0].mxu0 %v1003
    %v1101 = vpop.f32.mrb[0].mxu0
    %v1102 = vadd.f32 0.0, %v1101
    %v1103 = vpop.f32.mrb[0].mxu0
    %1104 = vdwg.mxu0
    %v1105 = vadd.f32 %v813, %v1087
    %v1106 = vadd.f32 %v816, %v1092
    %v1107 = vadd.f32 %v819, %v1097
    %v1108 = vadd.f32 %v822, %v1102
    %v1109 = vtanh.pop %v1105
    %v1110 = vtanh.pop %v1106
    %v1111 = vtanh.pop %v1107
    %v1112 = vtanh.pop %v1108
    %v1113 = vmul.f32 %v987, %v807
    %v1114 = vmul.f32 %v991, %v808
    %v1115 = vmul.f32 %v995, %v809
    %v1116 = vmul.f32 %v999, %v810
    %v1117 = vsub.f32 1.0, %v987
    %v1118 = vsub.f32 1.0, %v991
    %v1119 = vsub.f32 1.0, %v995
    %v1120 = vsub.f32 1.0, %v999
    %v1121 = vmul.f32 %v1117, %v1109
    %v1122 = vmul.f32 %v1118, %v1110
    %v1123 = vmul.f32 %v1119, %v1111
    %v1124 = vmul.f32 %v1120, %v1112
    %v1125 = vadd.f32 %v1113, %v1121
    %v1126 = vadd.f32 %v1114, %v1122
    %v1127 = vadd.f32 %v1115, %v1123
    %v1128 = vadd.f32 %v1116, %v1124
    %1129 = vst [vmem:[#allocation9] sm:$0xff] %v1125
    %1130 = vst [vmem:[#allocation9 + $0x8] sm:$0xff] %v1126
    %1131 = vst [vmem:[#allocation9 + $0x10] sm:$0xff] %v1127
    %1132 = vst [vmem:[#allocation9 + $0x18] sm:$0xff] %v1128
    %v1133 = vld [vmem:[#allocation2 + $0x30] sm:$0xff]
    %v1134 = vld [vmem:[#allocation2 + $0x38] sm:$0xff]
    %v1135 = vld [vmem:[#allocation2 + $0x40] sm:$0xff]
    %v1136 = vld [vmem:[#allocation2 + $0x48] sm:$0xff]
    %v1137 = vld [vmem:[#allocation2 + $0x50] sm:$0xff]
    %v1138 = vld [vmem:[#allocation2 + $0x58] sm:$0xff]
    %v1139 = vld [vmem:[#allocation2 + $0x1b0] sm:$0xff]
    %v1140 = vld [vmem:[#allocation2 + $0x1b8] sm:$0xff]
    %v1141 = vld [vmem:[#allocation2 + $0x1c0] sm:$0xff]
    %v1142 = vld [vmem:[#allocation2 + $0x1c8] sm:$0xff]
    %v1143 = vld [vmem:[#allocation2 + $0x1d0] sm:$0xff]
    %v1144 = vld [vmem:[#allocation2 + $0x1d8] sm:$0xff]
    %v1145 = vld [vmem:[%s4] sm:$0xff]
    %v1146 = vld [vmem:[%s4 + $0x8] sm:$0xff]
    %v1147 = vld [vmem:[%s4 + $0x10] sm:$0xff]
    %v1148 = vld [vmem:[%s4 + $0x18] sm:$0xff]
    %v1149 = vld [vmem:[%s4 + $0x20] sm:$0xff]
    %v1150 = vld [vmem:[%s4 + $0x28] sm:$0xff]
    %v1151 = vld [vmem:[%s4 + $0x30] sm:$0xff]
    %v1152 = vld [vmem:[%s4 + $0x38] sm:$0xff]
    %v1153 = vld [vmem:[%s4 + $0x40] sm:$0xff]
    %v1154 = vld [vmem:[%s4 + $0x48] sm:$0xff]
    %v1155 = vld [vmem:[%s4 + $0x50] sm:$0xff]
    %v1156 = vld [vmem:[%s4 + $0x58] sm:$0xff]
    %v1157 = vld [vmem:[%s4 + $0x60] sm:$0xff]
    %v1158 = vld [vmem:[%s4 + $0x68] sm:$0xff]
    %v1159 = vld [vmem:[%s4 + $0x70] sm:$0xff]
    %v1160 = vld [vmem:[%s4 + $0x78] sm:$0xff]
    %v1161 = vld [vmem:[%s4 + $0x80] sm:$0xff]
    %v1162 = vld [vmem:[%s4 + $0x88] sm:$0xff]
    %v1163 = vld [vmem:[%s4 + $0x90] sm:$0xff]
    %v1164 = vld [vmem:[%s4 + $0x98] sm:$0xff]
    %v1165 = vld [vmem:[%s4 + $0xa0] sm:$0xff]
    %v1166 = vld [vmem:[%s4 + $0xa8] sm:$0xff]
    %v1167 = vld [vmem:[%s4 + $0xb0] sm:$0xff]
    %v1168 = vld [vmem:[%s4 + $0xb8] sm:$0xff]
    %v1169 = vld [vmem:[%s4 + $0xc0] sm:$0xff]
    %v1170 = vld [vmem:[%s4 + $0xc8] sm:$0xff]
    %v1171 = vld [vmem:[%s4 + $0xd0] sm:$0xff]
    %v1172 = vld [vmem:[%s4 + $0xd8] sm:$0xff]
    %v1173 = vld [vmem:[%s4 + $0xe0] sm:$0xff]
    %v1174 = vld [vmem:[%s4 + $0xe8] sm:$0xff]
    %v1175 = vld [vmem:[%s4 + $0xf0] sm:$0xff]
    %v1176 = vld [vmem:[%s4 + $0xf8] sm:$0xff]
    %1177 = vmatprep.subr.mxu0 %v1146
    %1178 = vmatpush1.msra.mxu0 %v1145
    %1179 = vmatprep.subr.mxu0 %v1148
    %1180 = vmatpush1.msra.mxu0 %v1147
    %1181 = vmatprep.subr.mxu0 %v1150
    %1182 = vmatpush1.msra.mxu0 %v1149
    %1183 = vmatprep.subr.mxu0 %v1152
    %1184 = vmatpush1.msra.mxu0 %v1151
    %1185 = vmatprep.subr.mxu0 %v1154
    %1186 = vmatpush1.msra.mxu0 %v1153
    %1187 = vmatprep.subr.mxu0 %v1156
    %1188 = vmatpush1.msra.mxu0 %v1155
    %1189 = vmatprep.subr.mxu0 %v1158
    %1190 = vmatpush1.msra.mxu0 %v1157
    %1191 = vmatprep.subr.mxu0 %v1160
    %1192 = vmatpush1.msra.mxu0 %v1159
    %1193 = vmatprep.subr.mxu0 %v1162
    %1194 = vmatpush1.msra.mxu0 %v1161
    %1195 = vmatprep.subr.mxu0 %v1164
    %1196 = vmatpush1.msra.mxu0 %v1163
    %1197 = vmatprep.subr.mxu0 %v1166
    %1198 = vmatpush1.msra.mxu0 %v1165
    %1199 = vmatprep.subr.mxu0 %v1168
    %1200 = vmatpush1.msra.mxu0 %v1167
    %1201 = vmatprep.subr.mxu0 %v1170
    %1202 = vmatpush1.msra.mxu0 %v1169
    %1203 = vmatprep.subr.mxu0 %v1172
    %1204 = vmatpush1.msra.mxu0 %v1171
    %1205 = vmatprep.subr.mxu0 %v1174
    %1206 = vmatpush1.msra.mxu0 %v1173
    %1207 = vmatprep.subr.mxu0 %v1176
    %1208 = vmatpush1.msra.mxu0 %v1175
    %1209 = vmatprep.subr.mxu0 0.0
    %1210 = vmatpush1.msra.mxu0 0.0
    %1211 = vmatprep.subr.mxu0 0.0
    %1212 = vmatpush1.msra.mxu0 0.0
    %1213 = vmatprep.subr.mxu0 0.0
    %1214 = vmatpush1.msra.mxu0 0.0
    %1215 = vmatprep.subr.mxu0 0.0
    %1216 = vmatpush1.msra.mxu0 0.0
    %1217 = vmatprep.subr.mxu0 0.0
    %1218 = vmatpush1.msra.mxu0 0.0
    %1219 = vmatprep.subr.mxu0 0.0
    %1220 = vmatpush1.msra.mxu0 0.0
    %1221 = vmatprep.subr.mxu0 0.0
    %1222 = vmatpush1.msra.mxu0 0.0
    %1223 = vmatprep.subr.mxu0 0.0
    %1224 = vmatpush1.msra.mxu0 0.0
    %1225 = vmatprep.subr.mxu0 0.0
    %1226 = vmatpush1.msra.mxu0 0.0
    %1227 = vmatprep.subr.mxu0 0.0
    %1228 = vmatpush1.msra.mxu0 0.0
    %1229 = vmatprep.subr.mxu0 0.0
    %1230 = vmatpush1.msra.mxu0 0.0
    %1231 = vmatprep.subr.mxu0 0.0
    %1232 = vmatpush1.msra.mxu0 0.0
    %1233 = vmatprep.subr.mxu0 0.0
    %1234 = vmatpush1.msra.mxu0 0.0
    %1235 = vmatprep.subr.mxu0 0.0
    %1236 = vmatpush1.msra.mxu0 0.0
    %1237 = vmatprep.subr.mxu0 0.0
    %1238 = vmatpush1.msra.mxu0 0.0
    %1239 = vmatprep.subr.mxu0 0.0
    %1240 = vmatpush1.msra.mxu0 0.0
    %1241 = vmatprep.mubr.f32.mxu0 0.0
    %1242 = vmatmul.mubr.f32.gmra.mrb[0].mxu0 %v1125
    %v1243 = vpop.f32.mrb[0].mxu0
    %v1244 = vadd.f32 0.0, %v1243
    %v1245 = vpop.f32.mrb[0].mxu0
    %v1246 = vadd.f32 0.0, %v1245
    %1247 = vmatprep.mubr.f32.mxu0 0.0
    %1248 = vmatmul.mubr.f32.gmra.mrb[0].mxu0 %v1126
    %v1249 = vpop.f32.mrb[0].mxu0
    %v1250 = vadd.f32 0.0, %v1249
    %v1251 = vpop.f32.mrb[0].mxu0
    %v1252 = vadd.f32 0.0, %v1251
    %1253 = vmatprep.mubr.f32.mxu0 0.0
    %1254 = vmatmul.mubr.f32.gmra.mrb[0].mxu0 %v1127
    %v1255 = vpop.f32.mrb[0].mxu0
    %v1256 = vadd.f32 0.0, %v1255
    %v1257 = vpop.f32.mrb[0].mxu0
    %v1258 = vadd.f32 0.0, %v1257
    %1259 = vmatprep.mubr.f32.mxu0 0.0
    %1260 = vmatmul.mubr.f32.gmra.mrb[0].mxu0 %v1128
    %v1261 = vpop.f32.mrb[0].mxu0
    %v1262 = vadd.f32 0.0, %v1261
    %v1263 = vpop.f32.mrb[0].mxu0
    %v1264 = vadd.f32 0.0, %v1263
    %1265 = vdwg.mxu0
    %v1266 = vadd.f32 %v1133, %v1244
    %v1267 = vadd.f32 %v1134, %v1246
    %v1268 = vadd.f32 %v1136, %v1250
    %v1269 = vadd.f32 %v1137, %v1252
    %v1270 = vadd.f32 %v1139, %v1256
    %v1271 = vadd.f32 %v1140, %v1258
    %v1272 = vadd.f32 %v1142, %v1262
    %v1273 = vadd.f32 %v1143, %v1264
    %v1274 = vxor.u32 %v1266, 2147483648
    %v1275 = vxor.u32 %v1267, 2147483648
    %v1276 = vxor.u32 %v1268, 2147483648
    %v1277 = vxor.u32 %v1269, 2147483648
    %v1278 = vxor.u32 %v1270, 2147483648
    %v1279 = vxor.u32 %v1271, 2147483648
    %v1280 = vxor.u32 %v1272, 2147483648
    %v1281 = vxor.u32 %v1273, 2147483648
    %v1282 = vmul.f32 %v1274, 1.442695
    %v1283 = vpow.pop %v1282
    %v1284 = vmul.f32 %v1275, 1.442695
    %v1285 = vpow.pop %v1284
    %v1286 = vmul.f32 %v1276, 1.442695
    %v1287 = vpow.pop %v1286
    %v1288 = vmul.f32 %v1277, 1.442695
    %v1289 = vpow.pop %v1288
    %v1290 = vmul.f32 %v1278, 1.442695
    %v1291 = vpow.pop %v1290
    %v1292 = vmul.f32 %v1279, 1.442695
    %v1293 = vpow.pop %v1292
    %v1294 = vmul.f32 %v1280, 1.442695
    %v1295 = vpow.pop %v1294
    %v1296 = vmul.f32 %v1281, 1.442695
    %v1297 = vpow.pop %v1296
    %v1298 = vadd.f32 %v1283, 1.0
    %v1299 = vadd.f32 %v1285, 1.0
    %v1300 = vadd.f32 %v1287, 1.0
    %v1301 = vadd.f32 %v1289, 1.0
    %v1302 = vadd.f32 %v1291, 1.0
    %v1303 = vadd.f32 %v1293, 1.0
    %v1304 = vadd.f32 %v1295, 1.0
    %v1305 = vadd.f32 %v1297, 1.0
    %v1306 = vrcp.pop %v1298
    %v1307 = vmul.f32 1.0, %v1306
    %v1308 = vrcp.pop %v1299
    %v1309 = vmul.f32 1.0, %v1308
    %v1310 = vrcp.pop %v1300
    %v1311 = vmul.f32 1.0, %v1310
    %v1312 = vrcp.pop %v1301
    %v1313 = vmul.f32 1.0, %v1312
    %v1314 = vrcp.pop %v1302
    %v1315 = vmul.f32 1.0, %v1314
    %v1316 = vrcp.pop %v1303
    %v1317 = vmul.f32 1.0, %v1316
    %v1318 = vrcp.pop %v1304
    %v1319 = vmul.f32 1.0, %v1318
    %v1320 = vrcp.pop %v1305
    %v1321 = vmul.f32 1.0, %v1320
    %v1322 = vmul.f32 %v1307, %v1125
    %v1323 = vmul.f32 %v1311, %v1126
    %v1324 = vmul.f32 %v1315, %v1127
    %v1325 = vmul.f32 %v1319, %v1128
    %v1326 = vld [vmem:[#allocation6] sm:$0xff]
    %v1327 = vld [vmem:[#allocation6 + $0x8] sm:$0xff]
    %v1328 = vld [vmem:[#allocation6 + $0x10] sm:$0xff]
    %v1329 = vld [vmem:[#allocation6 + $0x18] sm:$0xff]
    %v1330 = vld [vmem:[#allocation6 + $0x20] sm:$0xff]
    %v1331 = vld [vmem:[#allocation6 + $0x28] sm:$0xff]
    %v1332 = vld [vmem:[#allocation6 + $0x30] sm:$0xff]
    %v1333 = vld [vmem:[#allocation6 + $0x38] sm:$0xff]
    %v1334 = vld [vmem:[#allocation6 + $0x40] sm:$0xff]
    %v1335 = vld [vmem:[#allocation6 + $0x48] sm:$0xff]
    %v1336 = vld [vmem:[#allocation6 + $0x50] sm:$0xff]
    %v1337 = vld [vmem:[#allocation6 + $0x58] sm:$0xff]
    %v1338 = vld [vmem:[#allocation6 + $0x60] sm:$0xff]
    %v1339 = vld [vmem:[#allocation6 + $0x68] sm:$0xff]
    %v1340 = vld [vmem:[#allocation6 + $0x70] sm:$0xff]
    %v1341 = vld [vmem:[#allocation6 + $0x78] sm:$0xff]
    %1342 = vmatprep.subr.mxu0 0.0
    %1343 = vmatpush1.msra.mxu0 %v1326
    %1344 = vmatprep.subr.mxu0 0.0
    %1345 = vmatpush1.msra.mxu0 %v1327
    %1346 = vmatprep.subr.mxu0 0.0
    %1347 = vmatpush1.msra.mxu0 %v1328
    %1348 = vmatprep.subr.mxu0 0.0
    %1349 = vmatpush1.msra.mxu0 %v1329
    %1350 = vmatprep.subr.mxu0 0.0
    %1351 = vmatpush1.msra.mxu0 %v1330
    %1352 = vmatprep.subr.mxu0 0.0
    %1353 = vmatpush1.msra.mxu0 %v1331
    %1354 = vmatprep.subr.mxu0 0.0
    %1355 = vmatpush1.msra.mxu0 %v1332
    %1356 = vmatprep.subr.mxu0 0.0
    %1357 = vmatpush1.msra.mxu0 %v1333
    %1358 = vmatprep.subr.mxu0 0.0
    %1359 = vmatpush1.msra.mxu0 %v1334
    %1360 = vmatprep.subr.mxu0 0.0
    %1361 = vmatpush1.msra.mxu0 %v1335
    %1362 = vmatprep.subr.mxu0 0.0
    %1363 = vmatpush1.msra.mxu0 %v1336
    %1364 = vmatprep.subr.mxu0 0.0
    %1365 = vmatpush1.msra.mxu0 %v1337
    %1366 = vmatprep.subr.mxu0 0.0
    %1367 = vmatpush1.msra.mxu0 %v1338
    %1368 = vmatprep.subr.mxu0 0.0
    %1369 = vmatpush1.msra.mxu0 %v1339
    %1370 = vmatprep.subr.mxu0 0.0
    %1371 = vmatpush1.msra.mxu0 %v1340
    %1372 = vmatprep.subr.mxu0 0.0
    %1373 = vmatpush1.msra.mxu0 %v1341
    %1374 = vmatprep.subr.mxu0 0.0
    %1375 = vmatpush1.msra.mxu0 0.0
    %1376 = vmatprep.subr.mxu0 0.0
    %1377 = vmatpush1.msra.mxu0 0.0
    %1378 = vmatprep.subr.mxu0 0.0
    %1379 = vmatpush1.msra.mxu0 0.0
    %1380 = vmatprep.subr.mxu0 0.0
    %1381 = vmatpush1.msra.mxu0 0.0
    %1382 = vmatprep.subr.mxu0 0.0
    %1383 = vmatpush1.msra.mxu0 0.0
    %1384 = vmatprep.subr.mxu0 0.0
    %1385 = vmatpush1.msra.mxu0 0.0
    %1386 = vmatprep.subr.mxu0 0.0
    %1387 = vmatpush1.msra.mxu0 0.0
    %1388 = vmatprep.subr.mxu0 0.0
    %1389 = vmatpush1.msra.mxu0 0.0
    %1390 = vmatprep.subr.mxu0 0.0
    %1391 = vmatpush1.msra.mxu0 0.0
    %1392 = vmatprep.subr.mxu0 0.0
    %1393 = vmatpush1.msra.mxu0 0.0
    %1394 = vmatprep.subr.mxu0 0.0
    %1395 = vmatpush1.msra.mxu0 0.0
    %1396 = vmatprep.subr.mxu0 0.0
    %1397 = vmatpush1.msra.mxu0 0.0
    %1398 = vmatprep.subr.mxu0 0.0
    %1399 = vmatpush1.msra.mxu0 0.0
    %1400 = vmatprep.subr.mxu0 0.0
    %1401 = vmatpush1.msra.mxu0 0.0
    %1402 = vmatprep.subr.mxu0 0.0
    %1403 = vmatpush1.msra.mxu0 0.0
    %1404 = vmatprep.subr.mxu0 0.0
    %1405 = vmatpush1.msra.mxu0 0.0
    %1406 = vmatprep.mubr.f32.mxu0 0.0
    %1407 = vmatmul.mubr.f32.gmra.mrb[0].mxu0 %v1322
    %v1408 = vpop.f32.mrb[0].mxu0
    %v1409 = vadd.f32 0.0, %v1408
    %v1410 = vpop.f32.mrb[0].mxu0
    %1411 = vmatprep.mubr.f32.mxu0 0.0
    %1412 = vmatmul.mubr.f32.gmra.mrb[0].mxu0 %v1323
    %v1413 = vpop.f32.mrb[0].mxu0
    %v1414 = vadd.f32 0.0, %v1413
    %v1415 = vpop.f32.mrb[0].mxu0
    %1416 = vmatprep.mubr.f32.mxu0 0.0
    %1417 = vmatmul.mubr.f32.gmra.mrb[0].mxu0 %v1324
    %v1418 = vpop.f32.mrb[0].mxu0
    %v1419 = vadd.f32 0.0, %v1418
    %v1420 = vpop.f32.mrb[0].mxu0
    %1421 = vmatprep.mubr.f32.mxu0 0.0
    %1422 = vmatmul.mubr.f32.gmra.mrb[0].mxu0 %v1325
    %v1423 = vpop.f32.mrb[0].mxu0
    %v1424 = vadd.f32 0.0, %v1423
    %v1425 = vpop.f32.mrb[0].mxu0
    %1426 = vdwg.mxu0
    %v1427 = vadd.f32 %v1135, %v1409
    %v1428 = vadd.f32 %v1138, %v1414
    %v1429 = vadd.f32 %v1141, %v1419
    %v1430 = vadd.f32 %v1144, %v1424
    %v1431 = vtanh.pop %v1427
    %v1432 = vtanh.pop %v1428
    %v1433 = vtanh.pop %v1429
    %v1434 = vtanh.pop %v1430
    %v1435 = vmul.f32 %v1309, %v1125
    %v1436 = vmul.f32 %v1313, %v1126
    %v1437 = vmul.f32 %v1317, %v1127
    %v1438 = vmul.f32 %v1321, %v1128
    %v1439 = vsub.f32 1.0, %v1309
    %v1440 = vsub.f32 1.0, %v1313
    %v1441 = vsub.f32 1.0, %v1317
    %v1442 = vsub.f32 1.0, %v1321
    %v1443 = vmul.f32 %v1439, %v1431
    %v1444 = vmul.f32 %v1440, %v1432
    %v1445 = vmul.f32 %v1441, %v1433
    %v1446 = vmul.f32 %v1442, %v1434
    %v1447 = vadd.f32 %v1435, %v1443
    %v1448 = vadd.f32 %v1436, %v1444
    %v1449 = vadd.f32 %v1437, %v1445
    %v1450 = vadd.f32 %v1438, %v1446
    %1451 = vst [vmem:[#allocation9 + $0x20] sm:$0xff] %v1447
    %1452 = vst [vmem:[#allocation9 + $0x28] sm:$0xff] %v1448
    %1453 = vst [vmem:[#allocation9 + $0x30] sm:$0xff] %v1449
    %1454 = vst [vmem:[#allocation9 + $0x38] sm:$0xff] %v1450
    %v1455 = vld [vmem:[#allocation2 + $0x60] sm:$0xff]
    %v1456 = vld [vmem:[#allocation2 + $0x68] sm:$0xff]
    %v1457 = vld [vmem:[#allocation2 + $0x70] sm:$0xff]
    %v1458 = vld [vmem:[#allocation2 + $0x78] sm:$0xff]
    %v1459 = vld [vmem:[#allocation2 + $0x80] sm:$0xff]
    %v1460 = vld [vmem:[#allocation2 + $0x88] sm:$0xff]
    %v1461 = vld [vmem:[#allocation2 + $0x1e0] sm:$0xff]
    %v1462 = vld [vmem:[#allocation2 + $0x1e8] sm:$0xff]
    %v1463 = vld [vmem:[#allocation2 + $0x1f0] sm:$0xff]
    %v1464 = vld [vmem:[#allocation2 + $0x1f8] sm:$0xff]
    %v1465 = vld [vmem:[#allocation2 + $0x200] sm:$0xff]
    %v1466 = vld [vmem:[#allocation2 + $0x208] sm:$0xff]
    %v1467 = vld [vmem:[%s4] sm:$0xff]
    %v1468 = vld [vmem:[%s4 + $0x8] sm:$0xff]
    %v1469 = vld [vmem:[%s4 + $0x10] sm:$0xff]
    %v1470 = vld [vmem:[%s4 + $0x18] sm:$0xff]
    %v1471 = vld [vmem:[%s4 + $0x20] sm:$0xff]
    %v1472 = vld [vmem:[%s4 + $0x28] sm:$0xff]
    %v1473 = vld [vmem:[%s4 + $0x30] sm:$0xff]
    %v1474 = vld [vmem:[%s4 + $0x38] sm:$0xff]
    %v1475 = vld [vmem:[%s4 + $0x40] sm:$0xff]
    %v1476 = vld [vmem:[%s4 + $0x48] sm:$0xff]
    %v1477 = vld [vmem:[%s4 + $0x50] sm:$0xff]
    %v1478 = vld [vmem:[%s4 + $0x58] sm:$0xff]
    %v1479 = vld [vmem:[%s4 + $0x60] sm:$0xff]
    %v1480 = vld [vmem:[%s4 + $0x68] sm:$0xff]
    %v1481 = vld [vmem:[%s4 + $0x70] sm:$0xff]
    %v1482 = vld [vmem:[%s4 + $0x78] sm:$0xff]
    %v1483 = vld [vmem:[%s4 + $0x80] sm:$0xff]
    %v1484 = vld [vmem:[%s4 + $0x88] sm:$0xff]
    %v1485 = vld [vmem:[%s4 + $0x90] sm:$0xff]
    %v1486 = vld [vmem:[%s4 + $0x98] sm:$0xff]
    %v1487 = vld [vmem:[%s4 + $0xa0] sm:$0xff]
    %v1488 = vld [vmem:[%s4 + $0xa8] sm:$0xff]
    %v1489 = vld [vmem:[%s4 + $0xb0] sm:$0xff]
    %v1490 = vld [vmem:[%s4 + $0xb8] sm:$0xff]
    %v1491 = vld [vmem:[%s4 + $0xc0] sm:$0xff]
    %v1492 = vld [vmem:[%s4 + $0xc8] sm:$0xff]
    %v1493 = vld [vmem:[%s4 + $0xd0] sm:$0xff]
    %v1494 = vld [vmem:[%s4 + $0xd8] sm:$0xff]
    %v1495 = vld [vmem:[%s4 + $0xe0] sm:$0xff]
    %v1496 = vld [vmem:[%s4 + $0xe8] sm:$0xff]
    %v1497 = vld [vmem:[%s4 + $0xf0] sm:$0xff]
    %v1498 = vld [vmem:[%s4 + $0xf8] sm:$0xff]
    %1499 = vmatprep.subr.mxu0 %v1468
    %1500 = vmatpush1.msra.mxu0 %v1467
    %1501 = vmatprep.subr.mxu0 %v1470
    %1502 = vmatpush1.msra.mxu0 %v1469
    %1503 = vmatprep.subr.mxu0 %v1472
    %1504 = vmatpush1.msra.mxu0 %v1471
    %1505 = vmatprep.subr.mxu0 %v1474
    %1506 = vmatpush1.msra.mxu0 %v1473
    %1507 = vmatprep.subr.mxu0 %v1476
    %1508 = vmatpush1.msra.mxu0 %v1475
    %1509 = vmatprep.subr.mxu0 %v1478
    %1510 = vmatpush1.msra.mxu0 %v1477
    %1511 = vmatprep.subr.mxu0 %v1480
    %1512 = vmatpush1.msra.mxu0 %v1479
    %1513 = vmatprep.subr.mxu0 %v1482
    %1514 = vmatpush1.msra.mxu0 %v1481
    %1515 = vmatprep.subr.mxu0 %v1484
    %1516 = vmatpush1.msra.mxu0 %v1483
    %1517 = vmatprep.subr.mxu0 %v1486
    %1518 = vmatpush1.msra.mxu0 %v1485
    %1519 = vmatprep.subr.mxu0 %v1488
    %1520 = vmatpush1.msra.mxu0 %v1487
    %1521 = vmatprep.subr.mxu0 %v1490
    %1522 = vmatpush1.msra.mxu0 %v1489
    %1523 = vmatprep.subr.mxu0 %v1492
    %1524 = vmatpush1.msra.mxu0 %v1491
    %1525 = vmatprep.subr.mxu0 %v1494
    %1526 = vmatpush1.msra.mxu0 %v1493
    %1527 = vmatprep.subr.mxu0 %v1496
    %1528 = vmatpush1.msra.mxu0 %v1495
    %1529 = vmatprep.subr.mxu0 %v1498
    %1530 = vmatpush1.msra.mxu0 %v1497
    %1531 = vmatprep.subr.mxu0 0.0
    %1532 = vmatpush1.msra.mxu0 0.0
    %1533 = vmatprep.subr.mxu0 0.0
    %1534 = vmatpush1.msra.mxu0 0.0
    %1535 = vmatprep.subr.mxu0 0.0
    %1536 = vmatpush1.msra.mxu0 0.0
    %1537 = vmatprep.subr.mxu0 0.0
    %1538 = vmatpush1.msra.mxu0 0.0
    %1539 = vmatprep.subr.mxu0 0.0
    %1540 = vmatpush1.msra.mxu0 0.0
    %1541 = vmatprep.subr.mxu0 0.0
    %1542 = vmatpush1.msra.mxu0 0.0
    %1543 = vmatprep.subr.mxu0 0.0
    %1544 = vmatpush1.msra.mxu0 0.0
    %1545 = vmatprep.subr.mxu0 0.0
    %1546 = vmatpush1.msra.mxu0 0.0
    %1547 = vmatprep.subr.mxu0 0.0
    %1548 = vmatpush1.msra.mxu0 0.0
    %1549 = vmatprep.subr.mxu0 0.0
    %1550 = vmatpush1.msra.mxu0 0.0
    %1551 = vmatprep.subr.mxu0 0.0
    %1552 = vmatpush1.msra.mxu0 0.0
    %1553 = vmatprep.subr.mxu0 0.0
    %1554 = vmatpush1.msra.mxu0 0.0
    %1555 = vmatprep.subr.mxu0 0.0
    %1556 = vmatpush1.msra.mxu0 0.0
    %1557 = vmatprep.subr.mxu0 0.0
    %1558 = vmatpush1.msra.mxu0 0.0
    %1559 = vmatprep.subr.mxu0 0.0
    %1560 = vmatpush1.msra.mxu0 0.0
    %1561 = vmatprep.subr.mxu0 0.0
    %1562 = vmatpush1.msra.mxu0 0.0
    %1563 = vmatprep.mubr.f32.mxu0 0.0
    %1564 = vmatmul.mubr.f32.gmra.mrb[0].mxu0 %v1447
    %v1565 = vpop.f32.mrb[0].mxu0
    %v1566 = vadd.f32 0.0, %v1565
    %v1567 = vpop.f32.mrb[0].mxu0
    %v1568 = vadd.f32 0.0, %v1567
    %1569 = vmatprep.mubr.f32.mxu0 0.0
    %1570 = vmatmul.mubr.f32.gmra.mrb[0].mxu0 %v1448
    %v1571 = vpop.f32.mrb[0].mxu0
    %v1572 = vadd.f32 0.0, %v1571
    %v1573 = vpop.f32.mrb[0].mxu0
    %v1574 = vadd.f32 0.0, %v1573
    %1575 = vmatprep.mubr.f32.mxu0 0.0
    %1576 = vmatmul.mubr.f32.gmra.mrb[0].mxu0 %v1449
    %v1577 = vpop.f32.mrb[0].mxu0
    %v1578 = vadd.f32 0.0, %v1577
    %v1579 = vpop.f32.mrb[0].mxu0
    %v1580 = vadd.f32 0.0, %v1579
    %1581 = vmatprep.mubr.f32.mxu0 0.0
    %1582 = vmatmul.mubr.f32.gmra.mrb[0].mxu0 %v1450
    %v1583 = vpop.f32.mrb[0].mxu0
    %v1584 = vadd.f32 0.0, %v1583
    %v1585 = vpop.f32.mrb[0].mxu0
    %v1586 = vadd.f32 0.0, %v1585
    %1587 = vdwg.mxu0
    %v1588 = vadd.f32 %v1455, %v1566
    %v1589 = vadd.f32 %v1456, %v1568
    %v1590 = vadd.f32 %v1458, %v1572
    %v1591 = vadd.f32 %v1459, %v1574
    %v1592 = vadd.f32 %v1461, %v1578
    %v1593 = vadd.f32 %v1462, %v1580
    %v1594 = vadd.f32 %v1464, %v1584
    %v1595 = vadd.f32 %v1465, %v1586
    %v1596 = vxor.u32 %v1588, 2147483648
    %v1597 = vxor.u32 %v1589, 2147483648
    %v1598 = vxor.u32 %v1590, 2147483648
    %v1599 = vxor.u32 %v1591, 2147483648
    %v1600 = vxor.u32 %v1592, 2147483648
    %v1601 = vxor.u32 %v1593, 2147483648
    %v1602 = vxor.u32 %v1594, 2147483648
    %v1603 = vxor.u32 %v1595, 2147483648
    %v1604 = vmul.f32 %v1596, 1.442695
    %v1605 = vpow.pop %v1604
    %v1606 = vmul.f32 %v1597, 1.442695
    %v1607 = vpow.pop %v1606
    %v1608 = vmul.f32 %v1598, 1.442695
    %v1609 = vpow.pop %v1608
    %v1610 = vmul.f32 %v1599, 1.442695
    %v1611 = vpow.pop %v1610
    %v1612 = vmul.f32 %v1600, 1.442695
    %v1613 = vpow.pop %v1612
    %v1614 = vmul.f32 %v1601, 1.442695
    %v1615 = vpow.pop %v1614
    %v1616 = vmul.f32 %v1602, 1.442695
    %v1617 = vpow.pop %v1616
    %v1618 = vmul.f32 %v1603, 1.442695
    %v1619 = vpow.pop %v1618
    %v1620 = vadd.f32 %v1605, 1.0
    %v1621 = vadd.f32 %v1607, 1.0
    %v1622 = vadd.f32 %v1609, 1.0
    %v1623 = vadd.f32 %v1611, 1.0
    %v1624 = vadd.f32 %v1613, 1.0
    %v1625 = vadd.f32 %v1615, 1.0
    %v1626 = vadd.f32 %v1617, 1.0
    %v1627 = vadd.f32 %v1619, 1.0
    %v1628 = vrcp.pop %v1620
    %v1629 = vmul.f32 1.0, %v1628
    %v1630 = vrcp.pop %v1621
    %v1631 = vmul.f32 1.0, %v1630
    %v1632 = vrcp.pop %v1622
    %v1633 = vmul.f32 1.0, %v1632
    %v1634 = vrcp.pop %v1623
    %v1635 = vmul.f32 1.0, %v1634
    %v1636 = vrcp.pop %v1624
    %v1637 = vmul.f32 1.0, %v1636
    %v1638 = vrcp.pop %v1625
    %v1639 = vmul.f32 1.0, %v1638
    %v1640 = vrcp.pop %v1626
    %v1641 = vmul.f32 1.0, %v1640
    %v1642 = vrcp.pop %v1627
    %v1643 = vmul.f32 1.0, %v1642
    %v1644 = vmul.f32 %v1629, %v1447
    %v1645 = vmul.f32 %v1633, %v1448
    %v1646 = vmul.f32 %v1637, %v1449
    %v1647 = vmul.f32 %v1641, %v1450
    %v1648 = vld [vmem:[#allocation6] sm:$0xff]
    %v1649 = vld [vmem:[#allocation6 + $0x8] sm:$0xff]
    %v1650 = vld [vmem:[#allocation6 + $0x10] sm:$0xff]
    %v1651 = vld [vmem:[#allocation6 + $0x18] sm:$0xff]
    %v1652 = vld [vmem:[#allocation6 + $0x20] sm:$0xff]
    %v1653 = vld [vmem:[#allocation6 + $0x28] sm:$0xff]
    %v1654 = vld [vmem:[#allocation6 + $0x30] sm:$0xff]
    %v1655 = vld [vmem:[#allocation6 + $0x38] sm:$0xff]
    %v1656 = vld [vmem:[#allocation6 + $0x40] sm:$0xff]
    %v1657 = vld [vmem:[#allocation6 + $0x48] sm:$0xff]
    %v1658 = vld [vmem:[#allocation6 + $0x50] sm:$0xff]
    %v1659 = vld [vmem:[#allocation6 + $0x58] sm:$0xff]
    %v1660 = vld [vmem:[#allocation6 + $0x60] sm:$0xff]
    %v1661 = vld [vmem:[#allocation6 + $0x68] sm:$0xff]
    %v1662 = vld [vmem:[#allocation6 + $0x70] sm:$0xff]
    %v1663 = vld [vmem:[#allocation6 + $0x78] sm:$0xff]
    %1664 = vmatprep.subr.mxu0 0.0
    %1665 = vmatpush1.msra.mxu0 %v1648
    %1666 = vmatprep.subr.mxu0 0.0
    %1667 = vmatpush1.msra.mxu0 %v1649
    %1668 = vmatprep.subr.mxu0 0.0
    %1669 = vmatpush1.msra.mxu0 %v1650
    %1670 = vmatprep.subr.mxu0 0.0
    %1671 = vmatpush1.msra.mxu0 %v1651
    %1672 = vmatprep.subr.mxu0 0.0
    %1673 = vmatpush1.msra.mxu0 %v1652
    %1674 = vmatprep.subr.mxu0 0.0
    %1675 = vmatpush1.msra.mxu0 %v1653
    %1676 = vmatprep.subr.mxu0 0.0
    %1677 = vmatpush1.msra.mxu0 %v1654
    %1678 = vmatprep.subr.mxu0 0.0
    %1679 = vmatpush1.msra.mxu0 %v1655
    %1680 = vmatprep.subr.mxu0 0.0
    %1681 = vmatpush1.msra.mxu0 %v1656
    %1682 = vmatprep.subr.mxu0 0.0
    %1683 = vmatpush1.msra.mxu0 %v1657
    %1684 = vmatprep.subr.mxu0 0.0
    %1685 = vmatpush1.msra.mxu0 %v1658
    %1686 = vmatprep.subr.mxu0 0.0
    %1687 = vmatpush1.msra.mxu0 %v1659
    %1688 = vmatprep.subr.mxu0 0.0
    %1689 = vmatpush1.msra.mxu0 %v1660
    %1690 = vmatprep.subr.mxu0 0.0
    %1691 = vmatpush1.msra.mxu0 %v1661
    %1692 = vmatprep.subr.mxu0 0.0
    %1693 = vmatpush1.msra.mxu0 %v1662
    %1694 = vmatprep.subr.mxu0 0.0
    %1695 = vmatpush1.msra.mxu0 %v1663
    %1696 = vmatprep.subr.mxu0 0.0
    %1697 = vmatpush1.msra.mxu0 0.0
    %1698 = vmatprep.subr.mxu0 0.0
    %1699 = vmatpush1.msra.mxu0 0.0
    %1700 = vmatprep.subr.mxu0 0.0
    %1701 = vmatpush1.msra.mxu0 0.0
    %1702 = vmatprep.subr.mxu0 0.0
    %1703 = vmatpush1.msra.mxu0 0.0
    %1704 = vmatprep.subr.mxu0 0.0
    %1705 = vmatpush1.msra.mxu0 0.0
    %1706 = vmatprep.subr.mxu0 0.0
    %1707 = vmatpush1.msra.mxu0 0.0
    %1708 = vmatprep.subr.mxu0 0.0
    %1709 = vmatpush1.msra.mxu0 0.0
    %1710 = vmatprep.subr.mxu0 0.0
    %1711 = vmatpush1.msra.mxu0 0.0
    %1712 = vmatprep.subr.mxu0 0.0
    %1713 = vmatpush1.msra.mxu0 0.0
    %1714 = vmatprep.subr.mxu0 0.0
    %1715 = vmatpush1.msra.mxu0 0.0
    %1716 = vmatprep.subr.mxu0 0.0
    %1717 = vmatpush1.msra.mxu0 0.0
    %1718 = vmatprep.subr.mxu0 0.0
    %1719 = vmatpush1.msra.mxu0 0.0
    %1720 = vmatprep.subr.mxu0 0.0
    %1721 = vmatpush1.msra.mxu0 0.0
    %1722 = vmatprep.subr.mxu0 0.0
    %1723 = vmatpush1.msra.mxu0 0.0
    %1724 = vmatprep.subr.mxu0 0.0
    %1725 = vmatpush1.msra.mxu0 0.0
    %1726 = vmatprep.subr.mxu0 0.0
    %1727 = vmatpush1.msra.mxu0 0.0
    %1728 = vmatprep.mubr.f32.mxu0 0.0
    %1729 = vmatmul.mubr.f32.gmra.mrb[0].mxu0 %v1644
    %v1730 = vpop.f32.mrb[0].mxu0
    %v1731 = vadd.f32 0.0, %v1730
    %v1732 = vpop.f32.mrb[0].mxu0
    %1733 = vmatprep.mubr.f32.mxu0 0.0
    %1734 = vmatmul.mubr.f32.gmra.mrb[0].mxu0 %v1645
    %v1735 = vpop.f32.mrb[0].mxu0
    %v1736 = vadd.f32 0.0, %v1735
    %v1737 = vpop.f32.mrb[0].mxu0
    %1738 = vmatprep.mubr.f32.mxu0 0.0
    %1739 = vmatmul.mubr.f32.gmra.mrb[0].mxu0 %v1646
    %v1740 = vpop.f32.mrb[0].mxu0
    %v1741 = vadd.f32 0.0, %v1740
    %v1742 = vpop.f32.mrb[0].mxu0
    %1743 = vmatprep.mubr.f32.mxu0 0.0
    %1744 = vmatmul.mubr.f32.gmra.mrb[0].mxu0 %v1647
    %v1745 = vpop.f32.mrb[0].mxu0
    %v1746 = vadd.f32 0.0, %v1745
    %v1747 = vpop.f32.mrb[0].mxu0
    %1748 = vdwg.mxu0
    %v1749 = vadd.f32 %v1457, %v1731
    %v1750 = vadd.f32 %v1460, %v1736
    %v1751 = vadd.f32 %v1463, %v1741
    %v1752 = vadd.f32 %v1466, %v1746
    %v1753 = vtanh.pop %v1749
    %v1754 = vtanh.pop %v1750
    %v1755 = vtanh.pop %v1751
    %v1756 = vtanh.pop %v1752
    %v1757 = vmul.f32 %v1631, %v1447
    %v1758 = vmul.f32 %v1635, %v1448
    %v1759 = vmul.f32 %v1639, %v1449
    %v1760 = vmul.f32 %v1643, %v1450
    %v1761 = vsub.f32 1.0, %v1631
    %v1762 = vsub.f32 1.0, %v1635
    %v1763 = vsub.f32 1.0, %v1639
    %v1764 = vsub.f32 1.0, %v1643
    %v1765 = vmul.f32 %v1761, %v1753
    %v1766 = vmul.f32 %v1762, %v1754
    %v1767 = vmul.f32 %v1763, %v1755
    %v1768 = vmul.f32 %v1764, %v1756
    %v1769 = vadd.f32 %v1757, %v1765
    %v1770 = vadd.f32 %v1758, %v1766
    %v1771 = vadd.f32 %v1759, %v1767
    %v1772 = vadd.f32 %v1760, %v1768
    %1773 = vst [vmem:[#allocation9 + $0x40] sm:$0xff] %v1769
    %1774 = vst [vmem:[#allocation9 + $0x48] sm:$0xff] %v1770
    %1775 = vst [vmem:[#allocation9 + $0x50] sm:$0xff] %v1771
    %1776 = vst [vmem:[#allocation9 + $0x58] sm:$0xff] %v1772
    %v1777 = vld [vmem:[#allocation2 + $0x90] sm:$0xff]
    %v1778 = vld [vmem:[#allocation2 + $0x98] sm:$0xff]
    %v1779 = vld [vmem:[#allocation2 + $0xa0] sm:$0xff]
    %v1780 = vld [vmem:[#allocation2 + $0xa8] sm:$0xff]
    %v1781 = vld [vmem:[#allocation2 + $0xb0] sm:$0xff]
    %v1782 = vld [vmem:[#allocation2 + $0xb8] sm:$0xff]
    %v1783 = vld [vmem:[#allocation2 + $0x210] sm:$0xff]
    %v1784 = vld [vmem:[#allocation2 + $0x218] sm:$0xff]
    %v1785 = vld [vmem:[#allocation2 + $0x220] sm:$0xff]
    %v1786 = vld [vmem:[#allocation2 + $0x228] sm:$0xff]
    %v1787 = vld [vmem:[#allocation2 + $0x230] sm:$0xff]
    %v1788 = vld [vmem:[#allocation2 + $0x238] sm:$0xff]
    %v1789 = vld [vmem:[%s4] sm:$0xff]
    %v1790 = vld [vmem:[%s4 + $0x8] sm:$0xff]
    %v1791 = vld [vmem:[%s4 + $0x10] sm:$0xff]
    %v1792 = vld [vmem:[%s4 + $0x18] sm:$0xff]
    %v1793 = vld [vmem:[%s4 + $0x20] sm:$0xff]
    %v1794 = vld [vmem:[%s4 + $0x28] sm:$0xff]
    %v1795 = vld [vmem:[%s4 + $0x30] sm:$0xff]
    %v1796 = vld [vmem:[%s4 + $0x38] sm:$0xff]
    %v1797 = vld [vmem:[%s4 + $0x40] sm:$0xff]
    %v1798 = vld [vmem:[%s4 + $0x48] sm:$0xff]
    %v1799 = vld [vmem:[%s4 + $0x50] sm:$0xff]
    %v1800 = vld [vmem:[%s4 + $0x58] sm:$0xff]
    %v1801 = vld [vmem:[%s4 + $0x60] sm:$0xff]
    %v1802 = vld [vmem:[%s4 + $0x68] sm:$0xff]
    %v1803 = vld [vmem:[%s4 + $0x70] sm:$0xff]
    %v1804 = vld [vmem:[%s4 + $0x78] sm:$0xff]
    %v1805 = vld [vmem:[%s4 + $0x80] sm:$0xff]
    %v1806 = vld [vmem:[%s4 + $0x88] sm:$0xff]
    %v1807 = vld [vmem:[%s4 + $0x90] sm:$0xff]
    %v1808 = vld [vmem:[%s4 + $0x98] sm:$0xff]
    %v1809 = vld [vmem:[%s4 + $0xa0] sm:$0xff]
    %v1810 = vld [vmem:[%s4 + $0xa8] sm:$0xff]
    %v1811 = vld [vmem:[%s4 + $0xb0] sm:$0xff]
    %v1812 = vld [vmem:[%s4 + $0xb8] sm:$0xff]
    %v1813 = vld [vmem:[%s4 + $0xc0] sm:$0xff]
    %v1814 = vld [vmem:[%s4 + $0xc8] sm:$0xff]
    %v1815 = vld [vmem:[%s4 + $0xd0] sm:$0xff]
    %v1816 = vld [vmem:[%s4 + $0xd8] sm:$0xff]
    %v1817 = vld [vmem:[%s4 + $0xe0] sm:$0xff]
    %v1818 = vld [vmem:[%s4 + $0xe8] sm:$0xff]
    %v1819 = vld [vmem:[%s4 + $0xf0] sm:$0xff]
    %v1820 = vld [vmem:[%s4 + $0xf8] sm:$0xff]
    %1821 = vmatprep.subr.mxu0 %v1790
    %1822 = vmatpush1.msra.mxu0 %v1789
    %1823 = vmatprep.subr.mxu0 %v1792
    %1824 = vmatpush1.msra.mxu0 %v1791
    %1825 = vmatprep.subr.mxu0 %v1794
    %1826 = vmatpush1.msra.mxu0 %v1793
    %1827 = vmatprep.subr.mxu0 %v1796
    %1828 = vmatpush1.msra.mxu0 %v1795
    %1829 = vmatprep.subr.mxu0 %v1798
    %1830 = vmatpush1.msra.mxu0 %v1797
    %1831 = vmatprep.subr.mxu0 %v1800
    %1832 = vmatpush1.msra.mxu0 %v1799
    %1833 = vmatprep.subr.mxu0 %v1802
    %1834 = vmatpush1.msra.mxu0 %v1801
    %1835 = vmatprep.subr.mxu0 %v1804
    %1836 = vmatpush1.msra.mxu0 %v1803
    %1837 = vmatprep.subr.mxu0 %v1806
    %1838 = vmatpush1.msra.mxu0 %v1805
    %1839 = vmatprep.subr.mxu0 %v1808
    %1840 = vmatpush1.msra.mxu0 %v1807
    %1841 = vmatprep.subr.mxu0 %v1810
    %1842 = vmatpush1.msra.mxu0 %v1809
    %1843 = vmatprep.subr.mxu0 %v1812
    %1844 = vmatpush1.msra.mxu0 %v1811
    %1845 = vmatprep.subr.mxu0 %v1814
    %1846 = vmatpush1.msra.mxu0 %v1813
    %1847 = vmatprep.subr.mxu0 %v1816
    %1848 = vmatpush1.msra.mxu0 %v1815
    %1849 = vmatprep.subr.mxu0 %v1818
    %1850 = vmatpush1.msra.mxu0 %v1817
    %1851 = vmatprep.subr.mxu0 %v1820
    %1852 = vmatpush1.msra.mxu0 %v1819
    %1853 = vmatprep.subr.mxu0 0.0
    %1854 = vmatpush1.msra.mxu0 0.0
    %1855 = vmatprep.subr.mxu0 0.0
    %1856 = vmatpush1.msra.mxu0 0.0
    %1857 = vmatprep.subr.mxu0 0.0
    %1858 = vmatpush1.msra.mxu0 0.0
    %1859 = vmatprep.subr.mxu0 0.0
    %1860 = vmatpush1.msra.mxu0 0.0
    %1861 = vmatprep.subr.mxu0 0.0
    %1862 = vmatpush1.msra.mxu0 0.0
    %1863 = vmatprep.subr.mxu0 0.0
    %1864 = vmatpush1.msra.mxu0 0.0
    %1865 = vmatprep.subr.mxu0 0.0
    %1866 = vmatpush1.msra.mxu0 0.0
    %1867 = vmatprep.subr.mxu0 0.0
    %1868 = vmatpush1.msra.mxu0 0.0
    %1869 = vmatprep.subr.mxu0 0.0
    %1870 = vmatpush1.msra.mxu0 0.0
    %1871 = vmatprep.subr.mxu0 0.0
    %1872 = vmatpush1.msra.mxu0 0.0
    %1873 = vmatprep.subr.mxu0 0.0
    %1874 = vmatpush1.msra.mxu0 0.0
    %1875 = vmatprep.subr.mxu0 0.0
    %1876 = vmatpush1.msra.mxu0 0.0
    %1877 = vmatprep.subr.mxu0 0.0
    %1878 = vmatpush1.msra.mxu0 0.0
    %1879 = vmatprep.subr.mxu0 0.0
    %1880 = vmatpush1.msra.mxu0 0.0
    %1881 = vmatprep.subr.mxu0 0.0
    %1882 = vmatpush1.msra.mxu0 0.0
    %1883 = vmatprep.subr.mxu0 0.0
    %1884 = vmatpush1.msra.mxu0 0.0
    %1885 = vmatprep.mubr.f32.mxu0 0.0
    %1886 = vmatmul.mubr.f32.gmra.mrb[0].mxu0 %v1769
    %v1887 = vpop.f32.mrb[0].mxu0
    %v1888 = vadd.f32 0.0, %v1887
    %v1889 = vpop.f32.mrb[0].mxu0
    %v1890 = vadd.f32 0.0, %v1889
    %1891 = vmatprep.mubr.f32.mxu0 0.0
    %1892 = vmatmul.mubr.f32.gmra.mrb[0].mxu0 %v1770
    %v1893 = vpop.f32.mrb[0].mxu0
    %v1894 = vadd.f32 0.0, %v1893
    %v1895 = vpop.f32.mrb[0].mxu0
    %v1896 = vadd.f32 0.0, %v1895
    %1897 = vmatprep.mubr.f32.mxu0 0.0
    %1898 = vmatmul.mubr.f32.gmra.mrb[0].mxu0 %v1771
    %v1899 = vpop.f32.mrb[0].mxu0
    %v1900 = vadd.f32 0.0, %v1899
    %v1901 = vpop.f32.mrb[0].mxu0
    %v1902 = vadd.f32 0.0, %v1901
    %1903 = vmatprep.mubr.f32.mxu0 0.0
    %1904 = vmatmul.mubr.f32.gmra.mrb[0].mxu0 %v1772
    %v1905 = vpop.f32.mrb[0].mxu0
    %v1906 = vadd.f32 0.0, %v1905
    %v1907 = vpop.f32.mrb[0].mxu0
    %v1908 = vadd.f32 0.0, %v1907
    %1909 = vdwg.mxu0
    %v1910 = vadd.f32 %v1777, %v1888
    %v1911 = vadd.f32 %v1778, %v1890
    %v1912 = vadd.f32 %v1780, %v1894
    %v1913 = vadd.f32 %v1781, %v1896
    %v1914 = vadd.f32 %v1783, %v1900
    %v1915 = vadd.f32 %v1784, %v1902
    %v1916 = vadd.f32 %v1786, %v1906
    %v1917 = vadd.f32 %v1787, %v1908
    %v1918 = vxor.u32 %v1910, 2147483648
    %v1919 = vxor.u32 %v1911, 2147483648
    %v1920 = vxor.u32 %v1912, 2147483648
    %v1921 = vxor.u32 %v1913, 2147483648
    %v1922 = vxor.u32 %v1914, 2147483648
    %v1923 = vxor.u32 %v1915, 2147483648
    %v1924 = vxor.u32 %v1916, 2147483648
    %v1925 = vxor.u32 %v1917, 2147483648
    %v1926 = vmul.f32 %v1918, 1.442695
    %v1927 = vpow.pop %v1926
    %v1928 = vmul.f32 %v1919, 1.442695
    %v1929 = vpow.pop %v1928
    %v1930 = vmul.f32 %v1920, 1.442695
    %v1931 = vpow.pop %v1930
    %v1932 = vmul.f32 %v1921, 1.442695
    %v1933 = vpow.pop %v1932
    %v1934 = vmul.f32 %v1922, 1.442695
    %v1935 = vpow.pop %v1934
    %v1936 = vmul.f32 %v1923, 1.442695
    %v1937 = vpow.pop %v1936
    %v1938 = vmul.f32 %v1924, 1.442695
    %v1939 = vpow.pop %v1938
    %v1940 = vmul.f32 %v1925, 1.442695
    %v1941 = vpow.pop %v1940
    %v1942 = vadd.f32 %v1927, 1.0
    %v1943 = vadd.f32 %v1929, 1.0
    %v1944 = vadd.f32 %v1931, 1.0
    %v1945 = vadd.f32 %v1933, 1.0
    %v1946 = vadd.f32 %v1935, 1.0
    %v1947 = vadd.f32 %v1937, 1.0
    %v1948 = vadd.f32 %v1939, 1.0
    %v1949 = vadd.f32 %v1941, 1.0
    %v1950 = vrcp.pop %v1942
    %v1951 = vmul.f32 1.0, %v1950
    %v1952 = vrcp.pop %v1943
    %v1953 = vmul.f32 1.0, %v1952
    %v1954 = vrcp.pop %v1944
    %v1955 = vmul.f32 1.0, %v1954
    %v1956 = vrcp.pop %v1945
    %v1957 = vmul.f32 1.0, %v1956
    %v1958 = vrcp.pop %v1946
    %v1959 = vmul.f32 1.0, %v1958
    %v1960 = vrcp.pop %v1947
    %v1961 = vmul.f32 1.0, %v1960
    %v1962 = vrcp.pop %v1948
    %v1963 = vmul.f32 1.0, %v1962
    %v1964 = vrcp.pop %v1949
    %v1965 = vmul.f32 1.0, %v1964
    %v1966 = vmul.f32 %v1951, %v1769
    %v1967 = vmul.f32 %v1955, %v1770
    %v1968 = vmul.f32 %v1959, %v1771
    %v1969 = vmul.f32 %v1963, %v1772
    %v1970 = vld [vmem:[#allocation6] sm:$0xff]
    %v1971 = vld [vmem:[#allocation6 + $0x8] sm:$0xff]
    %v1972 = vld [vmem:[#allocation6 + $0x10] sm:$0xff]
    %v1973 = vld [vmem:[#allocation6 + $0x18] sm:$0xff]
    %v1974 = vld [vmem:[#allocation6 + $0x20] sm:$0xff]
    %v1975 = vld [vmem:[#allocation6 + $0x28] sm:$0xff]
    %v1976 = vld [vmem:[#allocation6 + $0x30] sm:$0xff]
    %v1977 = vld [vmem:[#allocation6 + $0x38] sm:$0xff]
    %v1978 = vld [vmem:[#allocation6 + $0x40] sm:$0xff]
    %v1979 = vld [vmem:[#allocation6 + $0x48] sm:$0xff]
    %v1980 = vld [vmem:[#allocation6 + $0x50] sm:$0xff]
    %v1981 = vld [vmem:[#allocation6 + $0x58] sm:$0xff]
    %v1982 = vld [vmem:[#allocation6 + $0x60] sm:$0xff]
    %v1983 = vld [vmem:[#allocation6 + $0x68] sm:$0xff]
    %v1984 = vld [vmem:[#allocation6 + $0x70] sm:$0xff]
    %v1985 = vld [vmem:[#allocation6 + $0x78] sm:$0xff]
    %1986 = vmatprep.subr.mxu0 0.0
    %1987 = vmatpush1.msra.mxu0 %v1970
    %1988 = vmatprep.subr.mxu0 0.0
    %1989 = vmatpush1.msra.mxu0 %v1971
    %1990 = vmatprep.subr.mxu0 0.0
    %1991 = vmatpush1.msra.mxu0 %v1972
    %1992 = vmatprep.subr.mxu0 0.0
    %1993 = vmatpush1.msra.mxu0 %v1973
    %1994 = vmatprep.subr.mxu0 0.0
    %1995 = vmatpush1.msra.mxu0 %v1974
    %1996 = vmatprep.subr.mxu0 0.0
    %1997 = vmatpush1.msra.mxu0 %v1975
    %1998 = vmatprep.subr.mxu0 0.0
    %1999 = vmatpush1.msra.mxu0 %v1976
    %2000 = vmatprep.subr.mxu0 0.0
    %2001 = vmatpush1.msra.mxu0 %v1977
    %2002 = vmatprep.subr.mxu0 0.0
    %2003 = vmatpush1.msra.mxu0 %v1978
    %2004 = vmatprep.subr.mxu0 0.0
    %2005 = vmatpush1.msra.mxu0 %v1979
    %2006 = vmatprep.subr.mxu0 0.0
    %2007 = vmatpush1.msra.mxu0 %v1980
    %2008 = vmatprep.subr.mxu0 0.0
    %2009 = vmatpush1.msra.mxu0 %v1981
    %2010 = vmatprep.subr.mxu0 0.0
    %2011 = vmatpush1.msra.mxu0 %v1982
    %2012 = vmatprep.subr.mxu0 0.0
    %2013 = vmatpush1.msra.mxu0 %v1983
    %2014 = vmatprep.subr.mxu0 0.0
    %2015 = vmatpush1.msra.mxu0 %v1984
    %2016 = vmatprep.subr.mxu0 0.0
    %2017 = vmatpush1.msra.mxu0 %v1985
    %2018 = vmatprep.subr.mxu0 0.0
    %2019 = vmatpush1.msra.mxu0 0.0
    %2020 = vmatprep.subr.mxu0 0.0
    %2021 = vmatpush1.msra.mxu0 0.0
    %2022 = vmatprep.subr.mxu0 0.0
    %2023 = vmatpush1.msra.mxu0 0.0
    %2024 = vmatprep.subr.mxu0 0.0
    %2025 = vmatpush1.msra.mxu0 0.0
    %2026 = vmatprep.subr.mxu0 0.0
    %2027 = vmatpush1.msra.mxu0 0.0
    %2028 = vmatprep.subr.mxu0 0.0
    %2029 = vmatpush1.msra.mxu0 0.0
    %2030 = vmatprep.subr.mxu0 0.0
    %2031 = vmatpush1.msra.mxu0 0.0
    %2032 = vmatprep.subr.mxu0 0.0
    %2033 = vmatpush1.msra.mxu0 0.0
    %2034 = vmatprep.subr.mxu0 0.0
    %2035 = vmatpush1.msra.mxu0 0.0
    %2036 = vmatprep.subr.mxu0 0.0
    %2037 = vmatpush1.msra.mxu0 0.0
    %2038 = vmatprep.subr.mxu0 0.0
    %2039 = vmatpush1.msra.mxu0 0.0
    %2040 = vmatprep.subr.mxu0 0.0
    %2041 = vmatpush1.msra.mxu0 0.0
    %2042 = vmatprep.subr.mxu0 0.0
    %2043 = vmatpush1.msra.mxu0 0.0
    %2044 = vmatprep.subr.mxu0 0.0
    %2045 = vmatpush1.msra.mxu0 0.0
    %2046 = vmatprep.subr.mxu0 0.0
    %2047 = vmatpush1.msra.mxu0 0.0
    %2048 = vmatprep.subr.mxu0 0.0
    %2049 = vmatpush1.msra.mxu0 0.0
    %2050 = vmatprep.mubr.f32.mxu0 0.0
    %2051 = vmatmul.mubr.f32.gmra.mrb[0].mxu0 %v1966
    %v2052 = vpop.f32.mrb[0].mxu0
    %v2053 = vadd.f32 0.0, %v2052
    %v2054 = vpop.f32.mrb[0].mxu0
    %2055 = vmatprep.mubr.f32.mxu0 0.0
    %2056 = vmatmul.mubr.f32.gmra.mrb[0].mxu0 %v1967
    %v2057 = vpop.f32.mrb[0].mxu0
    %v2058 = vadd.f32 0.0, %v2057
    %v2059 = vpop.f32.mrb[0].mxu0
    %2060 = vmatprep.mubr.f32.mxu0 0.0
    %2061 = vmatmul.mubr.f32.gmra.mrb[0].mxu0 %v1968
    %v2062 = vpop.f32.mrb[0].mxu0
    %v2063 = vadd.f32 0.0, %v2062
    %v2064 = vpop.f32.mrb[0].mxu0
    %2065 = vmatprep.mubr.f32.mxu0 0.0
    %2066 = vmatmul.mubr.f32.gmra.mrb[0].mxu0 %v1969
    %v2067 = vpop.f32.mrb[0].mxu0
    %v2068 = vadd.f32 0.0, %v2067
    %v2069 = vpop.f32.mrb[0].mxu0
    %2070 = vdwg.mxu0
    %v2071 = vadd.f32 %v1779, %v2053
    %v2072 = vadd.f32 %v1782, %v2058
    %v2073 = vadd.f32 %v1785, %v2063
    %v2074 = vadd.f32 %v1788, %v2068
    %v2075 = vtanh.pop %v2071
    %v2076 = vtanh.pop %v2072
    %v2077 = vtanh.pop %v2073
    %v2078 = vtanh.pop %v2074
    %v2079 = vmul.f32 %v1953, %v1769
    %v2080 = vmul.f32 %v1957, %v1770
    %v2081 = vmul.f32 %v1961, %v1771
    %v2082 = vmul.f32 %v1965, %v1772
    %v2083 = vsub.f32 1.0, %v1953
    %v2084 = vsub.f32 1.0, %v1957
    %v2085 = vsub.f32 1.0, %v1961
    %v2086 = vsub.f32 1.0, %v1965
    %v2087 = vmul.f32 %v2083, %v2075
    %v2088 = vmul.f32 %v2084, %v2076
    %v2089 = vmul.f32 %v2085, %v2077
    %v2090 = vmul.f32 %v2086, %v2078
    %v2091 = vadd.f32 %v2079, %v2087
    %v2092 = vadd.f32 %v2080, %v2088
    %v2093 = vadd.f32 %v2081, %v2089
    %v2094 = vadd.f32 %v2082, %v2090
    %2095 = vst [vmem:[#allocation9 + $0x60] sm:$0xff] %v2091
    %2096 = vst [vmem:[#allocation9 + $0x68] sm:$0xff] %v2092
    %2097 = vst [vmem:[#allocation9 + $0x70] sm:$0xff] %v2093
    %2098 = vst [vmem:[#allocation9 + $0x78] sm:$0xff] %v2094
    %v2099 = vld [vmem:[#allocation2 + $0xc0] sm:$0xff]
    %v2100 = vld [vmem:[#allocation2 + $0xc8] sm:$0xff]
    %v2101 = vld [vmem:[#allocation2 + $0xd0] sm:$0xff]
    %v2102 = vld [vmem:[#allocation2 + $0xd8] sm:$0xff]
    %v2103 = vld [vmem:[#allocation2 + $0xe0] sm:$0xff]
    %v2104 = vld [vmem:[#allocation2 + $0xe8] sm:$0xff]
    %v2105 = vld [vmem:[#allocation2 + $0x240] sm:$0xff]
    %v2106 = vld [vmem:[#allocation2 + $0x248] sm:$0xff]
    %v2107 = vld [vmem:[#allocation2 + $0x250] sm:$0xff]
    %v2108 = vld [vmem:[#allocation2 + $0x258] sm:$0xff]
    %v2109 = vld [vmem:[#allocation2 + $0x260] sm:$0xff]
    %v2110 = vld [vmem:[#allocation2 + $0x268] sm:$0xff]
    %v2111 = vld [vmem:[%s4] sm:$0xff]
    %v2112 = vld [vmem:[%s4 + $0x8] sm:$0xff]
    %v2113 = vld [vmem:[%s4 + $0x10] sm:$0xff]
    %v2114 = vld [vmem:[%s4 + $0x18] sm:$0xff]
    %v2115 = vld [vmem:[%s4 + $0x20] sm:$0xff]
    %v2116 = vld [vmem:[%s4 + $0x28] sm:$0xff]
    %v2117 = vld [vmem:[%s4 + $0x30] sm:$0xff]
    %v2118 = vld [vmem:[%s4 + $0x38] sm:$0xff]
    %v2119 = vld [vmem:[%s4 + $0x40] sm:$0xff]
    %v2120 = vld [vmem:[%s4 + $0x48] sm:$0xff]
    %v2121 = vld [vmem:[%s4 + $0x50] sm:$0xff]
    %v2122 = vld [vmem:[%s4 + $0x58] sm:$0xff]
    %v2123 = vld [vmem:[%s4 + $0x60] sm:$0xff]
    %v2124 = vld [vmem:[%s4 + $0x68] sm:$0xff]
    %v2125 = vld [vmem:[%s4 + $0x70] sm:$0xff]
    %v2126 = vld [vmem:[%s4 + $0x78] sm:$0xff]
    %v2127 = vld [vmem:[%s4 + $0x80] sm:$0xff]
    %v2128 = vld [vmem:[%s4 + $0x88] sm:$0xff]
    %v2129 = vld [vmem:[%s4 + $0x90] sm:$0xff]
    %v2130 = vld [vmem:[%s4 + $0x98] sm:$0xff]
    %v2131 = vld [vmem:[%s4 + $0xa0] sm:$0xff]
    %v2132 = vld [vmem:[%s4 + $0xa8] sm:$0xff]
    %v2133 = vld [vmem:[%s4 + $0xb0] sm:$0xff]
    %v2134 = vld [vmem:[%s4 + $0xb8] sm:$0xff]
    %v2135 = vld [vmem:[%s4 + $0xc0] sm:$0xff]
    %v2136 = vld [vmem:[%s4 + $0xc8] sm:$0xff]
    %v2137 = vld [vmem:[%s4 + $0xd0] sm:$0xff]
    %v2138 = vld [vmem:[%s4 + $0xd8] sm:$0xff]
    %v2139 = vld [vmem:[%s4 + $0xe0] sm:$0xff]
    %v2140 = vld [vmem:[%s4 + $0xe8] sm:$0xff]
    %v2141 = vld [vmem:[%s4 + $0xf0] sm:$0xff]
    %v2142 = vld [vmem:[%s4 + $0xf8] sm:$0xff]
    %2143 = vmatprep.subr.mxu0 %v2112
    %2144 = vmatpush1.msra.mxu0 %v2111
    %2145 = vmatprep.subr.mxu0 %v2114
    %2146 = vmatpush1.msra.mxu0 %v2113
    %2147 = vmatprep.subr.mxu0 %v2116
    %2148 = vmatpush1.msra.mxu0 %v2115
    %2149 = vmatprep.subr.mxu0 %v2118
    %2150 = vmatpush1.msra.mxu0 %v2117
    %2151 = vmatprep.subr.mxu0 %v2120
    %2152 = vmatpush1.msra.mxu0 %v2119
    %2153 = vmatprep.subr.mxu0 %v2122
    %2154 = vmatpush1.msra.mxu0 %v2121
    %2155 = vmatprep.subr.mxu0 %v2124
    %2156 = vmatpush1.msra.mxu0 %v2123
    %2157 = vmatprep.subr.mxu0 %v2126
    %2158 = vmatpush1.msra.mxu0 %v2125
    %2159 = vmatprep.subr.mxu0 %v2128
    %2160 = vmatpush1.msra.mxu0 %v2127
    %2161 = vmatprep.subr.mxu0 %v2130
    %2162 = vmatpush1.msra.mxu0 %v2129
    %2163 = vmatprep.subr.mxu0 %v2132
    %2164 = vmatpush1.msra.mxu0 %v2131
    %2165 = vmatprep.subr.mxu0 %v2134
    %2166 = vmatpush1.msra.mxu0 %v2133
    %2167 = vmatprep.subr.mxu0 %v2136
    %2168 = vmatpush1.msra.mxu0 %v2135
    %2169 = vmatprep.subr.mxu0 %v2138
    %2170 = vmatpush1.msra.mxu0 %v2137
    %2171 = vmatprep.subr.mxu0 %v2140
    %2172 = vmatpush1.msra.mxu0 %v2139
    %2173 = vmatprep.subr.mxu0 %v2142
    %2174 = vmatpush1.msra.mxu0 %v2141
    %2175 = vmatprep.subr.mxu0 0.0
    %2176 = vmatpush1.msra.mxu0 0.0
    %2177 = vmatprep.subr.mxu0 0.0
    %2178 = vmatpush1.msra.mxu0 0.0
    %2179 = vmatprep.subr.mxu0 0.0
    %2180 = vmatpush1.msra.mxu0 0.0
    %2181 = vmatprep.subr.mxu0 0.0
    %2182 = vmatpush1.msra.mxu0 0.0
    %2183 = vmatprep.subr.mxu0 0.0
    %2184 = vmatpush1.msra.mxu0 0.0
    %2185 = vmatprep.subr.mxu0 0.0
    %2186 = vmatpush1.msra.mxu0 0.0
    %2187 = vmatprep.subr.mxu0 0.0
    %2188 = vmatpush1.msra.mxu0 0.0
    %2189 = vmatprep.subr.mxu0 0.0
    %2190 = vmatpush1.msra.mxu0 0.0
    %2191 = vmatprep.subr.mxu0 0.0
    %2192 = vmatpush1.msra.mxu0 0.0
    %2193 = vmatprep.subr.mxu0 0.0
    %2194 = vmatpush1.msra.mxu0 0.0
    %2195 = vmatprep.subr.mxu0 0.0
    %2196 = vmatpush1.msra.mxu0 0.0
    %2197 = vmatprep.subr.mxu0 0.0
    %2198 = vmatpush1.msra.mxu0 0.0
    %2199 = vmatprep.subr.mxu0 0.0
    %2200 = vmatpush1.msra.mxu0 0.0
    %2201 = vmatprep.subr.mxu0 0.0
    %2202 = vmatpush1.msra.mxu0 0.0
    %2203 = vmatprep.subr.mxu0 0.0
    %2204 = vmatpush1.msra.mxu0 0.0
    %2205 = vmatprep.subr.mxu0 0.0
    %2206 = vmatpush1.msra.mxu0 0.0
    %2207 = vmatprep.mubr.f32.mxu0 0.0
    %2208 = vmatmul.mubr.f32.gmra.mrb[0].mxu0 %v2091
    %v2209 = vpop.f32.mrb[0].mxu0
    %v2210 = vadd.f32 0.0, %v2209
    %v2211 = vpop.f32.mrb[0].mxu0
    %v2212 = vadd.f32 0.0, %v2211
    %2213 = vmatprep.mubr.f32.mxu0 0.0
    %2214 = vmatmul.mubr.f32.gmra.mrb[0].mxu0 %v2092
    %v2215 = vpop.f32.mrb[0].mxu0
    %v2216 = vadd.f32 0.0, %v2215
    %v2217 = vpop.f32.mrb[0].mxu0
    %v2218 = vadd.f32 0.0, %v2217
    %2219 = vmatprep.mubr.f32.mxu0 0.0
    %2220 = vmatmul.mubr.f32.gmra.mrb[0].mxu0 %v2093
    %v2221 = vpop.f32.mrb[0].mxu0
    %v2222 = vadd.f32 0.0, %v2221
    %v2223 = vpop.f32.mrb[0].mxu0
    %v2224 = vadd.f32 0.0, %v2223
    %2225 = vmatprep.mubr.f32.mxu0 0.0
    %2226 = vmatmul.mubr.f32.gmra.mrb[0].mxu0 %v2094
    %v2227 = vpop.f32.mrb[0].mxu0
    %v2228 = vadd.f32 0.0, %v2227
    %v2229 = vpop.f32.mrb[0].mxu0
    %v2230 = vadd.f32 0.0, %v2229
    %2231 = vdwg.mxu0
    %v2232 = vadd.f32 %v2099, %v2210
    %v2233 = vadd.f32 %v2100, %v2212
    %v2234 = vadd.f32 %v2102, %v2216
    %v2235 = vadd.f32 %v2103, %v2218
    %v2236 = vadd.f32 %v2105, %v2222
    %v2237 = vadd.f32 %v2106, %v2224
    %v2238 = vadd.f32 %v2108, %v2228
    %v2239 = vadd.f32 %v2109, %v2230
    %v2240 = vxor.u32 %v2232, 2147483648
    %v2241 = vxor.u32 %v2233, 2147483648
    %v2242 = vxor.u32 %v2234, 2147483648
    %v2243 = vxor.u32 %v2235, 2147483648
    %v2244 = vxor.u32 %v2236, 2147483648
    %v2245 = vxor.u32 %v2237, 2147483648
    %v2246 = vxor.u32 %v2238, 2147483648
    %v2247 = vxor.u32 %v2239, 2147483648
    %v2248 = vmul.f32 %v2240, 1.442695
    %v2249 = vpow.pop %v2248
    %v2250 = vmul.f32 %v2241, 1.442695
    %v2251 = vpow.pop %v2250
    %v2252 = vmul.f32 %v2242, 1.442695
    %v2253 = vpow.pop %v2252
    %v2254 = vmul.f32 %v2243, 1.442695
    %v2255 = vpow.pop %v2254
    %v2256 = vmul.f32 %v2244, 1.442695
    %v2257 = vpow.pop %v2256
    %v2258 = vmul.f32 %v2245, 1.442695
    %v2259 = vpow.pop %v2258
    %v2260 = vmul.f32 %v2246, 1.442695
    %v2261 = vpow.pop %v2260
    %v2262 = vmul.f32 %v2247, 1.442695
    %v2263 = vpow.pop %v2262
    %v2264 = vadd.f32 %v2249, 1.0
    %v2265 = vadd.f32 %v2251, 1.0
    %v2266 = vadd.f32 %v2253, 1.0
    %v2267 = vadd.f32 %v2255, 1.0
    %v2268 = vadd.f32 %v2257, 1.0
    %v2269 = vadd.f32 %v2259, 1.0
    %v2270 = vadd.f32 %v2261, 1.0
    %v2271 = vadd.f32 %v2263, 1.0
    %v2272 = vrcp.pop %v2264
    %v2273 = vmul.f32 1.0, %v2272
    %v2274 = vrcp.pop %v2265
    %v2275 = vmul.f32 1.0, %v2274
    %v2276 = vrcp.pop %v2266
    %v2277 = vmul.f32 1.0, %v2276
    %v2278 = vrcp.pop %v2267
    %v2279 = vmul.f32 1.0, %v2278
    %v2280 = vrcp.pop %v2268
    %v2281 = vmul.f32 1.0, %v2280
    %v2282 = vrcp.pop %v2269
    %v2283 = vmul.f32 1.0, %v2282
    %v2284 = vrcp.pop %v2270
    %v2285 = vmul.f32 1.0, %v2284
    %v2286 = vrcp.pop %v2271
    %v2287 = vmul.f32 1.0, %v2286
    %v2288 = vmul.f32 %v2273, %v2091
    %v2289 = vmul.f32 %v2277, %v2092
    %v2290 = vmul.f32 %v2281, %v2093
    %v2291 = vmul.f32 %v2285, %v2094
    %v2292 = vld [vmem:[#allocation6] sm:$0xff]
    %v2293 = vld [vmem:[#allocation6 + $0x8] sm:$0xff]
    %v2294 = vld [vmem:[#allocation6 + $0x10] sm:$0xff]
    %v2295 = vld [vmem:[#allocation6 + $0x18] sm:$0xff]
    %v2296 = vld [vmem:[#allocation6 + $0x20] sm:$0xff]
    %v2297 = vld [vmem:[#allocation6 + $0x28] sm:$0xff]
    %v2298 = vld [vmem:[#allocation6 + $0x30] sm:$0xff]
    %v2299 = vld [vmem:[#allocation6 + $0x38] sm:$0xff]
    %v2300 = vld [vmem:[#allocation6 + $0x40] sm:$0xff]
    %v2301 = vld [vmem:[#allocation6 + $0x48] sm:$0xff]
    %v2302 = vld [vmem:[#allocation6 + $0x50] sm:$0xff]
    %v2303 = vld [vmem:[#allocation6 + $0x58] sm:$0xff]
    %v2304 = vld [vmem:[#allocation6 + $0x60] sm:$0xff]
    %v2305 = vld [vmem:[#allocation6 + $0x68] sm:$0xff]
    %v2306 = vld [vmem:[#allocation6 + $0x70] sm:$0xff]
    %v2307 = vld [vmem:[#allocation6 + $0x78] sm:$0xff]
    %2308 = vmatprep.subr.mxu0 0.0
    %2309 = vmatpush1.msra.mxu0 %v2292
    %2310 = vmatprep.subr.mxu0 0.0
    %2311 = vmatpush1.msra.mxu0 %v2293
    %2312 = vmatprep.subr.mxu0 0.0
    %2313 = vmatpush1.msra.mxu0 %v2294
    %2314 = vmatprep.subr.mxu0 0.0
    %2315 = vmatpush1.msra.mxu0 %v2295
    %2316 = vmatprep.subr.mxu0 0.0
    %2317 = vmatpush1.msra.mxu0 %v2296
    %2318 = vmatprep.subr.mxu0 0.0
    %2319 = vmatpush1.msra.mxu0 %v2297
    %2320 = vmatprep.subr.mxu0 0.0
    %2321 = vmatpush1.msra.mxu0 %v2298
    %2322 = vmatprep.subr.mxu0 0.0
    %2323 = vmatpush1.msra.mxu0 %v2299
    %2324 = vmatprep.subr.mxu0 0.0
    %2325 = vmatpush1.msra.mxu0 %v2300
    %2326 = vmatprep.subr.mxu0 0.0
    %2327 = vmatpush1.msra.mxu0 %v2301
    %2328 = vmatprep.subr.mxu0 0.0
    %2329 = vmatpush1.msra.mxu0 %v2302
    %2330 = vmatprep.subr.mxu0 0.0
    %2331 = vmatpush1.msra.mxu0 %v2303
    %2332 = vmatprep.subr.mxu0 0.0
    %2333 = vmatpush1.msra.mxu0 %v2304
    %2334 = vmatprep.subr.mxu0 0.0
    %2335 = vmatpush1.msra.mxu0 %v2305
    %2336 = vmatprep.subr.mxu0 0.0
    %2337 = vmatpush1.msra.mxu0 %v2306
    %2338 = vmatprep.subr.mxu0 0.0
    %2339 = vmatpush1.msra.mxu0 %v2307
    %2340 = vmatprep.subr.mxu0 0.0
    %2341 = vmatpush1.msra.mxu0 0.0
    %2342 = vmatprep.subr.mxu0 0.0
    %2343 = vmatpush1.msra.mxu0 0.0
    %2344 = vmatprep.subr.mxu0 0.0
    %2345 = vmatpush1.msra.mxu0 0.0
    %2346 = vmatprep.subr.mxu0 0.0
    %2347 = vmatpush1.msra.mxu0 0.0
    %2348 = vmatprep.subr.mxu0 0.0
    %2349 = vmatpush1.msra.mxu0 0.0
    %2350 = vmatprep.subr.mxu0 0.0
    %2351 = vmatpush1.msra.mxu0 0.0
    %2352 = vmatprep.subr.mxu0 0.0
    %2353 = vmatpush1.msra.mxu0 0.0
    %2354 = vmatprep.subr.mxu0 0.0
    %2355 = vmatpush1.msra.mxu0 0.0
    %2356 = vmatprep.subr.mxu0 0.0
    %2357 = vmatpush1.msra.mxu0 0.0
    %2358 = vmatprep.subr.mxu0 0.0
    %2359 = vmatpush1.msra.mxu0 0.0
    %2360 = vmatprep.subr.mxu0 0.0
    %2361 = vmatpush1.msra.mxu0 0.0
    %2362 = vmatprep.subr.mxu0 0.0
    %2363 = vmatpush1.msra.mxu0 0.0
    %2364 = vmatprep.subr.mxu0 0.0
    %2365 = vmatpush1.msra.mxu0 0.0
    %2366 = vmatprep.subr.mxu0 0.0
    %2367 = vmatpush1.msra.mxu0 0.0
    %2368 = vmatprep.subr.mxu0 0.0
    %2369 = vmatpush1.msra.mxu0 0.0
    %2370 = vmatprep.subr.mxu0 0.0
    %2371 = vmatpush1.msra.mxu0 0.0
    %2372 = vmatprep.mubr.f32.mxu0 0.0
    %2373 = vmatmul.mubr.f32.gmra.mrb[0].mxu0 %v2288
    %v2374 = vpop.f32.mrb[0].mxu0
    %v2375 = vadd.f32 0.0, %v2374
    %v2376 = vpop.f32.mrb[0].mxu0
    %2377 = vmatprep.mubr.f32.mxu0 0.0
    %2378 = vmatmul.mubr.f32.gmra.mrb[0].mxu0 %v2289
    %v2379 = vpop.f32.mrb[0].mxu0
    %v2380 = vadd.f32 0.0, %v2379
    %v2381 = vpop.f32.mrb[0].mxu0
    %2382 = vmatprep.mubr.f32.mxu0 0.0
    %2383 = vmatmul.mubr.f32.gmra.mrb[0].mxu0 %v2290
    %v2384 = vpop.f32.mrb[0].mxu0
    %v2385 = vadd.f32 0.0, %v2384
    %v2386 = vpop.f32.mrb[0].mxu0
    %2387 = vmatprep.mubr.f32.mxu0 0.0
    %2388 = vmatmul.mubr.f32.gmra.mrb[0].mxu0 %v2291
    %v2389 = vpop.f32.mrb[0].mxu0
    %v2390 = vadd.f32 0.0, %v2389
    %v2391 = vpop.f32.mrb[0].mxu0
    %2392 = vdwg.mxu0
    %v2393 = vadd.f32 %v2101, %v2375
    %v2394 = vadd.f32 %v2104, %v2380
    %v2395 = vadd.f32 %v2107, %v2385
    %v2396 = vadd.f32 %v2110, %v2390
    %v2397 = vtanh.pop %v2393
    %v2398 = vtanh.pop %v2394
    %v2399 = vtanh.pop %v2395
    %v2400 = vtanh.pop %v2396
    %v2401 = vmul.f32 %v2275, %v2091
    %v2402 = vmul.f32 %v2279, %v2092
    %v2403 = vmul.f32 %v2283, %v2093
    %v2404 = vmul.f32 %v2287, %v2094
    %v2405 = vsub.f32 1.0, %v2275
    %v2406 = vsub.f32 1.0, %v2279
    %v2407 = vsub.f32 1.0, %v2283
    %v2408 = vsub.f32 1.0, %v2287
    %v2409 = vmul.f32 %v2405, %v2397
    %v2410 = vmul.f32 %v2406, %v2398
    %v2411 = vmul.f32 %v2407, %v2399
    %v2412 = vmul.f32 %v2408, %v2400
    %v2413 = vadd.f32 %v2401, %v2409
    %v2414 = vadd.f32 %v2402, %v2410
    %v2415 = vadd.f32 %v2403, %v2411
    %v2416 = vadd.f32 %v2404, %v2412
    %2417 = vst [vmem:[#allocation9 + $0x80] sm:$0xff] %v2413
    %2418 = vst [vmem:[#allocation9 + $0x88] sm:$0xff] %v2414
    %2419 = vst [vmem:[#allocation9 + $0x90] sm:$0xff] %v2415
    %2420 = vst [vmem:[#allocation9 + $0x98] sm:$0xff] %v2416
    %v2421 = vld [vmem:[#allocation2 + $0xf0] sm:$0xff]
    %v2422 = vld [vmem:[#allocation2 + $0xf8] sm:$0xff]
    %v2423 = vld [vmem:[#allocation2 + $0x100] sm:$0xff]
    %v2424 = vld [vmem:[#allocation2 + $0x108] sm:$0xff]
    %v2425 = vld [vmem:[#allocation2 + $0x110] sm:$0xff]
    %v2426 = vld [vmem:[#allocation2 + $0x118] sm:$0xff]
    %v2427 = vld [vmem:[#allocation2 + $0x270] sm:$0xff]
    %v2428 = vld [vmem:[#allocation2 + $0x278] sm:$0xff]
    %v2429 = vld [vmem:[#allocation2 + $0x280] sm:$0xff]
    %v2430 = vld [vmem:[#allocation2 + $0x288] sm:$0xff]
    %v2431 = vld [vmem:[#allocation2 + $0x290] sm:$0xff]
    %v2432 = vld [vmem:[#allocation2 + $0x298] sm:$0xff]
    %v2433 = vld [vmem:[%s4] sm:$0xff]
    %v2434 = vld [vmem:[%s4 + $0x8] sm:$0xff]
    %v2435 = vld [vmem:[%s4 + $0x10] sm:$0xff]
    %v2436 = vld [vmem:[%s4 + $0x18] sm:$0xff]
    %v2437 = vld [vmem:[%s4 + $0x20] sm:$0xff]
    %v2438 = vld [vmem:[%s4 + $0x28] sm:$0xff]
    %v2439 = vld [vmem:[%s4 + $0x30] sm:$0xff]
    %v2440 = vld [vmem:[%s4 + $0x38] sm:$0xff]
    %v2441 = vld [vmem:[%s4 + $0x40] sm:$0xff]
    %v2442 = vld [vmem:[%s4 + $0x48] sm:$0xff]
    %v2443 = vld [vmem:[%s4 + $0x50] sm:$0xff]
    %v2444 = vld [vmem:[%s4 + $0x58] sm:$0xff]
    %v2445 = vld [vmem:[%s4 + $0x60] sm:$0xff]
    %v2446 = vld [vmem:[%s4 + $0x68] sm:$0xff]
    %v2447 = vld [vmem:[%s4 + $0x70] sm:$0xff]
    %v2448 = vld [vmem:[%s4 + $0x78] sm:$0xff]
    %v2449 = vld [vmem:[%s4 + $0x80] sm:$0xff]
    %v2450 = vld [vmem:[%s4 + $0x88] sm:$0xff]
    %v2451 = vld [vmem:[%s4 + $0x90] sm:$0xff]
    %v2452 = vld [vmem:[%s4 + $0x98] sm:$0xff]
    %v2453 = vld [vmem:[%s4 + $0xa0] sm:$0xff]
    %v2454 = vld [vmem:[%s4 + $0xa8] sm:$0xff]
    %v2455 = vld [vmem:[%s4 + $0xb0] sm:$0xff]
    %v2456 = vld [vmem:[%s4 + $0xb8] sm:$0xff]
    %v2457 = vld [vmem:[%s4 + $0xc0] sm:$0xff]
    %v2458 = vld [vmem:[%s4 + $0xc8] sm:$0xff]
    %v2459 = vld [vmem:[%s4 + $0xd0] sm:$0xff]
    %v2460 = vld [vmem:[%s4 + $0xd8] sm:$0xff]
    %v2461 = vld [vmem:[%s4 + $0xe0] sm:$0xff]
    %v2462 = vld [vmem:[%s4 + $0xe8] sm:$0xff]
    %v2463 = vld [vmem:[%s4 + $0xf0] sm:$0xff]
    %v2464 = vld [vmem:[%s4 + $0xf8] sm:$0xff]
    %2465 = vmatprep.subr.mxu0 %v2434
    %2466 = vmatpush1.msra.mxu0 %v2433
    %2467 = vmatprep.subr.mxu0 %v2436
    %2468 = vmatpush1.msra.mxu0 %v2435
    %2469 = vmatprep.subr.mxu0 %v2438
    %2470 = vmatpush1.msra.mxu0 %v2437
    %2471 = vmatprep.subr.mxu0 %v2440
    %2472 = vmatpush1.msra.mxu0 %v2439
    %2473 = vmatprep.subr.mxu0 %v2442
    %2474 = vmatpush1.msra.mxu0 %v2441
    %2475 = vmatprep.subr.mxu0 %v2444
    %2476 = vmatpush1.msra.mxu0 %v2443
    %2477 = vmatprep.subr.mxu0 %v2446
    %2478 = vmatpush1.msra.mxu0 %v2445
    %2479 = vmatprep.subr.mxu0 %v2448
    %2480 = vmatpush1.msra.mxu0 %v2447
    %2481 = vmatprep.subr.mxu0 %v2450
    %2482 = vmatpush1.msra.mxu0 %v2449
    %2483 = vmatprep.subr.mxu0 %v2452
    %2484 = vmatpush1.msra.mxu0 %v2451
    %2485 = vmatprep.subr.mxu0 %v2454
    %2486 = vmatpush1.msra.mxu0 %v2453
    %2487 = vmatprep.subr.mxu0 %v2456
    %2488 = vmatpush1.msra.mxu0 %v2455
    %2489 = vmatprep.subr.mxu0 %v2458
    %2490 = vmatpush1.msra.mxu0 %v2457
    %2491 = vmatprep.subr.mxu0 %v2460
    %2492 = vmatpush1.msra.mxu0 %v2459
    %2493 = vmatprep.subr.mxu0 %v2462
    %2494 = vmatpush1.msra.mxu0 %v2461
    %2495 = vmatprep.subr.mxu0 %v2464
    %2496 = vmatpush1.msra.mxu0 %v2463
    %2497 = vmatprep.subr.mxu0 0.0
    %2498 = vmatpush1.msra.mxu0 0.0
    %2499 = vmatprep.subr.mxu0 0.0
    %2500 = vmatpush1.msra.mxu0 0.0
    %2501 = vmatprep.subr.mxu0 0.0
    %2502 = vmatpush1.msra.mxu0 0.0
    %2503 = vmatprep.subr.mxu0 0.0
    %2504 = vmatpush1.msra.mxu0 0.0
    %2505 = vmatprep.subr.mxu0 0.0
    %2506 = vmatpush1.msra.mxu0 0.0
    %2507 = vmatprep.subr.mxu0 0.0
    %2508 = vmatpush1.msra.mxu0 0.0
    %2509 = vmatprep.subr.mxu0 0.0
    %2510 = vmatpush1.msra.mxu0 0.0
    %2511 = vmatprep.subr.mxu0 0.0
    %2512 = vmatpush1.msra.mxu0 0.0
    %2513 = vmatprep.subr.mxu0 0.0
    %2514 = vmatpush1.msra.mxu0 0.0
    %2515 = vmatprep.subr.mxu0 0.0
    %2516 = vmatpush1.msra.mxu0 0.0
    %2517 = vmatprep.subr.mxu0 0.0
    %2518 = vmatpush1.msra.mxu0 0.0
    %2519 = vmatprep.subr.mxu0 0.0
    %2520 = vmatpush1.msra.mxu0 0.0
    %2521 = vmatprep.subr.mxu0 0.0
    %2522 = vmatpush1.msra.mxu0 0.0
    %2523 = vmatprep.subr.mxu0 0.0
    %2524 = vmatpush1.msra.mxu0 0.0
    %2525 = vmatprep.subr.mxu0 0.0
    %2526 = vmatpush1.msra.mxu0 0.0
    %2527 = vmatprep.subr.mxu0 0.0
    %2528 = vmatpush1.msra.mxu0 0.0
    %2529 = vmatprep.mubr.f32.mxu0 0.0
    %2530 = vmatmul.mubr.f32.gmra.mrb[0].mxu0 %v2413
    %v2531 = vpop.f32.mrb[0].mxu0
    %v2532 = vadd.f32 0.0, %v2531
    %v2533 = vpop.f32.mrb[0].mxu0
    %v2534 = vadd.f32 0.0, %v2533
    %2535 = vmatprep.mubr.f32.mxu0 0.0
    %2536 = vmatmul.mubr.f32.gmra.mrb[0].mxu0 %v2414
    %v2537 = vpop.f32.mrb[0].mxu0
    %v2538 = vadd.f32 0.0, %v2537
    %v2539 = vpop.f32.mrb[0].mxu0
    %v2540 = vadd.f32 0.0, %v2539
    %2541 = vmatprep.mubr.f32.mxu0 0.0
    %2542 = vmatmul.mubr.f32.gmra.mrb[0].mxu0 %v2415
    %v2543 = vpop.f32.mrb[0].mxu0
    %v2544 = vadd.f32 0.0, %v2543
    %v2545 = vpop.f32.mrb[0].mxu0
    %v2546 = vadd.f32 0.0, %v2545
    %2547 = vmatprep.mubr.f32.mxu0 0.0
    %2548 = vmatmul.mubr.f32.gmra.mrb[0].mxu0 %v2416
    %v2549 = vpop.f32.mrb[0].mxu0
    %v2550 = vadd.f32 0.0, %v2549
    %v2551 = vpop.f32.mrb[0].mxu0
    %v2552 = vadd.f32 0.0, %v2551
    %2553 = vdwg.mxu0
    %v2554 = vadd.f32 %v2421, %v2532
    %v2555 = vadd.f32 %v2422, %v2534
    %v2556 = vadd.f32 %v2424, %v2538
    %v2557 = vadd.f32 %v2425, %v2540
    %v2558 = vadd.f32 %v2427, %v2544
    %v2559 = vadd.f32 %v2428, %v2546
    %v2560 = vadd.f32 %v2430, %v2550
    %v2561 = vadd.f32 %v2431, %v2552
    %v2562 = vxor.u32 %v2554, 2147483648
    %v2563 = vxor.u32 %v2555, 2147483648
    %v2564 = vxor.u32 %v2556, 2147483648
    %v2565 = vxor.u32 %v2557, 2147483648
    %v2566 = vxor.u32 %v2558, 2147483648
    %v2567 = vxor.u32 %v2559, 2147483648
    %v2568 = vxor.u32 %v2560, 2147483648
    %v2569 = vxor.u32 %v2561, 2147483648
    %v2570 = vmul.f32 %v2562, 1.442695
    %v2571 = vpow.pop %v2570
    %v2572 = vmul.f32 %v2563, 1.442695
    %v2573 = vpow.pop %v2572
    %v2574 = vmul.f32 %v2564, 1.442695
    %v2575 = vpow.pop %v2574
    %v2576 = vmul.f32 %v2565, 1.442695
    %v2577 = vpow.pop %v2576
    %v2578 = vmul.f32 %v2566, 1.442695
    %v2579 = vpow.pop %v2578
    %v2580 = vmul.f32 %v2567, 1.442695
    %v2581 = vpow.pop %v2580
    %v2582 = vmul.f32 %v2568, 1.442695
    %v2583 = vpow.pop %v2582
    %v2584 = vmul.f32 %v2569, 1.442695
    %v2585 = vpow.pop %v2584
    %v2586 = vadd.f32 %v2571, 1.0
    %v2587 = vadd.f32 %v2573, 1.0
    %v2588 = vadd.f32 %v2575, 1.0
    %v2589 = vadd.f32 %v2577, 1.0
    %v2590 = vadd.f32 %v2579, 1.0
    %v2591 = vadd.f32 %v2581, 1.0
    %v2592 = vadd.f32 %v2583, 1.0
    %v2593 = vadd.f32 %v2585, 1.0
    %v2594 = vrcp.pop %v2586
    %v2595 = vmul.f32 1.0, %v2594
    %v2596 = vrcp.pop %v2587
    %v2597 = vmul.f32 1.0, %v2596
    %v2598 = vrcp.pop %v2588
    %v2599 = vmul.f32 1.0, %v2598
    %v2600 = vrcp.pop %v2589
    %v2601 = vmul.f32 1.0, %v2600
    %v2602 = vrcp.pop %v2590
    %v2603 = vmul.f32 1.0, %v2602
    %v2604 = vrcp.pop %v2591
    %v2605 = vmul.f32 1.0, %v2604
    %v2606 = vrcp.pop %v2592
    %v2607 = vmul.f32 1.0, %v2606
    %v2608 = vrcp.pop %v2593
    %v2609 = vmul.f32 1.0, %v2608
    %v2610 = vmul.f32 %v2595, %v2413
    %v2611 = vmul.f32 %v2599, %v2414
    %v2612 = vmul.f32 %v2603, %v2415
    %v2613 = vmul.f32 %v2607, %v2416
    %v2614 = vld [vmem:[#allocation6] sm:$0xff]
    %v2615 = vld [vmem:[#allocation6 + $0x8] sm:$0xff]
    %v2616 = vld [vmem:[#allocation6 + $0x10] sm:$0xff]
    %v2617 = vld [vmem:[#allocation6 + $0x18] sm:$0xff]
    %v2618 = vld [vmem:[#allocation6 + $0x20] sm:$0xff]
    %v2619 = vld [vmem:[#allocation6 + $0x28] sm:$0xff]
    %v2620 = vld [vmem:[#allocation6 + $0x30] sm:$0xff]
    %v2621 = vld [vmem:[#allocation6 + $0x38] sm:$0xff]
    %v2622 = vld [vmem:[#allocation6 + $0x40] sm:$0xff]
    %v2623 = vld [vmem:[#allocation6 + $0x48] sm:$0xff]
    %v2624 = vld [vmem:[#allocation6 + $0x50] sm:$0xff]
    %v2625 = vld [vmem:[#allocation6 + $0x58] sm:$0xff]
    %v2626 = vld [vmem:[#allocation6 + $0x60] sm:$0xff]
    %v2627 = vld [vmem:[#allocation6 + $0x68] sm:$0xff]
    %v2628 = vld [vmem:[#allocation6 + $0x70] sm:$0xff]
    %v2629 = vld [vmem:[#allocation6 + $0x78] sm:$0xff]
    %2630 = vmatprep.subr.mxu0 0.0
    %2631 = vmatpush1.msra.mxu0 %v2614
    %2632 = vmatprep.subr.mxu0 0.0
    %2633 = vmatpush1.msra.mxu0 %v2615
    %2634 = vmatprep.subr.mxu0 0.0
    %2635 = vmatpush1.msra.mxu0 %v2616
    %2636 = vmatprep.subr.mxu0 0.0
    %2637 = vmatpush1.msra.mxu0 %v2617
    %2638 = vmatprep.subr.mxu0 0.0
    %2639 = vmatpush1.msra.mxu0 %v2618
    %2640 = vmatprep.subr.mxu0 0.0
    %2641 = vmatpush1.msra.mxu0 %v2619
    %2642 = vmatprep.subr.mxu0 0.0
    %2643 = vmatpush1.msra.mxu0 %v2620
    %2644 = vmatprep.subr.mxu0 0.0
    %2645 = vmatpush1.msra.mxu0 %v2621
    %2646 = vmatprep.subr.mxu0 0.0
    %2647 = vmatpush1.msra.mxu0 %v2622
    %2648 = vmatprep.subr.mxu0 0.0
    %2649 = vmatpush1.msra.mxu0 %v2623
    %2650 = vmatprep.subr.mxu0 0.0
    %2651 = vmatpush1.msra.mxu0 %v2624
    %2652 = vmatprep.subr.mxu0 0.0
    %2653 = vmatpush1.msra.mxu0 %v2625
    %2654 = vmatprep.subr.mxu0 0.0
    %2655 = vmatpush1.msra.mxu0 %v2626
    %2656 = vmatprep.subr.mxu0 0.0
    %2657 = vmatpush1.msra.mxu0 %v2627
    %2658 = vmatprep.subr.mxu0 0.0
    %2659 = vmatpush1.msra.mxu0 %v2628
    %2660 = vmatprep.subr.mxu0 0.0
    %2661 = vmatpush1.msra.mxu0 %v2629
    %2662 = vmatprep.subr.mxu0 0.0
    %2663 = vmatpush1.msra.mxu0 0.0
    %2664 = vmatprep.subr.mxu0 0.0
    %2665 = vmatpush1.msra.mxu0 0.0
    %2666 = vmatprep.subr.mxu0 0.0
    %2667 = vmatpush1.msra.mxu0 0.0
    %2668 = vmatprep.subr.mxu0 0.0
    %2669 = vmatpush1.msra.mxu0 0.0
    %2670 = vmatprep.subr.mxu0 0.0
    %2671 = vmatpush1.msra.mxu0 0.0
    %2672 = vmatprep.subr.mxu0 0.0
    %2673 = vmatpush1.msra.mxu0 0.0
    %2674 = vmatprep.subr.mxu0 0.0
    %2675 = vmatpush1.msra.mxu0 0.0
    %2676 = vmatprep.subr.mxu0 0.0
    %2677 = vmatpush1.msra.mxu0 0.0
    %2678 = vmatprep.subr.mxu0 0.0
    %2679 = vmatpush1.msra.mxu0 0.0
    %2680 = vmatprep.subr.mxu0 0.0
    %2681 = vmatpush1.msra.mxu0 0.0
    %2682 = vmatprep.subr.mxu0 0.0
    %2683 = vmatpush1.msra.mxu0 0.0
    %2684 = vmatprep.subr.mxu0 0.0
    %2685 = vmatpush1.msra.mxu0 0.0
    %2686 = vmatprep.subr.mxu0 0.0
    %2687 = vmatpush1.msra.mxu0 0.0
    %2688 = vmatprep.subr.mxu0 0.0
    %2689 = vmatpush1.msra.mxu0 0.0
    %2690 = vmatprep.subr.mxu0 0.0
    %2691 = vmatpush1.msra.mxu0 0.0
    %2692 = vmatprep.subr.mxu0 0.0
    %2693 = vmatpush1.msra.mxu0 0.0
    %2694 = vmatprep.mubr.f32.mxu0 0.0
    %2695 = vmatmul.mubr.f32.gmra.mrb[0].mxu0 %v2610
    %v2696 = vpop.f32.mrb[0].mxu0
    %v2697 = vadd.f32 0.0, %v2696
    %v2698 = vpop.f32.mrb[0].mxu0
    %2699 = vmatprep.mubr.f32.mxu0 0.0
    %2700 = vmatmul.mubr.f32.gmra.mrb[0].mxu0 %v2611
    %v2701 = vpop.f32.mrb[0].mxu0
    %v2702 = vadd.f32 0.0, %v2701
    %v2703 = vpop.f32.mrb[0].mxu0
    %2704 = vmatprep.mubr.f32.mxu0 0.0
    %2705 = vmatmul.mubr.f32.gmra.mrb[0].mxu0 %v2612
    %v2706 = vpop.f32.mrb[0].mxu0
    %v2707 = vadd.f32 0.0, %v2706
    %v2708 = vpop.f32.mrb[0].mxu0
    %2709 = vmatprep.mubr.f32.mxu0 0.0
    %2710 = vmatmul.mubr.f32.gmra.mrb[0].mxu0 %v2613
    %v2711 = vpop.f32.mrb[0].mxu0
    %v2712 = vadd.f32 0.0, %v2711
    %v2713 = vpop.f32.mrb[0].mxu0
    %2714 = vdwg.mxu0
    %v2715 = vadd.f32 %v2423, %v2697
    %v2716 = vadd.f32 %v2426, %v2702
    %v2717 = vadd.f32 %v2429, %v2707
    %v2718 = vadd.f32 %v2432, %v2712
    %v2719 = vtanh.pop %v2715
    %v2720 = vtanh.pop %v2716
    %v2721 = vtanh.pop %v2717
    %v2722 = vtanh.pop %v2718
    %v2723 = vmul.f32 %v2597, %v2413
    %v2724 = vmul.f32 %v2601, %v2414
    %v2725 = vmul.f32 %v2605, %v2415
    %v2726 = vmul.f32 %v2609, %v2416
    %v2727 = vsub.f32 1.0, %v2597
    %v2728 = vsub.f32 1.0, %v2601
    %v2729 = vsub.f32 1.0, %v2605
    %v2730 = vsub.f32 1.0, %v2609
    %v2731 = vmul.f32 %v2727, %v2719
    %v2732 = vmul.f32 %v2728, %v2720
    %v2733 = vmul.f32 %v2729, %v2721
    %v2734 = vmul.f32 %v2730, %v2722
    %v2735 = vadd.f32 %v2723, %v2731
    %v2736 = vadd.f32 %v2724, %v2732
    %v2737 = vadd.f32 %v2725, %v2733
    %v2738 = vadd.f32 %v2726, %v2734
    %2739 = vst [vmem:[#allocation9 + $0xa0] sm:$0xff] %v2735
    %2740 = vst [vmem:[#allocation9 + $0xa8] sm:$0xff] %v2736
    %2741 = vst [vmem:[#allocation9 + $0xb0] sm:$0xff] %v2737
    %2742 = vst [vmem:[#allocation9 + $0xb8] sm:$0xff] %v2738
    %v2743 = vld [vmem:[#allocation2 + $0x120] sm:$0xff]
    %v2744 = vld [vmem:[#allocation2 + $0x128] sm:$0xff]
    %v2745 = vld [vmem:[#allocation2 + $0x130] sm:$0xff]
    %v2746 = vld [vmem:[#allocation2 + $0x138] sm:$0xff]
    %v2747 = vld [vmem:[#allocation2 + $0x140] sm:$0xff]
    %v2748 = vld [vmem:[#allocation2 + $0x148] sm:$0xff]
    %v2749 = vld [vmem:[#allocation2 + $0x2a0] sm:$0xff]
    %v2750 = vld [vmem:[#allocation2 + $0x2a8] sm:$0xff]
    %v2751 = vld [vmem:[#allocation2 + $0x2b0] sm:$0xff]
    %v2752 = vld [vmem:[#allocation2 + $0x2b8] sm:$0xff]
    %v2753 = vld [vmem:[#allocation2 + $0x2c0] sm:$0xff]
    %v2754 = vld [vmem:[#allocation2 + $0x2c8] sm:$0xff]
    %v2755 = vld [vmem:[%s4] sm:$0xff]
    %v2756 = vld [vmem:[%s4 + $0x8] sm:$0xff]
    %v2757 = vld [vmem:[%s4 + $0x10] sm:$0xff]
    %v2758 = vld [vmem:[%s4 + $0x18] sm:$0xff]
    %v2759 = vld [vmem:[%s4 + $0x20] sm:$0xff]
    %v2760 = vld [vmem:[%s4 + $0x28] sm:$0xff]
    %v2761 = vld [vmem:[%s4 + $0x30] sm:$0xff]
    %v2762 = vld [vmem:[%s4 + $0x38] sm:$0xff]
    %v2763 = vld [vmem:[%s4 + $0x40] sm:$0xff]
    %v2764 = vld [vmem:[%s4 + $0x48] sm:$0xff]
    %v2765 = vld [vmem:[%s4 + $0x50] sm:$0xff]
    %v2766 = vld [vmem:[%s4 + $0x58] sm:$0xff]
    %v2767 = vld [vmem:[%s4 + $0x60] sm:$0xff]
    %v2768 = vld [vmem:[%s4 + $0x68] sm:$0xff]
    %v2769 = vld [vmem:[%s4 + $0x70] sm:$0xff]
    %v2770 = vld [vmem:[%s4 + $0x78] sm:$0xff]
    %v2771 = vld [vmem:[%s4 + $0x80] sm:$0xff]
    %v2772 = vld [vmem:[%s4 + $0x88] sm:$0xff]
    %v2773 = vld [vmem:[%s4 + $0x90] sm:$0xff]
    %v2774 = vld [vmem:[%s4 + $0x98] sm:$0xff]
    %v2775 = vld [vmem:[%s4 + $0xa0] sm:$0xff]
    %v2776 = vld [vmem:[%s4 + $0xa8] sm:$0xff]
    %v2777 = vld [vmem:[%s4 + $0xb0] sm:$0xff]
    %v2778 = vld [vmem:[%s4 + $0xb8] sm:$0xff]
    %v2779 = vld [vmem:[%s4 + $0xc0] sm:$0xff]
    %v2780 = vld [vmem:[%s4 + $0xc8] sm:$0xff]
    %v2781 = vld [vmem:[%s4 + $0xd0] sm:$0xff]
    %v2782 = vld [vmem:[%s4 + $0xd8] sm:$0xff]
    %v2783 = vld [vmem:[%s4 + $0xe0] sm:$0xff]
    %v2784 = vld [vmem:[%s4 + $0xe8] sm:$0xff]
    %v2785 = vld [vmem:[%s4 + $0xf0] sm:$0xff]
    %v2786 = vld [vmem:[%s4 + $0xf8] sm:$0xff]
    %2787 = vmatprep.subr.mxu0 %v2756
    %2788 = vmatpush1.msra.mxu0 %v2755
    %2789 = vmatprep.subr.mxu0 %v2758
    %2790 = vmatpush1.msra.mxu0 %v2757
    %2791 = vmatprep.subr.mxu0 %v2760
    %2792 = vmatpush1.msra.mxu0 %v2759
    %2793 = vmatprep.subr.mxu0 %v2762
    %2794 = vmatpush1.msra.mxu0 %v2761
    %2795 = vmatprep.subr.mxu0 %v2764
    %2796 = vmatpush1.msra.mxu0 %v2763
    %2797 = vmatprep.subr.mxu0 %v2766
    %2798 = vmatpush1.msra.mxu0 %v2765
    %2799 = vmatprep.subr.mxu0 %v2768
    %2800 = vmatpush1.msra.mxu0 %v2767
    %2801 = vmatprep.subr.mxu0 %v2770
    %2802 = vmatpush1.msra.mxu0 %v2769
    %2803 = vmatprep.subr.mxu0 %v2772
    %2804 = vmatpush1.msra.mxu0 %v2771
    %2805 = vmatprep.subr.mxu0 %v2774
    %2806 = vmatpush1.msra.mxu0 %v2773
    %2807 = vmatprep.subr.mxu0 %v2776
    %2808 = vmatpush1.msra.mxu0 %v2775
    %2809 = vmatprep.subr.mxu0 %v2778
    %2810 = vmatpush1.msra.mxu0 %v2777
    %2811 = vmatprep.subr.mxu0 %v2780
    %2812 = vmatpush1.msra.mxu0 %v2779
    %2813 = vmatprep.subr.mxu0 %v2782
    %2814 = vmatpush1.msra.mxu0 %v2781
    %2815 = vmatprep.subr.mxu0 %v2784
    %2816 = vmatpush1.msra.mxu0 %v2783
    %2817 = vmatprep.subr.mxu0 %v2786
    %2818 = vmatpush1.msra.mxu0 %v2785
    %2819 = vmatprep.subr.mxu0 0.0
    %2820 = vmatpush1.msra.mxu0 0.0
    %2821 = vmatprep.subr.mxu0 0.0
    %2822 = vmatpush1.msra.mxu0 0.0
    %2823 = vmatprep.subr.mxu0 0.0
    %2824 = vmatpush1.msra.mxu0 0.0
    %2825 = vmatprep.subr.mxu0 0.0
    %2826 = vmatpush1.msra.mxu0 0.0
    %2827 = vmatprep.subr.mxu0 0.0
    %2828 = vmatpush1.msra.mxu0 0.0
    %2829 = vmatprep.subr.mxu0 0.0
    %2830 = vmatpush1.msra.mxu0 0.0
    %2831 = vmatprep.subr.mxu0 0.0
    %2832 = vmatpush1.msra.mxu0 0.0
    %2833 = vmatprep.subr.mxu0 0.0
    %2834 = vmatpush1.msra.mxu0 0.0
    %2835 = vmatprep.subr.mxu0 0.0
    %2836 = vmatpush1.msra.mxu0 0.0
    %2837 = vmatprep.subr.mxu0 0.0
    %2838 = vmatpush1.msra.mxu0 0.0
    %2839 = vmatprep.subr.mxu0 0.0
    %2840 = vmatpush1.msra.mxu0 0.0
    %2841 = vmatprep.subr.mxu0 0.0
    %2842 = vmatpush1.msra.mxu0 0.0
    %2843 = vmatprep.subr.mxu0 0.0
    %2844 = vmatpush1.msra.mxu0 0.0
    %2845 = vmatprep.subr.mxu0 0.0
    %2846 = vmatpush1.msra.mxu0 0.0
    %2847 = vmatprep.subr.mxu0 0.0
    %2848 = vmatpush1.msra.mxu0 0.0
    %2849 = vmatprep.subr.mxu0 0.0
    %2850 = vmatpush1.msra.mxu0 0.0
    %2851 = vmatprep.mubr.f32.mxu0 0.0
    %2852 = vmatmul.mubr.f32.gmra.mrb[0].mxu0 %v2735
    %v2853 = vpop.f32.mrb[0].mxu0
    %v2854 = vadd.f32 0.0, %v2853
    %v2855 = vpop.f32.mrb[0].mxu0
    %v2856 = vadd.f32 0.0, %v2855
    %2857 = vmatprep.mubr.f32.mxu0 0.0
    %2858 = vmatmul.mubr.f32.gmra.mrb[0].mxu0 %v2736
    %v2859 = vpop.f32.mrb[0].mxu0
    %v2860 = vadd.f32 0.0, %v2859
    %v2861 = vpop.f32.mrb[0].mxu0
    %v2862 = vadd.f32 0.0, %v2861
    %2863 = vmatprep.mubr.f32.mxu0 0.0
    %2864 = vmatmul.mubr.f32.gmra.mrb[0].mxu0 %v2737
    %v2865 = vpop.f32.mrb[0].mxu0
    %v2866 = vadd.f32 0.0, %v2865
    %v2867 = vpop.f32.mrb[0].mxu0
    %v2868 = vadd.f32 0.0, %v2867
    %2869 = vmatprep.mubr.f32.mxu0 0.0
    %2870 = vmatmul.mubr.f32.gmra.mrb[0].mxu0 %v2738
    %v2871 = vpop.f32.mrb[0].mxu0
    %v2872 = vadd.f32 0.0, %v2871
    %v2873 = vpop.f32.mrb[0].mxu0
    %v2874 = vadd.f32 0.0, %v2873
    %2875 = vdwg.mxu0
    %v2876 = vadd.f32 %v2743, %v2854
    %v2877 = vadd.f32 %v2744, %v2856
    %v2878 = vadd.f32 %v2746, %v2860
    %v2879 = vadd.f32 %v2747, %v2862
    %v2880 = vadd.f32 %v2749, %v2866
    %v2881 = vadd.f32 %v2750, %v2868
    %v2882 = vadd.f32 %v2752, %v2872
    %v2883 = vadd.f32 %v2753, %v2874
    %v2884 = vxor.u32 %v2876, 2147483648
    %v2885 = vxor.u32 %v2877, 2147483648
    %v2886 = vxor.u32 %v2878, 2147483648
    %v2887 = vxor.u32 %v2879, 2147483648
    %v2888 = vxor.u32 %v2880, 2147483648
    %v2889 = vxor.u32 %v2881, 2147483648
    %v2890 = vxor.u32 %v2882, 2147483648
    %v2891 = vxor.u32 %v2883, 2147483648
    %v2892 = vmul.f32 %v2884, 1.442695
    %v2893 = vpow.pop %v2892
    %v2894 = vmul.f32 %v2885, 1.442695
    %v2895 = vpow.pop %v2894
    %v2896 = vmul.f32 %v2886, 1.442695
    %v2897 = vpow.pop %v2896
    %v2898 = vmul.f32 %v2887, 1.442695
    %v2899 = vpow.pop %v2898
    %v2900 = vmul.f32 %v2888, 1.442695
    %v2901 = vpow.pop %v2900
    %v2902 = vmul.f32 %v2889, 1.442695
    %v2903 = vpow.pop %v2902
    %v2904 = vmul.f32 %v2890, 1.442695
    %v2905 = vpow.pop %v2904
    %v2906 = vmul.f32 %v2891, 1.442695
    %v2907 = vpow.pop %v2906
    %v2908 = vadd.f32 %v2893, 1.0
    %v2909 = vadd.f32 %v2895, 1.0
    %v2910 = vadd.f32 %v2897, 1.0
    %v2911 = vadd.f32 %v2899, 1.0
    %v2912 = vadd.f32 %v2901, 1.0
    %v2913 = vadd.f32 %v2903, 1.0
    %v2914 = vadd.f32 %v2905, 1.0
    %v2915 = vadd.f32 %v2907, 1.0
    %v2916 = vrcp.pop %v2908
    %v2917 = vmul.f32 1.0, %v2916
    %v2918 = vrcp.pop %v2909
    %v2919 = vmul.f32 1.0, %v2918
    %v2920 = vrcp.pop %v2910
    %v2921 = vmul.f32 1.0, %v2920
    %v2922 = vrcp.pop %v2911
    %v2923 = vmul.f32 1.0, %v2922
    %v2924 = vrcp.pop %v2912
    %v2925 = vmul.f32 1.0, %v2924
    %v2926 = vrcp.pop %v2913
    %v2927 = vmul.f32 1.0, %v2926
    %v2928 = vrcp.pop %v2914
    %v2929 = vmul.f32 1.0, %v2928
    %v2930 = vrcp.pop %v2915
    %v2931 = vmul.f32 1.0, %v2930
    %v2932 = vmul.f32 %v2917, %v2735
    %v2933 = vmul.f32 %v2921, %v2736
    %v2934 = vmul.f32 %v2925, %v2737
    %v2935 = vmul.f32 %v2929, %v2738
    %v2936 = vld [vmem:[#allocation6] sm:$0xff]
    %v2937 = vld [vmem:[#allocation6 + $0x8] sm:$0xff]
    %v2938 = vld [vmem:[#allocation6 + $0x10] sm:$0xff]
    %v2939 = vld [vmem:[#allocation6 + $0x18] sm:$0xff]
    %v2940 = vld [vmem:[#allocation6 + $0x20] sm:$0xff]
    %v2941 = vld [vmem:[#allocation6 + $0x28] sm:$0xff]
    %v2942 = vld [vmem:[#allocation6 + $0x30] sm:$0xff]
    %v2943 = vld [vmem:[#allocation6 + $0x38] sm:$0xff]
    %v2944 = vld [vmem:[#allocation6 + $0x40] sm:$0xff]
    %v2945 = vld [vmem:[#allocation6 + $0x48] sm:$0xff]
    %v2946 = vld [vmem:[#allocation6 + $0x50] sm:$0xff]
    %v2947 = vld [vmem:[#allocation6 + $0x58] sm:$0xff]
    %v2948 = vld [vmem:[#allocation6 + $0x60] sm:$0xff]
    %v2949 = vld [vmem:[#allocation6 + $0x68] sm:$0xff]
    %v2950 = vld [vmem:[#allocation6 + $0x70] sm:$0xff]
    %v2951 = vld [vmem:[#allocation6 + $0x78] sm:$0xff]
    %2952 = vmatprep.subr.mxu0 0.0
    %2953 = vmatpush1.msra.mxu0 %v2936
    %2954 = vmatprep.subr.mxu0 0.0
    %2955 = vmatpush1.msra.mxu0 %v2937
    %2956 = vmatprep.subr.mxu0 0.0
    %2957 = vmatpush1.msra.mxu0 %v2938
    %2958 = vmatprep.subr.mxu0 0.0
    %2959 = vmatpush1.msra.mxu0 %v2939
    %2960 = vmatprep.subr.mxu0 0.0
    %2961 = vmatpush1.msra.mxu0 %v2940
    %2962 = vmatprep.subr.mxu0 0.0
    %2963 = vmatpush1.msra.mxu0 %v2941
    %2964 = vmatprep.subr.mxu0 0.0
    %2965 = vmatpush1.msra.mxu0 %v2942
    %2966 = vmatprep.subr.mxu0 0.0
    %2967 = vmatpush1.msra.mxu0 %v2943
    %2968 = vmatprep.subr.mxu0 0.0
    %2969 = vmatpush1.msra.mxu0 %v2944
    %2970 = vmatprep.subr.mxu0 0.0
    %2971 = vmatpush1.msra.mxu0 %v2945
    %2972 = vmatprep.subr.mxu0 0.0
    %2973 = vmatpush1.msra.mxu0 %v2946
    %2974 = vmatprep.subr.mxu0 0.0
    %2975 = vmatpush1.msra.mxu0 %v2947
    %2976 = vmatprep.subr.mxu0 0.0
    %2977 = vmatpush1.msra.mxu0 %v2948
    %2978 = vmatprep.subr.mxu0 0.0
    %2979 = vmatpush1.msra.mxu0 %v2949
    %2980 = vmatprep.subr.mxu0 0.0
    %2981 = vmatpush1.msra.mxu0 %v2950
    %2982 = vmatprep.subr.mxu0 0.0
    %2983 = vmatpush1.msra.mxu0 %v2951
    %2984 = vmatprep.subr.mxu0 0.0
    %2985 = vmatpush1.msra.mxu0 0.0
    %2986 = vmatprep.subr.mxu0 0.0
    %2987 = vmatpush1.msra.mxu0 0.0
    %2988 = vmatprep.subr.mxu0 0.0
    %2989 = vmatpush1.msra.mxu0 0.0
    %2990 = vmatprep.subr.mxu0 0.0
    %2991 = vmatpush1.msra.mxu0 0.0
    %2992 = vmatprep.subr.mxu0 0.0
    %2993 = vmatpush1.msra.mxu0 0.0
    %2994 = vmatprep.subr.mxu0 0.0
    %2995 = vmatpush1.msra.mxu0 0.0
    %2996 = vmatprep.subr.mxu0 0.0
    %2997 = vmatpush1.msra.mxu0 0.0
    %2998 = vmatprep.subr.mxu0 0.0
    %2999 = vmatpush1.msra.mxu0 0.0
    %3000 = vmatprep.subr.mxu0 0.0
    %3001 = vmatpush1.msra.mxu0 0.0
    %3002 = vmatprep.subr.mxu0 0.0
    %3003 = vmatpush1.msra.mxu0 0.0
    %3004 = vmatprep.subr.mxu0 0.0
    %3005 = vmatpush1.msra.mxu0 0.0
    %3006 = vmatprep.subr.mxu0 0.0
    %3007 = vmatpush1.msra.mxu0 0.0
    %3008 = vmatprep.subr.mxu0 0.0
    %3009 = vmatpush1.msra.mxu0 0.0
    %3010 = vmatprep.subr.mxu0 0.0
    %3011 = vmatpush1.msra.mxu0 0.0
    %3012 = vmatprep.subr.mxu0 0.0
    %3013 = vmatpush1.msra.mxu0 0.0
    %3014 = vmatprep.subr.mxu0 0.0
    %3015 = vmatpush1.msra.mxu0 0.0
    %3016 = vmatprep.mubr.f32.mxu0 0.0
    %3017 = vmatmul.mubr.f32.gmra.mrb[0].mxu0 %v2932
    %v3018 = vpop.f32.mrb[0].mxu0
    %v3019 = vadd.f32 0.0, %v3018
    %v3020 = vpop.f32.mrb[0].mxu0
    %3021 = vmatprep.mubr.f32.mxu0 0.0
    %3022 = vmatmul.mubr.f32.gmra.mrb[0].mxu0 %v2933
    %v3023 = vpop.f32.mrb[0].mxu0
    %v3024 = vadd.f32 0.0, %v3023
    %v3025 = vpop.f32.mrb[0].mxu0
    %3026 = vmatprep.mubr.f32.mxu0 0.0
    %3027 = vmatmul.mubr.f32.gmra.mrb[0].mxu0 %v2934
    %v3028 = vpop.f32.mrb[0].mxu0
    %v3029 = vadd.f32 0.0, %v3028
    %v3030 = vpop.f32.mrb[0].mxu0
    %3031 = vmatprep.mubr.f32.mxu0 0.0
    %3032 = vmatmul.mubr.f32.gmra.mrb[0].mxu0 %v2935
    %v3033 = vpop.f32.mrb[0].mxu0
    %v3034 = vadd.f32 0.0, %v3033
    %v3035 = vpop.f32.mrb[0].mxu0
    %3036 = vdwg.mxu0
    %v3037 = vadd.f32 %v2745, %v3019
    %v3038 = vadd.f32 %v2748, %v3024
    %v3039 = vadd.f32 %v2751, %v3029
    %v3040 = vadd.f32 %v2754, %v3034
    %v3041 = vtanh.pop %v3037
    %v3042 = vtanh.pop %v3038
    %v3043 = vtanh.pop %v3039
    %v3044 = vtanh.pop %v3040
    %v3045 = vmul.f32 %v2919, %v2735
    %v3046 = vmul.f32 %v2923, %v2736
    %v3047 = vmul.f32 %v2927, %v2737
    %v3048 = vmul.f32 %v2931, %v2738
    %v3049 = vsub.f32 1.0, %v2919
    %v3050 = vsub.f32 1.0, %v2923
    %v3051 = vsub.f32 1.0, %v2927
    %v3052 = vsub.f32 1.0, %v2931
    %v3053 = vmul.f32 %v3049, %v3041
    %v3054 = vmul.f32 %v3050, %v3042
    %v3055 = vmul.f32 %v3051, %v3043
    %v3056 = vmul.f32 %v3052, %v3044
    %v3057 = vadd.f32 %v3045, %v3053
    %v3058 = vadd.f32 %v3046, %v3054
    %v3059 = vadd.f32 %v3047, %v3055
    %v3060 = vadd.f32 %v3048, %v3056
    %3061 = vst [vmem:[#allocation9 + $0xc0] sm:$0xff] %v3057
    %3062 = vst [vmem:[#allocation9 + $0xc8] sm:$0xff] %v3058
    %3063 = vst [vmem:[#allocation9 + $0xd0] sm:$0xff] %v3059
    %3064 = vst [vmem:[#allocation9 + $0xd8] sm:$0xff] %v3060
    %v3065 = vld [vmem:[#allocation2 + $0x150] sm:$0xff]
    %v3066 = vld [vmem:[#allocation2 + $0x158] sm:$0xff]
    %v3067 = vld [vmem:[#allocation2 + $0x160] sm:$0xff]
    %v3068 = vld [vmem:[#allocation2 + $0x168] sm:$0xff]
    %v3069 = vld [vmem:[#allocation2 + $0x170] sm:$0xff]
    %v3070 = vld [vmem:[#allocation2 + $0x178] sm:$0xff]
    %v3071 = vld [vmem:[#allocation2 + $0x2d0] sm:$0xff]
    %v3072 = vld [vmem:[#allocation2 + $0x2d8] sm:$0xff]
    %v3073 = vld [vmem:[#allocation2 + $0x2e0] sm:$0xff]
    %v3074 = vld [vmem:[#allocation2 + $0x2e8] sm:$0xff]
    %v3075 = vld [vmem:[#allocation2 + $0x2f0] sm:$0xff]
    %v3076 = vld [vmem:[#allocation2 + $0x2f8] sm:$0xff]
    %v3077 = vld [vmem:[%s4] sm:$0xff]
    %v3078 = vld [vmem:[%s4 + $0x8] sm:$0xff]
    %v3079 = vld [vmem:[%s4 + $0x10] sm:$0xff]
    %v3080 = vld [vmem:[%s4 + $0x18] sm:$0xff]
    %v3081 = vld [vmem:[%s4 + $0x20] sm:$0xff]
    %v3082 = vld [vmem:[%s4 + $0x28] sm:$0xff]
    %v3083 = vld [vmem:[%s4 + $0x30] sm:$0xff]
    %v3084 = vld [vmem:[%s4 + $0x38] sm:$0xff]
    %v3085 = vld [vmem:[%s4 + $0x40] sm:$0xff]
    %v3086 = vld [vmem:[%s4 + $0x48] sm:$0xff]
    %v3087 = vld [vmem:[%s4 + $0x50] sm:$0xff]
    %v3088 = vld [vmem:[%s4 + $0x58] sm:$0xff]
    %v3089 = vld [vmem:[%s4 + $0x60] sm:$0xff]
    %v3090 = vld [vmem:[%s4 + $0x68] sm:$0xff]
    %v3091 = vld [vmem:[%s4 + $0x70] sm:$0xff]
    %v3092 = vld [vmem:[%s4 + $0x78] sm:$0xff]
    %v3093 = vld [vmem:[%s4 + $0x80] sm:$0xff]
    %v3094 = vld [vmem:[%s4 + $0x88] sm:$0xff]
    %v3095 = vld [vmem:[%s4 + $0x90] sm:$0xff]
    %v3096 = vld [vmem:[%s4 + $0x98] sm:$0xff]
    %v3097 = vld [vmem:[%s4 + $0xa0] sm:$0xff]
    %v3098 = vld [vmem:[%s4 + $0xa8] sm:$0xff]
    %v3099 = vld [vmem:[%s4 + $0xb0] sm:$0xff]
    %v3100 = vld [vmem:[%s4 + $0xb8] sm:$0xff]
    %v3101 = vld [vmem:[%s4 + $0xc0] sm:$0xff]
    %v3102 = vld [vmem:[%s4 + $0xc8] sm:$0xff]
    %v3103 = vld [vmem:[%s4 + $0xd0] sm:$0xff]
    %v3104 = vld [vmem:[%s4 + $0xd8] sm:$0xff]
    %v3105 = vld [vmem:[%s4 + $0xe0] sm:$0xff]
    %v3106 = vld [vmem:[%s4 + $0xe8] sm:$0xff]
    %v3107 = vld [vmem:[%s4 + $0xf0] sm:$0xff]
    %v3108 = vld [vmem:[%s4 + $0xf8] sm:$0xff]
    %3109 = vmatprep.subr.mxu0 %v3078
    %3110 = vmatpush1.msra.mxu0 %v3077
    %3111 = vmatprep.subr.mxu0 %v3080
    %3112 = vmatpush1.msra.mxu0 %v3079
    %3113 = vmatprep.subr.mxu0 %v3082
    %3114 = vmatpush1.msra.mxu0 %v3081
    %3115 = vmatprep.subr.mxu0 %v3084
    %3116 = vmatpush1.msra.mxu0 %v3083
    %3117 = vmatprep.subr.mxu0 %v3086
    %3118 = vmatpush1.msra.mxu0 %v3085
    %3119 = vmatprep.subr.mxu0 %v3088
    %3120 = vmatpush1.msra.mxu0 %v3087
    %3121 = vmatprep.subr.mxu0 %v3090
    %3122 = vmatpush1.msra.mxu0 %v3089
    %3123 = vmatprep.subr.mxu0 %v3092
    %3124 = vmatpush1.msra.mxu0 %v3091
    %3125 = vmatprep.subr.mxu0 %v3094
    %3126 = vmatpush1.msra.mxu0 %v3093
    %3127 = vmatprep.subr.mxu0 %v3096
    %3128 = vmatpush1.msra.mxu0 %v3095
    %3129 = vmatprep.subr.mxu0 %v3098
    %3130 = vmatpush1.msra.mxu0 %v3097
    %3131 = vmatprep.subr.mxu0 %v3100
    %3132 = vmatpush1.msra.mxu0 %v3099
    %3133 = vmatprep.subr.mxu0 %v3102
    %3134 = vmatpush1.msra.mxu0 %v3101
    %3135 = vmatprep.subr.mxu0 %v3104
    %3136 = vmatpush1.msra.mxu0 %v3103
    %3137 = vmatprep.subr.mxu0 %v3106
    %3138 = vmatpush1.msra.mxu0 %v3105
    %3139 = vmatprep.subr.mxu0 %v3108
    %3140 = vmatpush1.msra.mxu0 %v3107
    %3141 = vmatprep.subr.mxu0 0.0
    %3142 = vmatpush1.msra.mxu0 0.0
    %3143 = vmatprep.subr.mxu0 0.0
    %3144 = vmatpush1.msra.mxu0 0.0
    %3145 = vmatprep.subr.mxu0 0.0
    %3146 = vmatpush1.msra.mxu0 0.0
    %3147 = vmatprep.subr.mxu0 0.0
    %3148 = vmatpush1.msra.mxu0 0.0
    %3149 = vmatprep.subr.mxu0 0.0
    %3150 = vmatpush1.msra.mxu0 0.0
    %3151 = vmatprep.subr.mxu0 0.0
    %3152 = vmatpush1.msra.mxu0 0.0
    %3153 = vmatprep.subr.mxu0 0.0
    %3154 = vmatpush1.msra.mxu0 0.0
    %3155 = vmatprep.subr.mxu0 0.0
    %3156 = vmatpush1.msra.mxu0 0.0
    %3157 = vmatprep.subr.mxu0 0.0
    %3158 = vmatpush1.msra.mxu0 0.0
    %3159 = vmatprep.subr.mxu0 0.0
    %3160 = vmatpush1.msra.mxu0 0.0
    %3161 = vmatprep.subr.mxu0 0.0
    %3162 = vmatpush1.msra.mxu0 0.0
    %3163 = vmatprep.subr.mxu0 0.0
    %3164 = vmatpush1.msra.mxu0 0.0
    %3165 = vmatprep.subr.mxu0 0.0
    %3166 = vmatpush1.msra.mxu0 0.0
    %3167 = vmatprep.subr.mxu0 0.0
    %3168 = vmatpush1.msra.mxu0 0.0
    %3169 = vmatprep.subr.mxu0 0.0
    %3170 = vmatpush1.msra.mxu0 0.0
    %3171 = vmatprep.subr.mxu0 0.0
    %3172 = vmatpush1.msra.mxu0 0.0
    %3173 = vmatprep.mubr.f32.mxu0 0.0
    %3174 = vmatmul.mubr.f32.gmra.mrb[0].mxu0 %v3057
    %v3175 = vpop.f32.mrb[0].mxu0
    %v3176 = vadd.f32 0.0, %v3175
    %v3177 = vpop.f32.mrb[0].mxu0
    %v3178 = vadd.f32 0.0, %v3177
    %3179 = vmatprep.mubr.f32.mxu0 0.0
    %3180 = vmatmul.mubr.f32.gmra.mrb[0].mxu0 %v3058
    %v3181 = vpop.f32.mrb[0].mxu0
    %v3182 = vadd.f32 0.0, %v3181
    %v3183 = vpop.f32.mrb[0].mxu0
    %v3184 = vadd.f32 0.0, %v3183
    %3185 = vmatprep.mubr.f32.mxu0 0.0
    %3186 = vmatmul.mubr.f32.gmra.mrb[0].mxu0 %v3059
    %v3187 = vpop.f32.mrb[0].mxu0
    %v3188 = vadd.f32 0.0, %v3187
    %v3189 = vpop.f32.mrb[0].mxu0
    %v3190 = vadd.f32 0.0, %v3189
    %3191 = vmatprep.mubr.f32.mxu0 0.0
    %3192 = vmatmul.mubr.f32.gmra.mrb[0].mxu0 %v3060
    %v3193 = vpop.f32.mrb[0].mxu0
    %v3194 = vadd.f32 0.0, %v3193
    %v3195 = vpop.f32.mrb[0].mxu0
    %v3196 = vadd.f32 0.0, %v3195
    %3197 = vdwg.mxu0
    %v3198 = vadd.f32 %v3065, %v3176
    %v3199 = vadd.f32 %v3066, %v3178
    %v3200 = vadd.f32 %v3068, %v3182
    %v3201 = vadd.f32 %v3069, %v3184
    %v3202 = vadd.f32 %v3071, %v3188
    %v3203 = vadd.f32 %v3072, %v3190
    %v3204 = vadd.f32 %v3074, %v3194
    %v3205 = vadd.f32 %v3075, %v3196
    %v3206 = vxor.u32 %v3198, 2147483648
    %v3207 = vxor.u32 %v3199, 2147483648
    %v3208 = vxor.u32 %v3200, 2147483648
    %v3209 = vxor.u32 %v3201, 2147483648
    %v3210 = vxor.u32 %v3202, 2147483648
    %v3211 = vxor.u32 %v3203, 2147483648
    %v3212 = vxor.u32 %v3204, 2147483648
    %v3213 = vxor.u32 %v3205, 2147483648
    %v3214 = vmul.f32 %v3206, 1.442695
    %v3215 = vpow.pop %v3214
    %v3216 = vmul.f32 %v3207, 1.442695
    %v3217 = vpow.pop %v3216
    %v3218 = vmul.f32 %v3208, 1.442695
    %v3219 = vpow.pop %v3218
    %v3220 = vmul.f32 %v3209, 1.442695
    %v3221 = vpow.pop %v3220
    %v3222 = vmul.f32 %v3210, 1.442695
    %v3223 = vpow.pop %v3222
    %v3224 = vmul.f32 %v3211, 1.442695
    %v3225 = vpow.pop %v3224
    %v3226 = vmul.f32 %v3212, 1.442695
    %v3227 = vpow.pop %v3226
    %v3228 = vmul.f32 %v3213, 1.442695
    %v3229 = vpow.pop %v3228
    %v3230 = vadd.f32 %v3215, 1.0
    %v3231 = vadd.f32 %v3217, 1.0
    %v3232 = vadd.f32 %v3219, 1.0
    %v3233 = vadd.f32 %v3221, 1.0
    %v3234 = vadd.f32 %v3223, 1.0
    %v3235 = vadd.f32 %v3225, 1.0
    %v3236 = vadd.f32 %v3227, 1.0
    %v3237 = vadd.f32 %v3229, 1.0
    %v3238 = vrcp.pop %v3230
    %v3239 = vmul.f32 1.0, %v3238
    %v3240 = vrcp.pop %v3231
    %v3241 = vmul.f32 1.0, %v3240
    %v3242 = vrcp.pop %v3232
    %v3243 = vmul.f32 1.0, %v3242
    %v3244 = vrcp.pop %v3233
    %v3245 = vmul.f32 1.0, %v3244
    %v3246 = vrcp.pop %v3234
    %v3247 = vmul.f32 1.0, %v3246
    %v3248 = vrcp.pop %v3235
    %v3249 = vmul.f32 1.0, %v3248
    %v3250 = vrcp.pop %v3236
    %v3251 = vmul.f32 1.0, %v3250
    %v3252 = vrcp.pop %v3237
    %v3253 = vmul.f32 1.0, %v3252
    %v3254 = vmul.f32 %v3239, %v3057
    %v3255 = vmul.f32 %v3243, %v3058
    %v3256 = vmul.f32 %v3247, %v3059
    %v3257 = vmul.f32 %v3251, %v3060
    %v3258 = vld [vmem:[#allocation6] sm:$0xff]
    %v3259 = vld [vmem:[#allocation6 + $0x8] sm:$0xff]
    %v3260 = vld [vmem:[#allocation6 + $0x10] sm:$0xff]
    %v3261 = vld [vmem:[#allocation6 + $0x18] sm:$0xff]
    %v3262 = vld [vmem:[#allocation6 + $0x20] sm:$0xff]
    %v3263 = vld [vmem:[#allocation6 + $0x28] sm:$0xff]
    %v3264 = vld [vmem:[#allocation6 + $0x30] sm:$0xff]
    %v3265 = vld [vmem:[#allocation6 + $0x38] sm:$0xff]
    %v3266 = vld [vmem:[#allocation6 + $0x40] sm:$0xff]
    %v3267 = vld [vmem:[#allocation6 + $0x48] sm:$0xff]
    %v3268 = vld [vmem:[#allocation6 + $0x50] sm:$0xff]
    %v3269 = vld [vmem:[#allocation6 + $0x58] sm:$0xff]
    %v3270 = vld [vmem:[#allocation6 + $0x60] sm:$0xff]
    %v3271 = vld [vmem:[#allocation6 + $0x68] sm:$0xff]
    %v3272 = vld [vmem:[#allocation6 + $0x70] sm:$0xff]
    %v3273 = vld [vmem:[#allocation6 + $0x78] sm:$0xff]
    %3274 = vmatprep.subr.mxu0 0.0
    %3275 = vmatpush1.msra.mxu0 %v3258
    %3276 = vmatprep.subr.mxu0 0.0
    %3277 = vmatpush1.msra.mxu0 %v3259
    %3278 = vmatprep.subr.mxu0 0.0
    %3279 = vmatpush1.msra.mxu0 %v3260
    %3280 = vmatprep.subr.mxu0 0.0
    %3281 = vmatpush1.msra.mxu0 %v3261
    %3282 = vmatprep.subr.mxu0 0.0
    %3283 = vmatpush1.msra.mxu0 %v3262
    %3284 = vmatprep.subr.mxu0 0.0
    %3285 = vmatpush1.msra.mxu0 %v3263
    %3286 = vmatprep.subr.mxu0 0.0
    %3287 = vmatpush1.msra.mxu0 %v3264
    %3288 = vmatprep.subr.mxu0 0.0
    %3289 = vmatpush1.msra.mxu0 %v3265
    %3290 = vmatprep.subr.mxu0 0.0
    %3291 = vmatpush1.msra.mxu0 %v3266
    %3292 = vmatprep.subr.mxu0 0.0
    %3293 = vmatpush1.msra.mxu0 %v3267
    %3294 = vmatprep.subr.mxu0 0.0
    %3295 = vmatpush1.msra.mxu0 %v3268
    %3296 = vmatprep.subr.mxu0 0.0
    %3297 = vmatpush1.msra.mxu0 %v3269
    %3298 = vmatprep.subr.mxu0 0.0
    %3299 = vmatpush1.msra.mxu0 %v3270
    %3300 = vmatprep.subr.mxu0 0.0
    %3301 = vmatpush1.msra.mxu0 %v3271
    %3302 = vmatprep.subr.mxu0 0.0
    %3303 = vmatpush1.msra.mxu0 %v3272
    %3304 = vmatprep.subr.mxu0 0.0
    %3305 = vmatpush1.msra.mxu0 %v3273
    %3306 = vmatprep.subr.mxu0 0.0
    %3307 = vmatpush1.msra.mxu0 0.0
    %3308 = vmatprep.subr.mxu0 0.0
    %3309 = vmatpush1.msra.mxu0 0.0
    %3310 = vmatprep.subr.mxu0 0.0
    %3311 = vmatpush1.msra.mxu0 0.0
    %3312 = vmatprep.subr.mxu0 0.0
    %3313 = vmatpush1.msra.mxu0 0.0
    %3314 = vmatprep.subr.mxu0 0.0
    %3315 = vmatpush1.msra.mxu0 0.0
    %3316 = vmatprep.subr.mxu0 0.0
    %3317 = vmatpush1.msra.mxu0 0.0
    %3318 = vmatprep.subr.mxu0 0.0
    %3319 = vmatpush1.msra.mxu0 0.0
    %3320 = vmatprep.subr.mxu0 0.0
    %3321 = vmatpush1.msra.mxu0 0.0
    %3322 = vmatprep.subr.mxu0 0.0
    %3323 = vmatpush1.msra.mxu0 0.0
    %3324 = vmatprep.subr.mxu0 0.0
    %3325 = vmatpush1.msra.mxu0 0.0
    %3326 = vmatprep.subr.mxu0 0.0
    %3327 = vmatpush1.msra.mxu0 0.0
    %3328 = vmatprep.subr.mxu0 0.0
    %3329 = vmatpush1.msra.mxu0 0.0
    %3330 = vmatprep.subr.mxu0 0.0
    %3331 = vmatpush1.msra.mxu0 0.0
    %3332 = vmatprep.subr.mxu0 0.0
    %3333 = vmatpush1.msra.mxu0 0.0
    %3334 = vmatprep.subr.mxu0 0.0
    %3335 = vmatpush1.msra.mxu0 0.0
    %3336 = vmatprep.subr.mxu0 0.0
    %3337 = vmatpush1.msra.mxu0 0.0
    %3338 = vmatprep.mubr.f32.mxu0 0.0
    %3339 = vmatmul.mubr.f32.gmra.mrb[0].mxu0 %v3254
    %v3340 = vpop.f32.mrb[0].mxu0
    %v3341 = vadd.f32 0.0, %v3340
    %v3342 = vpop.f32.mrb[0].mxu0
    %3343 = vmatprep.mubr.f32.mxu0 0.0
    %3344 = vmatmul.mubr.f32.gmra.mrb[0].mxu0 %v3255
    %v3345 = vpop.f32.mrb[0].mxu0
    %v3346 = vadd.f32 0.0, %v3345
    %v3347 = vpop.f32.mrb[0].mxu0
    %3348 = vmatprep.mubr.f32.mxu0 0.0
    %3349 = vmatmul.mubr.f32.gmra.mrb[0].mxu0 %v3256
    %v3350 = vpop.f32.mrb[0].mxu0
    %v3351 = vadd.f32 0.0, %v3350
    %v3352 = vpop.f32.mrb[0].mxu0
    %3353 = vmatprep.mubr.f32.mxu0 0.0
    %3354 = vmatmul.mubr.f32.gmra.mrb[0].mxu0 %v3257
    %v3355 = vpop.f32.mrb[0].mxu0
    %v3356 = vadd.f32 0.0, %v3355
    %v3357 = vpop.f32.mrb[0].mxu0
    %3358 = vdwg.mxu0
    %v3359 = vadd.f32 %v3067, %v3341
    %v3360 = vadd.f32 %v3070, %v3346
    %v3361 = vadd.f32 %v3073, %v3351
    %v3362 = vadd.f32 %v3076, %v3356
    %v3363 = vtanh.pop %v3359
    %v3364 = vtanh.pop %v3360
    %v3365 = vtanh.pop %v3361
    %v3366 = vtanh.pop %v3362
    %v3367 = vmul.f32 %v3241, %v3057
    %v3368 = vmul.f32 %v3245, %v3058
    %v3369 = vmul.f32 %v3249, %v3059
    %v3370 = vmul.f32 %v3253, %v3060
    %v3371 = vsub.f32 1.0, %v3241
    %v3372 = vsub.f32 1.0, %v3245
    %v3373 = vsub.f32 1.0, %v3249
    %v3374 = vsub.f32 1.0, %v3253
    %v3375 = vmul.f32 %v3371, %v3363
    %v3376 = vmul.f32 %v3372, %v3364
    %v3377 = vmul.f32 %v3373, %v3365
    %v3378 = vmul.f32 %v3374, %v3366
    %v3379 = vadd.f32 %v3367, %v3375
    %v3380 = vadd.f32 %v3368, %v3376
    %v3381 = vadd.f32 %v3369, %v3377
    %v3382 = vadd.f32 %v3370, %v3378
    %3383 = vst [vmem:[#allocation9 + $0xe0] sm:$0xff] %v3379
    %3384 = vst [vmem:[#allocation9 + $0xe8] sm:$0xff] %v3380
    %3385 = vst [vmem:[#allocation9 + $0xf0] sm:$0xff] %v3381
    %3386 = vst [vmem:[#allocation9 + $0xf8] sm:$0xff] %v3382
    %v3387 = vld [vmem:[#allocation9] sm:$0xff]
    %v3388 = vld [vmem:[#allocation9 + $0x8] sm:$0xff]
    %v3389 = vld [vmem:[#allocation9 + $0x10] sm:$0xff]
    %v3390 = vld [vmem:[#allocation9 + $0x18] sm:$0xff]
    %v3391 = vld [vmem:[#allocation9 + $0x20] sm:$0xff]
    %v3392 = vld [vmem:[#allocation9 + $0x28] sm:$0xff]
    %v3393 = vld [vmem:[#allocation9 + $0x30] sm:$0xff]
    %v3394 = vld [vmem:[#allocation9 + $0x38] sm:$0xff]
    %v3395 = vld [vmem:[#allocation9 + $0x40] sm:$0xff]
    %v3396 = vld [vmem:[#allocation9 + $0x48] sm:$0xff]
    %v3397 = vld [vmem:[#allocation9 + $0x50] sm:$0xff]
    %v3398 = vld [vmem:[#allocation9 + $0x58] sm:$0xff]
    %v3399 = vld [vmem:[#allocation9 + $0x60] sm:$0xff]
    %v3400 = vld [vmem:[#allocation9 + $0x68] sm:$0xff]
    %v3401 = vld [vmem:[#allocation9 + $0x70] sm:$0xff]
    %v3402 = vld [vmem:[#allocation9 + $0x78] sm:$0xff]
    %v3403 = vld [vmem:[#allocation9 + $0x80] sm:$0xff]
    %v3404 = vld [vmem:[#allocation9 + $0x88] sm:$0xff]
    %v3405 = vld [vmem:[#allocation9 + $0x90] sm:$0xff]
    %v3406 = vld [vmem:[#allocation9 + $0x98] sm:$0xff]
    %v3407 = vld [vmem:[#allocation9 + $0xa0] sm:$0xff]
    %v3408 = vld [vmem:[#allocation9 + $0xa8] sm:$0xff]
    %v3409 = vld [vmem:[#allocation9 + $0xb0] sm:$0xff]
    %v3410 = vld [vmem:[#allocation9 + $0xb8] sm:$0xff]
    %v3411 = vld [vmem:[#allocation9 + $0xc0] sm:$0xff]
    %v3412 = vld [vmem:[#allocation9 + $0xc8] sm:$0xff]
    %v3413 = vld [vmem:[#allocation9 + $0xd0] sm:$0xff]
    %v3414 = vld [vmem:[#allocation9 + $0xd8] sm:$0xff]
    %v3415 = vld [vmem:[#allocation9 + $0xe0] sm:$0xff]
    %v3416 = vld [vmem:[#allocation9 + $0xe8] sm:$0xff]
    %v3417 = vld [vmem:[#allocation9 + $0xf0] sm:$0xff]
    %v3418 = vld [vmem:[#allocation9 + $0xf8] sm:$0xff]
    %v3419 = vld [vmem:[#allocation8] sm:$0xff]
    %v3420 = vld [vmem:[#allocation8 + $0x8] sm:$0xff]
    %v3421 = vld [vmem:[#allocation8 + $0x10] sm:$0xff]
    %v3422 = vld [vmem:[#allocation8 + $0x18] sm:$0xff]
    %v3423 = vld [vmem:[#allocation8 + $0x20] sm:$0xff]
    %v3424 = vld [vmem:[#allocation8 + $0x28] sm:$0xff]
    %v3425 = vld [vmem:[#allocation8 + $0x30] sm:$0xff]
    %v3426 = vld [vmem:[#allocation8 + $0x38] sm:$0xff]
    %v3427 = vld [vmem:[#allocation8 + $0x40] sm:$0xff]
    %v3428 = vld [vmem:[#allocation8 + $0x48] sm:$0xff]
    %v3429 = vld [vmem:[#allocation8 + $0x50] sm:$0xff]
    %v3430 = vld [vmem:[#allocation8 + $0x58] sm:$0xff]
    %v3431 = vld [vmem:[#allocation8 + $0x60] sm:$0xff]
    %v3432 = vld [vmem:[#allocation8 + $0x68] sm:$0xff]
    %v3433 = vld [vmem:[#allocation8 + $0x70] sm:$0xff]
    %v3434 = vld [vmem:[#allocation8 + $0x78] sm:$0xff]
    %v3435 = vld [vmem:[%s7] sm:$0x1]
    %v3437 = vlaneseq
    %v3438 = vshrl.u32 %v3437, 7
    %v3439 = vsub.s32 0, %v3438
    %v3440 = vrot.slane %v3435, %v3439
    %3442 = vmatprep.subr.mxu0 0.0
    %3443 = vmatpush1.msra.mxu0 %v3419
    %3444 = vmatprep.subr.mxu0 0.0
    %3445 = vmatpush1.msra.mxu0 %v3420
    %3446 = vmatprep.subr.mxu0 0.0
    %3447 = vmatpush1.msra.mxu0 %v3421
    %3448 = vmatprep.subr.mxu0 0.0
    %3449 = vmatpush1.msra.mxu0 %v3422
    %3450 = vmatprep.subr.mxu0 0.0
    %3451 = vmatpush1.msra.mxu0 %v3423
    %3452 = vmatprep.subr.mxu0 0.0
    %3453 = vmatpush1.msra.mxu0 %v3424
    %3454 = vmatprep.subr.mxu0 0.0
    %3455 = vmatpush1.msra.mxu0 %v3425
    %3456 = vmatprep.subr.mxu0 0.0
    %3457 = vmatpush1.msra.mxu0 %v3426
    %3458 = vmatprep.subr.mxu0 0.0
    %3459 = vmatpush1.msra.mxu0 %v3427
    %3460 = vmatprep.subr.mxu0 0.0
    %3461 = vmatpush1.msra.mxu0 %v3428
    %3462 = vmatprep.subr.mxu0 0.0
    %3463 = vmatpush1.msra.mxu0 %v3429
    %3464 = vmatprep.subr.mxu0 0.0
    %3465 = vmatpush1.msra.mxu0 %v3430
    %3466 = vmatprep.subr.mxu0 0.0
    %3467 = vmatpush1.msra.mxu0 %v3431
    %3468 = vmatprep.subr.mxu0 0.0
    %3469 = vmatpush1.msra.mxu0 %v3432
    %3470 = vmatprep.subr.mxu0 0.0
    %3471 = vmatpush1.msra.mxu0 %v3433
    %3472 = vmatprep.subr.mxu0 0.0
    %3473 = vmatpush1.msra.mxu0 %v3434
    %3474 = vmatprep.subr.mxu0 0.0
    %3475 = vmatpush1.msra.mxu0 0.0
    %3476 = vmatprep.subr.mxu0 0.0
    %3477 = vmatpush1.msra.mxu0 0.0
    %3478 = vmatprep.subr.mxu0 0.0
    %3479 = vmatpush1.msra.mxu0 0.0
    %3480 = vmatprep.subr.mxu0 0.0
    %3481 = vmatpush1.msra.mxu0 0.0
    %3482 = vmatprep.subr.mxu0 0.0
    %3483 = vmatpush1.msra.mxu0 0.0
    %3484 = vmatprep.subr.mxu0 0.0
    %3485 = vmatpush1.msra.mxu0 0.0
    %3486 = vmatprep.subr.mxu0 0.0
    %3487 = vmatpush1.msra.mxu0 0.0
    %3488 = vmatprep.subr.mxu0 0.0
    %3489 = vmatpush1.msra.mxu0 0.0
    %3490 = vmatprep.subr.mxu0 0.0
    %3491 = vmatpush1.msra.mxu0 0.0
    %3492 = vmatprep.subr.mxu0 0.0
    %3493 = vmatpush1.msra.mxu0 0.0
    %3494 = vmatprep.subr.mxu0 0.0
    %3495 = vmatpush1.msra.mxu0 0.0
    %3496 = vmatprep.subr.mxu0 0.0
    %3497 = vmatpush1.msra.mxu0 0.0
    %3498 = vmatprep.subr.mxu0 0.0
    %3499 = vmatpush1.msra.mxu0 0.0
    %3500 = vmatprep.subr.mxu0 0.0
    %3501 = vmatpush1.msra.mxu0 0.0
    %3502 = vmatprep.subr.mxu0 0.0
    %3503 = vmatpush1.msra.mxu0 0.0
    %3504 = vmatprep.subr.mxu0 0.0
    %3505 = vmatpush1.msra.mxu0 0.0
    %3506 = vmatprep.mubr.f32.mxu0 0.0
    %3507 = vmatmul.mubr.f32.gmra.mrb[0].mxu0 %v3387
    %v3508 = vpop.f32.mrb[0].mxu0
    %v3509 = vadd.f32 %v3440, %v3508
    %v3510 = vpop.f32.mrb[0].mxu0
    %3511 = vmatprep.mubr.f32.mxu0 0.0
    %3512 = vmatmul.mubr.f32.gmra.mrb[0].mxu0 %v3388
    %v3513 = vpop.f32.mrb[0].mxu0
    %v3514 = vadd.f32 %v3440, %v3513
    %v3515 = vpop.f32.mrb[0].mxu0
    %3516 = vmatprep.mubr.f32.mxu0 0.0
    %3517 = vmatmul.mubr.f32.gmra.mrb[0].mxu0 %v3389
    %v3518 = vpop.f32.mrb[0].mxu0
    %v3519 = vadd.f32 %v3440, %v3518
    %v3520 = vpop.f32.mrb[0].mxu0
    %3521 = vmatprep.mubr.f32.mxu0 0.0
    %3522 = vmatmul.mubr.f32.gmra.mrb[0].mxu0 %v3390
    %v3523 = vpop.f32.mrb[0].mxu0
    %v3524 = vadd.f32 %v3440, %v3523
    %v3525 = vpop.f32.mrb[0].mxu0
    %3526 = vmatprep.mubr.f32.mxu0 0.0
    %3527 = vmatmul.mubr.f32.gmra.mrb[0].mxu0 %v3391
    %v3528 = vpop.f32.mrb[0].mxu0
    %v3529 = vadd.f32 %v3440, %v3528
    %v3530 = vpop.f32.mrb[0].mxu0
    %3531 = vmatprep.mubr.f32.mxu0 0.0
    %3532 = vmatmul.mubr.f32.gmra.mrb[0].mxu0 %v3392
    %v3533 = vpop.f32.mrb[0].mxu0
    %v3534 = vadd.f32 %v3440, %v3533
    %v3535 = vpop.f32.mrb[0].mxu0
    %3536 = vmatprep.mubr.f32.mxu0 0.0
    %3537 = vmatmul.mubr.f32.gmra.mrb[0].mxu0 %v3393
    %v3538 = vpop.f32.mrb[0].mxu0
    %v3539 = vadd.f32 %v3440, %v3538
    %v3540 = vpop.f32.mrb[0].mxu0
    %3541 = vmatprep.mubr.f32.mxu0 0.0
    %3542 = vmatmul.mubr.f32.gmra.mrb[0].mxu0 %v3394
    %v3543 = vpop.f32.mrb[0].mxu0
    %v3544 = vadd.f32 %v3440, %v3543
    %v3545 = vpop.f32.mrb[0].mxu0
    %3546 = vmatprep.mubr.f32.mxu0 0.0
    %3547 = vmatmul.mubr.f32.gmra.mrb[0].mxu0 %v3395
    %v3548 = vpop.f32.mrb[0].mxu0
    %v3549 = vadd.f32 %v3440, %v3548
    %v3550 = vpop.f32.mrb[0].mxu0
    %3551 = vmatprep.mubr.f32.mxu0 0.0
    %3552 = vmatmul.mubr.f32.gmra.mrb[0].mxu0 %v3396
    %v3553 = vpop.f32.mrb[0].mxu0
    %v3554 = vadd.f32 %v3440, %v3553
    %v3555 = vpop.f32.mrb[0].mxu0
    %3556 = vmatprep.mubr.f32.mxu0 0.0
    %3557 = vmatmul.mubr.f32.gmra.mrb[0].mxu0 %v3397
    %v3558 = vpop.f32.mrb[0].mxu0
    %v3559 = vadd.f32 %v3440, %v3558
    %v3560 = vpop.f32.mrb[0].mxu0
    %3561 = vmatprep.mubr.f32.mxu0 0.0
    %3562 = vmatmul.mubr.f32.gmra.mrb[0].mxu0 %v3398
    %v3563 = vpop.f32.mrb[0].mxu0
    %v3564 = vadd.f32 %v3440, %v3563
    %v3565 = vpop.f32.mrb[0].mxu0
    %3566 = vmatprep.mubr.f32.mxu0 0.0
    %3567 = vmatmul.mubr.f32.gmra.mrb[0].mxu0 %v3399
    %v3568 = vpop.f32.mrb[0].mxu0
    %v3569 = vadd.f32 %v3440, %v3568
    %v3570 = vpop.f32.mrb[0].mxu0
    %3571 = vmatprep.mubr.f32.mxu0 0.0
    %3572 = vmatmul.mubr.f32.gmra.mrb[0].mxu0 %v3400
    %v3573 = vpop.f32.mrb[0].mxu0
    %v3574 = vadd.f32 %v3440, %v3573
    %v3575 = vpop.f32.mrb[0].mxu0
    %3576 = vmatprep.mubr.f32.mxu0 0.0
    %3577 = vmatmul.mubr.f32.gmra.mrb[0].mxu0 %v3401
    %v3578 = vpop.f32.mrb[0].mxu0
    %v3579 = vadd.f32 %v3440, %v3578
    %v3580 = vpop.f32.mrb[0].mxu0
    %3581 = vmatprep.mubr.f32.mxu0 0.0
    %3582 = vmatmul.mubr.f32.gmra.mrb[0].mxu0 %v3402
    %v3583 = vpop.f32.mrb[0].mxu0
    %v3584 = vadd.f32 %v3440, %v3583
    %v3585 = vpop.f32.mrb[0].mxu0
    %3586 = vmatprep.mubr.f32.mxu0 0.0
    %3587 = vmatmul.mubr.f32.gmra.mrb[0].mxu0 %v3403
    %v3588 = vpop.f32.mrb[0].mxu0
    %v3589 = vadd.f32 %v3440, %v3588
    %v3590 = vpop.f32.mrb[0].mxu0
    %3591 = vmatprep.mubr.f32.mxu0 0.0
    %3592 = vmatmul.mubr.f32.gmra.mrb[0].mxu0 %v3404
    %v3593 = vpop.f32.mrb[0].mxu0
    %v3594 = vadd.f32 %v3440, %v3593
    %v3595 = vpop.f32.mrb[0].mxu0
    %3596 = vmatprep.mubr.f32.mxu0 0.0
    %3597 = vmatmul.mubr.f32.gmra.mrb[0].mxu0 %v3405
    %v3598 = vpop.f32.mrb[0].mxu0
    %v3599 = vadd.f32 %v3440, %v3598
    %v3600 = vpop.f32.mrb[0].mxu0
    %3601 = vmatprep.mubr.f32.mxu0 0.0
    %3602 = vmatmul.mubr.f32.gmra.mrb[0].mxu0 %v3406
    %v3603 = vpop.f32.mrb[0].mxu0
    %v3604 = vadd.f32 %v3440, %v3603
    %v3605 = vpop.f32.mrb[0].mxu0
    %3606 = vmatprep.mubr.f32.mxu0 0.0
    %3607 = vmatmul.mubr.f32.gmra.mrb[0].mxu0 %v3407
    %v3608 = vpop.f32.mrb[0].mxu0
    %v3609 = vadd.f32 %v3440, %v3608
    %v3610 = vpop.f32.mrb[0].mxu0
    %3611 = vmatprep.mubr.f32.mxu0 0.0
    %3612 = vmatmul.mubr.f32.gmra.mrb[0].mxu0 %v3408
    %v3613 = vpop.f32.mrb[0].mxu0
    %v3614 = vadd.f32 %v3440, %v3613
    %v3615 = vpop.f32.mrb[0].mxu0
    %3616 = vmatprep.mubr.f32.mxu0 0.0
    %3617 = vmatmul.mubr.f32.gmra.mrb[0].mxu0 %v3409
    %v3618 = vpop.f32.mrb[0].mxu0
    %v3619 = vadd.f32 %v3440, %v3618
    %v3620 = vpop.f32.mrb[0].mxu0
    %3621 = vmatprep.mubr.f32.mxu0 0.0
    %3622 = vmatmul.mubr.f32.gmra.mrb[0].mxu0 %v3410
    %v3623 = vpop.f32.mrb[0].mxu0
    %v3624 = vadd.f32 %v3440, %v3623
    %v3625 = vpop.f32.mrb[0].mxu0
    %3626 = vmatprep.mubr.f32.mxu0 0.0
    %3627 = vmatmul.mubr.f32.gmra.mrb[0].mxu0 %v3411
    %v3628 = vpop.f32.mrb[0].mxu0
    %v3629 = vadd.f32 %v3440, %v3628
    %v3630 = vpop.f32.mrb[0].mxu0
    %3631 = vmatprep.mubr.f32.mxu0 0.0
    %3632 = vmatmul.mubr.f32.gmra.mrb[0].mxu0 %v3412
    %v3633 = vpop.f32.mrb[0].mxu0
    %v3634 = vadd.f32 %v3440, %v3633
    %v3635 = vpop.f32.mrb[0].mxu0
    %3636 = vmatprep.mubr.f32.mxu0 0.0
    %3637 = vmatmul.mubr.f32.gmra.mrb[0].mxu0 %v3413
    %v3638 = vpop.f32.mrb[0].mxu0
    %v3639 = vadd.f32 %v3440, %v3638
    %v3640 = vpop.f32.mrb[0].mxu0
    %3641 = vmatprep.mubr.f32.mxu0 0.0
    %3642 = vmatmul.mubr.f32.gmra.mrb[0].mxu0 %v3414
    %v3643 = vpop.f32.mrb[0].mxu0
    %v3644 = vadd.f32 %v3440, %v3643
    %v3645 = vpop.f32.mrb[0].mxu0
    %3646 = vmatprep.mubr.f32.mxu0 0.0
    %3647 = vmatmul.mubr.f32.gmra.mrb[0].mxu0 %v3415
    %v3648 = vpop.f32.mrb[0].mxu0
    %v3649 = vadd.f32 %v3440, %v3648
    %v3650 = vpop.f32.mrb[0].mxu0
    %3651 = vmatprep.mubr.f32.mxu0 0.0
    %3652 = vmatmul.mubr.f32.gmra.mrb[0].mxu0 %v3416
    %v3653 = vpop.f32.mrb[0].mxu0
    %v3654 = vadd.f32 %v3440, %v3653
    %v3655 = vpop.f32.mrb[0].mxu0
    %3656 = vmatprep.mubr.f32.mxu0 0.0
    %3657 = vmatmul.mubr.f32.gmra.mrb[0].mxu0 %v3417
    %v3658 = vpop.f32.mrb[0].mxu0
    %v3659 = vadd.f32 %v3440, %v3658
    %v3660 = vpop.f32.mrb[0].mxu0
    %3661 = vmatprep.mubr.f32.mxu0 0.0
    %3662 = vmatmul.mubr.f32.gmra.mrb[0].mxu0 %v3418
    %v3663 = vpop.f32.mrb[0].mxu0
    %v3664 = vadd.f32 %v3440, %v3663
    %v3665 = vpop.f32.mrb[0].mxu0
    %3666 = vdwg.mxu0
    %v3667 = vxor.u32 %v3509, 2147483648
    %v3668 = vxor.u32 %v3514, 2147483648
    %v3669 = vxor.u32 %v3519, 2147483648
    %v3670 = vxor.u32 %v3524, 2147483648
    %v3671 = vxor.u32 %v3529, 2147483648
    %v3672 = vxor.u32 %v3534, 2147483648
    %v3673 = vxor.u32 %v3539, 2147483648
    %v3674 = vxor.u32 %v3544, 2147483648
    %v3675 = vxor.u32 %v3549, 2147483648
    %v3676 = vxor.u32 %v3554, 2147483648
    %v3677 = vxor.u32 %v3559, 2147483648
    %v3678 = vxor.u32 %v3564, 2147483648
    %v3679 = vxor.u32 %v3569, 2147483648
    %v3680 = vxor.u32 %v3574, 2147483648
    %v3681 = vxor.u32 %v3579, 2147483648
    %v3682 = vxor.u32 %v3584, 2147483648
    %v3683 = vxor.u32 %v3589, 2147483648
    %v3684 = vxor.u32 %v3594, 2147483648
    %v3685 = vxor.u32 %v3599, 2147483648
    %v3686 = vxor.u32 %v3604, 2147483648
    %v3687 = vxor.u32 %v3609, 2147483648
    %v3688 = vxor.u32 %v3614, 2147483648
    %v3689 = vxor.u32 %v3619, 2147483648
    %v3690 = vxor.u32 %v3624, 2147483648
    %v3691 = vxor.u32 %v3629, 2147483648
    %v3692 = vxor.u32 %v3634, 2147483648
    %v3693 = vxor.u32 %v3639, 2147483648
    %v3694 = vxor.u32 %v3644, 2147483648
    %v3695 = vxor.u32 %v3649, 2147483648
    %v3696 = vxor.u32 %v3654, 2147483648
    %v3697 = vxor.u32 %v3659, 2147483648
    %v3698 = vxor.u32 %v3664, 2147483648
    %v3699 = vmul.f32 %v3667, 1.442695
    %v3700 = vpow.pop %v3699
    %v3701 = vmul.f32 %v3668, 1.442695
    %v3702 = vpow.pop %v3701
    %v3703 = vmul.f32 %v3669, 1.442695
    %v3704 = vpow.pop %v3703
    %v3705 = vmul.f32 %v3670, 1.442695
    %v3706 = vpow.pop %v3705
    %v3707 = vmul.f32 %v3671, 1.442695
    %v3708 = vpow.pop %v3707
    %v3709 = vmul.f32 %v3672, 1.442695
    %v3710 = vpow.pop %v3709
    %v3711 = vmul.f32 %v3673, 1.442695
    %v3712 = vpow.pop %v3711
    %v3713 = vmul.f32 %v3674, 1.442695
    %v3714 = vpow.pop %v3713
    %v3715 = vmul.f32 %v3675, 1.442695
    %v3716 = vpow.pop %v3715
    %v3717 = vmul.f32 %v3676, 1.442695
    %v3718 = vpow.pop %v3717
    %v3719 = vmul.f32 %v3677, 1.442695
    %v3720 = vpow.pop %v3719
    %v3721 = vmul.f32 %v3678, 1.442695
    %v3722 = vpow.pop %v3721
    %v3723 = vmul.f32 %v3679, 1.442695
    %v3724 = vpow.pop %v3723
    %v3725 = vmul.f32 %v3680, 1.442695
    %v3726 = vpow.pop %v3725
    %v3727 = vmul.f32 %v3681, 1.442695
    %v3728 = vpow.pop %v3727
    %v3729 = vmul.f32 %v3682, 1.442695
    %v3730 = vpow.pop %v3729
    %v3731 = vmul.f32 %v3683, 1.442695
    %v3732 = vpow.pop %v3731
    %v3733 = vmul.f32 %v3684, 1.442695
    %v3734 = vpow.pop %v3733
    %v3735 = vmul.f32 %v3685, 1.442695
    %v3736 = vpow.pop %v3735
    %v3737 = vmul.f32 %v3686, 1.442695
    %v3738 = vpow.pop %v3737
    %v3739 = vmul.f32 %v3687, 1.442695
    %v3740 = vpow.pop %v3739
    %v3741 = vmul.f32 %v3688, 1.442695
    %v3742 = vpow.pop %v3741
    %v3743 = vmul.f32 %v3689, 1.442695
    %v3744 = vpow.pop %v3743
    %v3745 = vmul.f32 %v3690, 1.442695
    %v3746 = vpow.pop %v3745
    %v3747 = vmul.f32 %v3691, 1.442695
    %v3748 = vpow.pop %v3747
    %v3749 = vmul.f32 %v3692, 1.442695
    %v3750 = vpow.pop %v3749
    %v3751 = vmul.f32 %v3693, 1.442695
    %v3752 = vpow.pop %v3751
    %v3753 = vmul.f32 %v3694, 1.442695
    %v3754 = vpow.pop %v3753
    %v3755 = vmul.f32 %v3695, 1.442695
    %v3756 = vpow.pop %v3755
    %v3757 = vmul.f32 %v3696, 1.442695
    %v3758 = vpow.pop %v3757
    %v3759 = vmul.f32 %v3697, 1.442695
    %v3760 = vpow.pop %v3759
    %v3761 = vmul.f32 %v3698, 1.442695
    %v3762 = vpow.pop %v3761
    %v3763 = vadd.f32 %v3700, 1.0
    %v3764 = vadd.f32 %v3702, 1.0
    %v3765 = vadd.f32 %v3704, 1.0
    %v3766 = vadd.f32 %v3706, 1.0
    %v3767 = vadd.f32 %v3708, 1.0
    %v3768 = vadd.f32 %v3710, 1.0
    %v3769 = vadd.f32 %v3712, 1.0
    %v3770 = vadd.f32 %v3714, 1.0
    %v3771 = vadd.f32 %v3716, 1.0
    %v3772 = vadd.f32 %v3718, 1.0
    %v3773 = vadd.f32 %v3720, 1.0
    %v3774 = vadd.f32 %v3722, 1.0
    %v3775 = vadd.f32 %v3724, 1.0
    %v3776 = vadd.f32 %v3726, 1.0
    %v3777 = vadd.f32 %v3728, 1.0
    %v3778 = vadd.f32 %v3730, 1.0
    %v3779 = vadd.f32 %v3732, 1.0
    %v3780 = vadd.f32 %v3734, 1.0
    %v3781 = vadd.f32 %v3736, 1.0
    %v3782 = vadd.f32 %v3738, 1.0
    %v3783 = vadd.f32 %v3740, 1.0
    %v3784 = vadd.f32 %v3742, 1.0
    %v3785 = vadd.f32 %v3744, 1.0
    %v3786 = vadd.f32 %v3746, 1.0
    %v3787 = vadd.f32 %v3748, 1.0
    %v3788 = vadd.f32 %v3750, 1.0
    %v3789 = vadd.f32 %v3752, 1.0
    %v3790 = vadd.f32 %v3754, 1.0
    %v3791 = vadd.f32 %v3756, 1.0
    %v3792 = vadd.f32 %v3758, 1.0
    %v3793 = vadd.f32 %v3760, 1.0
    %v3794 = vadd.f32 %v3762, 1.0
    %v3795 = vrcp.pop %v3763
    %v3796 = vmul.f32 1.0, %v3795
    %v3797 = vrcp.pop %v3764
    %v3798 = vmul.f32 1.0, %v3797
    %v3799 = vrcp.pop %v3765
    %v3800 = vmul.f32 1.0, %v3799
    %v3801 = vrcp.pop %v3766
    %v3802 = vmul.f32 1.0, %v3801
    %v3803 = vrcp.pop %v3767
    %v3804 = vmul.f32 1.0, %v3803
    %v3805 = vrcp.pop %v3768
    %v3806 = vmul.f32 1.0, %v3805
    %v3807 = vrcp.pop %v3769
    %v3808 = vmul.f32 1.0, %v3807
    %v3809 = vrcp.pop %v3770
    %v3810 = vmul.f32 1.0, %v3809
    %v3811 = vrcp.pop %v3771
    %v3812 = vmul.f32 1.0, %v3811
    %v3813 = vrcp.pop %v3772
    %v3814 = vmul.f32 1.0, %v3813
    %v3815 = vrcp.pop %v3773
    %v3816 = vmul.f32 1.0, %v3815
    %v3817 = vrcp.pop %v3774
    %v3818 = vmul.f32 1.0, %v3817
    %v3819 = vrcp.pop %v3775
    %v3820 = vmul.f32 1.0, %v3819
    %v3821 = vrcp.pop %v3776
    %v3822 = vmul.f32 1.0, %v3821
    %v3823 = vrcp.pop %v3777
    %v3824 = vmul.f32 1.0, %v3823
    %v3825 = vrcp.pop %v3778
    %v3826 = vmul.f32 1.0, %v3825
    %v3827 = vrcp.pop %v3779
    %v3828 = vmul.f32 1.0, %v3827
    %v3829 = vrcp.pop %v3780
    %v3830 = vmul.f32 1.0, %v3829
    %v3831 = vrcp.pop %v3781
    %v3832 = vmul.f32 1.0, %v3831
    %v3833 = vrcp.pop %v3782
    %v3834 = vmul.f32 1.0, %v3833
    %v3835 = vrcp.pop %v3783
    %v3836 = vmul.f32 1.0, %v3835
    %v3837 = vrcp.pop %v3784
    %v3838 = vmul.f32 1.0, %v3837
    %v3839 = vrcp.pop %v3785
    %v3840 = vmul.f32 1.0, %v3839
    %v3841 = vrcp.pop %v3786
    %v3842 = vmul.f32 1.0, %v3841
    %v3843 = vrcp.pop %v3787
    %v3844 = vmul.f32 1.0, %v3843
    %v3845 = vrcp.pop %v3788
    %v3846 = vmul.f32 1.0, %v3845
    %v3847 = vrcp.pop %v3789
    %v3848 = vmul.f32 1.0, %v3847
    %v3849 = vrcp.pop %v3790
    %v3850 = vmul.f32 1.0, %v3849
    %v3851 = vrcp.pop %v3791
    %v3852 = vmul.f32 1.0, %v3851
    %v3853 = vrcp.pop %v3792
    %v3854 = vmul.f32 1.0, %v3853
    %v3855 = vrcp.pop %v3793
    %v3856 = vmul.f32 1.0, %v3855
    %v3857 = vrcp.pop %v3794
    %v3858 = vmul.f32 1.0, %v3857
    %3859 = vst [vmem:[#allocation9] sm:$0xff] %v3796
    %3860 = vst [vmem:[#allocation9 + $0x8] sm:$0xff] %v3798
    %3861 = vst [vmem:[#allocation9 + $0x10] sm:$0xff] %v3800
    %3862 = vst [vmem:[#allocation9 + $0x18] sm:$0xff] %v3802
    %3863 = vst [vmem:[#allocation9 + $0x20] sm:$0xff] %v3804
    %3864 = vst [vmem:[#allocation9 + $0x28] sm:$0xff] %v3806
    %3865 = vst [vmem:[#allocation9 + $0x30] sm:$0xff] %v3808
    %3866 = vst [vmem:[#allocation9 + $0x38] sm:$0xff] %v3810
    %3867 = vst [vmem:[#allocation9 + $0x40] sm:$0xff] %v3812
    %3868 = vst [vmem:[#allocation9 + $0x48] sm:$0xff] %v3814
    %3869 = vst [vmem:[#allocation9 + $0x50] sm:$0xff] %v3816
    %3870 = vst [vmem:[#allocation9 + $0x58] sm:$0xff] %v3818
    %3871 = vst [vmem:[#allocation9 + $0x60] sm:$0xff] %v3820
    %3872 = vst [vmem:[#allocation9 + $0x68] sm:$0xff] %v3822
    %3873 = vst [vmem:[#allocation9 + $0x70] sm:$0xff] %v3824
    %3874 = vst [vmem:[#allocation9 + $0x78] sm:$0xff] %v3826
    %3875 = vst [vmem:[#allocation9 + $0x80] sm:$0xff] %v3828
    %3876 = vst [vmem:[#allocation9 + $0x88] sm:$0xff] %v3830
    %3877 = vst [vmem:[#allocation9 + $0x90] sm:$0xff] %v3832
    %3878 = vst [vmem:[#allocation9 + $0x98] sm:$0xff] %v3834
    %3879 = vst [vmem:[#allocation9 + $0xa0] sm:$0xff] %v3836
    %3880 = vst [vmem:[#allocation9 + $0xa8] sm:$0xff] %v3838
    %3881 = vst [vmem:[#allocation9 + $0xb0] sm:$0xff] %v3840
    %3882 = vst [vmem:[#allocation9 + $0xb8] sm:$0xff] %v3842
    %3883 = vst [vmem:[#allocation9 + $0xc0] sm:$0xff] %v3844
    %3884 = vst [vmem:[#allocation9 + $0xc8] sm:$0xff] %v3846
    %3885 = vst [vmem:[#allocation9 + $0xd0] sm:$0xff] %v3848
    %3886 = vst [vmem:[#allocation9 + $0xd8] sm:$0xff] %v3850
    %3887 = vst [vmem:[#allocation9 + $0xe0] sm:$0xff] %v3852
    %3888 = vst [vmem:[#allocation9 + $0xe8] sm:$0xff] %v3854
    %3889 = vst [vmem:[#allocation9 + $0xf0] sm:$0xff] %v3856
    %3890 = vst [vmem:[#allocation9 + $0xf8] sm:$0xff] %v3858
    // Predicated region
    $region46: #{tpu_custom_call.1} parent=1 // pred_check
      _
    $region47: #{tpu_custom_call.1} parent=1 // pred_check_branch
      %3892 = sbr.rel (0) target = $region49
    $region48: #{tpu_custom_call.1} parent=1 // pred_region
      %s3894 = ssub.s32 4096, 4096
      %3895 = vsyncadd [#allocation5], %s3894
      %s3896 = sshll.u32 [#allocation9], 4
      %s3897 = int_to_ptr.vmem [resolvable:$true] %s3896
      %3902 = dma.vmem_to_hbm [thread:$0]  %s3897, 4096, %s8, [#allocation5], 128, 128, 8
    $region49: #{tpu_custom_call.1} parent=1 // pred_fallthru
      _
    // Predicated region
    $region50: #{tpu_custom_call.1} parent=1 // pred_check
      _
    $region51: #{tpu_custom_call.1} parent=1 // pred_check_branch
      %3904 = sbr.rel (0) target = $region53
    $region52: #{tpu_custom_call.1} parent=1 // pred_region
      %3905 = dma.done [#allocation5], 4096
    $region53: #{tpu_custom_call.1} parent=1 // pred_fallthru
      _
    %3906 = vsyncpa [#allocation4], 1
    %3907 = vsyncpa [#allocation7], 1
    %3908 = vsyncpa [#allocation5], 1

</llo_original>
